<compile_context>
chip_gen: v7x
topology: tpu7x:2x2x1
jax: 0.10.0
libtpu: 0.0.40
codegen_flags: <defaults>
</compile_context>

<pallas_src>
import numpy as np

import jax
import jax.numpy as jnp
from jax.experimental import pallas as pl
from jax.experimental.pallas import tpu as pltpu


# ------------------------------ Pallas kernel -------------------------------

def _fused_cnn_kernel(x_ref, w1_ref, b1_ref, w2_ref, b2_ref, wfc_ref, bfc_ref,
                      o_ref, s_ref, f_ref):
    """Fused conv1+pool+relu -> conv2+pool+relu -> fc1+relu for BN images.

    x_ref  : (BN*16, 168) bf16  row-windows: row (n,i), lane r*28+w = x[n,0,2i+r,w]
                                 (i = pooled row 0..11; rows 12..15 are zero pad)
    w1_ref : (168, 1024) bf16   banded conv1 weights; out lane =
                                 di*512 + dj*256 + j*16 + c (lanes 192..255 of each
                                 256-block unused -> zero weights)
    b1_ref : (1, 256)  f32      conv1 bias broadcast to lane layout j*16+c
    w2_ref : (1280, 256) bf16   banded conv2 weights; K-index = kh*256 + jcol*16 + cin,
                                 out lane = dj2*128 + j2*32 + c2
    b2_ref : (1, 128)  f32      conv2 bias broadcast to lane layout j2*32+c2
    wfc_ref: (512, 256) bf16    fc1 weight, row = i2*128 + j2*32 + c2 (absorbs the
                                 PyTorch .view(-1,512) flatten order)
    bfc_ref: (1, 256)  f32      fc1 bias
    o_ref  : (BN, 256) f32      output of fc1 + ReLU
    s_ref  : (BN*8, 1280) bf16  scratch: conv2 LHS (5 row-shifted h1 windows)
    f_ref  : (BN, 512)  bf16    scratch: fc1 LHS (di2-pooled, flattened)
    """
    bn = o_ref.shape[0]

    # ---- conv1 (5x5, 1->16) + 2x2/2 max-pool + bias + ReLU ------------------
    # One 1024-lane matmul; both pooling phases are 128-aligned lane-half maxima.
    y = jnp.dot(x_ref[...], w1_ref[...],
                preferred_element_type=jnp.float32)          # (bn*16, 1024)
    y = jnp.maximum(y[:, 0:512], y[:, 512:1024])             # max over row phase di
    y = jnp.maximum(y[:, 0:256], y[:, 256:512])              # max over col phase dj
    h1 = jnp.maximum(y + b1_ref[...], 0.0)                   # bias + ReLU, f32
    # Single bf16 cast of h1 (rows 12..15 per image hold relu(bias) pad garbage;
    # conv2 only ever reads rows 0..11, so they are never consumed).
    h1b = h1.astype(jnp.bfloat16).reshape(bn, 16, 256)

    # ---- conv2 (5x5, 16->32) + 2x2/2 max-pool + bias + ReLU -----------------
    # Stage the 5 kh-shifted row windows at 256-lane-aligned blocks of one bf16
    # buffer, then a single K=1280 matmul (replaces 5 dots + 4 f32 adds).
    for kh in range(5):
        s_ref[:, kh * 256:(kh + 1) * 256] = (
            h1b[:, kh:kh + 8, :].reshape(bn * 8, 256))
    acc = jnp.dot(s_ref[...], w2_ref[...],
                  preferred_element_type=jnp.float32)        # (bn*8, 256)
    g = jnp.maximum(acc[:, 0:128], acc[:, 128:256])          # max over col phase dj2
    g = jnp.maximum(g + b2_ref[...], 0.0)                    # bias + ReLU, f32
    g = g.reshape(bn, 8, 128)

    # ---- pool row-phase di2 + flatten(.view(-1,512)) + fc1 + ReLU -----------
    # di2 max per pooled row, written to 128-aligned lane slices of the fc LHS;
    # then a single K=512 matmul (replaces 4 dots + 3 f32 adds).
    for i2 in range(4):
        p = jnp.maximum(g[:, 2 * i2, :], g[:, 2 * i2 + 1, :])
        f_ref[:, i2 * 128:(i2 + 1) * 128] = p.astype(jnp.bfloat16)
    out = jnp.dot(f_ref[...], wfc_ref[...],
                  preferred_element_type=jnp.float32)        # (bn, 256)
    o_ref[...] = jnp.maximum(out + bfc_ref[...], 0.0)


def _fused_forward(x6, kp, *, bn, n_pad):
    grid = (n_pad // bn,)
    return pl.pallas_call(
        _fused_cnn_kernel,
        out_shape=jax.ShapeDtypeStruct((n_pad, 256), jnp.float32),
        grid_spec=pltpu.PrefetchScalarGridSpec(
            num_scalar_prefetch=0,
            grid=grid,
            in_specs=[
                pl.BlockSpec((bn * 16, 168), lambda n: (n, 0)),
                pl.BlockSpec((168, 1024), lambda n: (0, 0)),
                pl.BlockSpec((1, 256), lambda n: (0, 0)),
                pl.BlockSpec((1280, 256), lambda n: (0, 0)),
                pl.BlockSpec((1, 128), lambda n: (0, 0)),
                pl.BlockSpec((512, 256), lambda n: (0, 0)),
                pl.BlockSpec((1, 256), lambda n: (0, 0)),
            ],
            out_specs=pl.BlockSpec((bn, 256), lambda n: (n, 0)),
            scratch_shapes=[
                pltpu.VMEM((bn * 8, 1280), jnp.bfloat16),   # conv2 LHS staging
                pltpu.VMEM((bn, 512), jnp.bfloat16),        # fc1 LHS staging
            ],
        ),
        compiler_params=pltpu.CompilerParams(
            dimension_semantics=("parallel",),
            # Explicit limit (v5e scoped default is only 16 MiB); sized to stay
            # inside v7x's 64 MiB physical VMEM with headroom at bn=128.
            vmem_limit_bytes=48 * 1024 * 1024),
    )(x6, kp["w1"], kp["b1"], kp["w2"], kp["b2"], kp["wfc"], kp["bfc"])


# -------------------------- host-side weight prep ---------------------------
# Built ONCE (not per forward call): banded weight matrices that fold the conv
# im2col + pooling-phase layout into a single matmul per stage, plus lane-layout
# biases and the flattened/permuted fc1 weight.

def prepare_kernel_params(params):
    w1 = np.asarray(params["w1"], np.float32)      # (16, 1, 5, 5)  (cout,cin,kh,kw)
    b1 = np.asarray(params["b1"], np.float32)      # (16,)
    w2 = np.asarray(params["w2"], np.float32)      # (32, 16, 5, 5)
    b2 = np.asarray(params["b2"], np.float32)      # (32,)
    wfc1 = np.asarray(params["wfc1"], np.float32)  # (256, 512)
    bfc1 = np.asarray(params["bfc1"], np.float32)  # (256,)

    # conv1: LHS row (n,i) holds x[n, 0, 2i+r, w] at K-index r*28+w (r=0..5).
    # Output lane = di*512 + dj*256 + j*16 + c (both pool phases live in lanes).
    w1big = np.zeros((168, 1024), np.float32)
    for di in range(2):
        for dj in range(2):
            for j in range(12):
                for kh in range(5):
                    for kw in range(5):
                        row = (di + kh) * 28 + (2 * j + dj + kw)
                        col = di * 512 + dj * 256 + j * 16
                        w1big[row, col:col + 16] = w1[:, 0, kh, kw]
    b1row = np.zeros((1, 256), np.float32)
    for j in range(12):
        b1row[0, j * 16:(j + 1) * 16] = b1

    # conv2: LHS row (n,hout) lane kh*256 + jcol*16 + cin holds
    # h1[n, cin, hout+kh, jcol] (jcol = 0..11; lanes kh*256 + 192..255 hit the
    # zero-padded h1 lanes -> zero weights).  Output lane = dj2*128 + j2*32 + c2.
    w2flat = np.zeros((1280, 256), np.float32)
    for kh in range(5):
        for dj2 in range(2):
            for j2 in range(4):
                for kw in range(5):
                    row0 = kh * 256 + (2 * j2 + dj2 + kw) * 16
                    col = dj2 * 128 + j2 * 32
                    for cin in range(16):
                        w2flat[row0 + cin, col:col + 32] = w2[:, cin, kh, kw]
    b2row = np.zeros((1, 128), np.float32)
    for j2 in range(4):
        b2row[0, j2 * 32:(j2 + 1) * 32] = b2

    # fc1: kernel LHS lane = i2*128 + j2*32 + c2; PyTorch flatten index of that
    # element is c2*16 + i2*4 + j2 (C,H,W order of the (32,4,4) pooled map).
    wfcflat = np.zeros((512, 256), np.float32)
    for i2 in range(4):
        for j2 in range(4):
            for c2 in range(32):
                wfcflat[i2 * 128 + j2 * 32 + c2, :] = wfc1[:, c2 * 16 + i2 * 4 + j2]
    bfcrow = bfc1.reshape(1, 256)

    return {
        "w1": jnp.asarray(w1big, jnp.bfloat16),
        "b1": jnp.asarray(b1row, jnp.float32),
        "w2": jnp.asarray(w2flat, jnp.bfloat16),
        "b2": jnp.asarray(b2row, jnp.float32),
        "wfc": jnp.asarray(wfcflat, jnp.bfloat16),
        "bfc": jnp.asarray(bfcrow, jnp.float32),
    }


# ------------------------------- JAX glue -----------------------------------

def _round_up(a, b):
    return ((a + b - 1) // b) * b


def _pick_bn(n, max_bn=128):
    """Batch-block size.

    Large enough to amortize the ~0.35us per-grid-step overhead and fill the MXU
    M dimension, capped at max_bn=128 so the in-kernel f32 intermediates
    (dominated by the (bn*16, 1024) conv1 dot output) stay well inside v7x's
    64 MiB VMEM (raiseable to 256 on v6e's 128 MiB).  When N allows, pick bn so
    the grid has >= 2 steps so v7x's two TensorCores both get work.
    """
    if n <= 16:
        return _round_up(max(n, 1), 8)
    if n <= 2 * max_bn:
        return _round_up((n + 1) // 2, 8)            # exactly 2 grid steps
    steps = -(-n // max_bn)                          # minimal steps with bn<=max_bn
    return _round_up(-(-n // steps), 8)              # minimize padded images


def _build_conv1_lhs(x_nchw, n_pad):
    """(N,1,28,28) -> (n_pad*16, 168) bf16 row-window tensor (pure data movement).

    Row (n, i) (i = pooled output row 0..11) holds image rows 2i..2i+5 flattened,
    i.e. lane r*28 + w = x[n, 0, 2i+r, w].  Rows 12..15 per image are zero pad so
    each image occupies a whole (16, lanes) tile.  Built in bf16 from the start
    so the 3x-duplicated window tensor costs half the HBM traffic of an f32 one.
    """
    N = x_nchw.shape[0]
    x_img = x_nchw[:, 0].astype(jnp.bfloat16)                     # (N, 28, 28)
    rows = jnp.stack([x_img[:, 2 * i:2 * i + 6, :] for i in range(12)],
                     axis=1)                                      # (N, 12, 6, 28)
    x6 = rows.reshape(N, 12, 168)
    x6 = jnp.pad(x6, ((0, n_pad - N), (0, 4), (0, 0)))            # (n_pad, 16, 168)
    return x6.reshape(n_pad * 16, 168)


def model_cnn2_forward(x_nchw, kparams):
    N = x_nchw.shape[0]
    bn = _pick_bn(N)
    n_pad = _round_up(N, bn)
    x6 = _build_conv1_lhs(x_nchw, n_pad)
    out = _fused_forward(x6, kparams, bn=bn, n_pad=n_pad)         # (n_pad, 256)
    return out[:N]                                                # (N, 256)


# --------------------------- pure-JAX reference -----------------------------

def _reference_forward(x_nchw, params):
    y = jax.lax.conv_general_dilated(
        x_nchw, params["w1"], (1, 1), "VALID",
        dimension_numbers=("NCHW", "OIHW", "NCHW"))
    y = y + params["b1"][None, :, None, None]
    y = jax.lax.reduce_window(y, -jnp.inf, jax.lax.max,
                              (1, 1, 2, 2), (1, 1, 2, 2), "VALID")
    y = jnp.maximum(y, 0.0)
    y = jax.lax.conv_general_dilated(
        y, params["w2"], (1, 1), "VALID",
        dimension_numbers=("NCHW", "OIHW", "NCHW"))
    y = y + params["b2"][None, :, None, None]
    y = jax.lax.reduce_window(y, -jnp.inf, jax.lax.max,
                              (1, 1, 2, 2), (1, 1, 2, 2), "VALID")
    y = jnp.maximum(y, 0.0)
    y = y.reshape(y.shape[0], 512)
    return jnp.maximum(y @ params["wfc1"].T + params["bfc1"], 0.0)


# --------------------------------- main -------------------------------------

if __name__ == "__main__":
    key = jax.random.PRNGKey(0)
    ks = jax.random.split(key, 7)
    params = {
        "w1":   jax.random.normal(ks[0], (16, 1, 5, 5), jnp.float32) * 0.10,
        "b1":   jax.random.normal(ks[1], (16,),          jnp.float32) * 0.10,
        "w2":   jax.random.normal(ks[2], (32, 16, 5, 5), jnp.float32) * 0.05,
        "b2":   jax.random.normal(ks[3], (32,),          jnp.float32) * 0.10,
        "wfc1": jax.random.normal(ks[4], (256, 512),     jnp.float32) * 0.05,
        "bfc1": jax.random.normal(ks[5], (256,),         jnp.float32) * 0.10,
    }
    x = jax.random.normal(ks[6], (2, 1, 28, 28), jnp.float32)

    kparams = prepare_kernel_params(params)          # one-time weight transform
    forward = jax.jit(model_cnn2_forward)

    out = jax.block_until_ready(forward(x, kparams))
    assert out.shape == (2, 256) and out.dtype == jnp.float32

    ref = jax.block_until_ready(_reference_forward(x, params))
    assert jnp.allclose(out, ref, rtol=5e-2, atol=5e-2), "mismatch vs reference"

    print("KERNEL_OK")
</pallas_src>

<mosaic_0001>
module attributes {stable_mosaic.version = 11 : i64} {
  func.func @_fused_cnn_kernel(%arg0: i32, %arg1: memref<128x168xbf16, #tpu.memory_space<vmem>>, %arg2: memref<168x1024xbf16, #tpu.memory_space<vmem>>, %arg3: memref<1x256xf32, #tpu.memory_space<vmem>>, %arg4: memref<1280x256xbf16, #tpu.memory_space<vmem>>, %arg5: memref<1x128xf32, #tpu.memory_space<vmem>>, %arg6: memref<512x256xbf16, #tpu.memory_space<vmem>>, %arg7: memref<1x256xf32, #tpu.memory_space<vmem>>, %arg8: memref<8x256xf32, #tpu.memory_space<vmem>>, %arg9: memref<64x1280xbf16, #tpu.memory_space<vmem>>, %arg10: memref<8x512xbf16, #tpu.memory_space<vmem>>) attributes {dimension_semantics = [#tpu.dimension_semantics<parallel>], iteration_bounds = array<i64: 1>, scalar_prefetch = 0 : i64, scratch_operands = 2 : i64, tpu.core_type = #tpu.core_type<tc>, window_params = [{transform_indices = @transform_0, window_bounds = array<i64: 128, 168>}, {pipeline_mode = #tpu.pipeline_mode<synchronous>, transform_indices = @transform_1, window_bounds = array<i64: 168, 1024>}, {pipeline_mode = #tpu.pipeline_mode<synchronous>, transform_indices = @transform_2, window_bounds = array<i64: 1, 256>}, {pipeline_mode = #tpu.pipeline_mode<synchronous>, transform_indices = @transform_3, window_bounds = array<i64: 1280, 256>}, {pipeline_mode = #tpu.pipeline_mode<synchronous>, transform_indices = @transform_4, window_bounds = array<i64: 1, 128>}, {pipeline_mode = #tpu.pipeline_mode<synchronous>, transform_indices = @transform_5, window_bounds = array<i64: 512, 256>}, {pipeline_mode = #tpu.pipeline_mode<synchronous>, transform_indices = @transform_6, window_bounds = array<i64: 1, 256>}, {transform_indices = @transform_7, window_bounds = array<i64: 8, 256>}]} {
    %c0 = arith.constant 0 : index
    %c0_0 = arith.constant 0 : index
    %0 = vector.load %arg1[%c0, %c0_0] : memref<128x168xbf16, #tpu.memory_space<vmem>>, vector<128x168xbf16>
    %c0_1 = arith.constant 0 : index
    %c0_2 = arith.constant 0 : index
    %1 = vector.load %arg2[%c0_1, %c0_2] : memref<168x1024xbf16, #tpu.memory_space<vmem>>, vector<168x1024xbf16>
    %cst = arith.constant dense<0.000000e+00> : vector<128x1024xf32>
    %2 = tpu.matmul %0, %1, %cst {dimension_numbers = #tpu.dot_dimension_numbers<[1], [0], [0], [1], [0, 0, 1, 1], [], []>} : vector<128x168xbf16>, vector<168x1024xbf16>, vector<128x1024xf32> -> vector<128x1024xf32>
    %3 = vector.extract_strided_slice %2 {offsets = [0, 0], sizes = [128, 512], strides = [1, 1]} : vector<128x1024xf32> to vector<128x512xf32>
    %4 = vector.extract_strided_slice %2 {offsets = [0, 512], sizes = [128, 512], strides = [1, 1]} : vector<128x1024xf32> to vector<128x512xf32>
    %5 = arith.maximumf %3, %4 : vector<128x512xf32>
    %6 = vector.extract_strided_slice %5 {offsets = [0, 0], sizes = [128, 256], strides = [1, 1]} : vector<128x512xf32> to vector<128x256xf32>
    %7 = vector.extract_strided_slice %5 {offsets = [0, 256], sizes = [128, 256], strides = [1, 1]} : vector<128x512xf32> to vector<128x256xf32>
    %8 = arith.maximumf %6, %7 : vector<128x256xf32>
    %c0_3 = arith.constant 0 : index
    %c0_4 = arith.constant 0 : index
    %9 = vector.load %arg3[%c0_3, %c0_4] : memref<1x256xf32, #tpu.memory_space<vmem>>, vector<1x256xf32>
    %10 = vector.broadcast %9 : vector<1x256xf32> to vector<128x256xf32>
    %11 = arith.addf %8, %10 : vector<128x256xf32>
    %cst_5 = arith.constant 0.000000e+00 : f32
    %12 = vector.broadcast %cst_5 : f32 to vector<128x256xf32>
    %13 = arith.maximumf %11, %12 : vector<128x256xf32>
    %14 = arith.truncf %13 : vector<128x256xf32> to vector<128x256xbf16>
    %15 = vector.shape_cast %14 : vector<128x256xbf16> to vector<8x16x256xbf16>
    %16 = vector.extract_strided_slice %15 {offsets = [0, 0, 0], sizes = [8, 8, 256], strides = [1, 1, 1]} : vector<8x16x256xbf16> to vector<8x8x256xbf16>
    %17 = vector.shape_cast %16 : vector<8x8x256xbf16> to vector<64x256xbf16>
    %c0_6 = arith.constant 0 : index
    %c0_7 = arith.constant 0 : index
    %18 = vector.load %arg9[%c0_6, %c0_7] : memref<64x1280xbf16, #tpu.memory_space<vmem>>, vector<64x256xbf16>
    tpu.vector_store %arg9[%c0_6, %c0_7], %17 {strides = array<i32>} : memref<64x1280xbf16, #tpu.memory_space<vmem>>, vector<64x256xbf16>,
    %19 = vector.extract_strided_slice %15 {offsets = [0, 1, 0], sizes = [8, 8, 256], strides = [1, 1, 1]} : vector<8x16x256xbf16> to vector<8x8x256xbf16>
    %20 = vector.shape_cast %19 : vector<8x8x256xbf16> to vector<64x256xbf16>
    %c0_8 = arith.constant 0 : index
    %c256 = arith.constant 256 : index
    %21 = vector.load %arg9[%c0_8, %c256] : memref<64x1280xbf16, #tpu.memory_space<vmem>>, vector<64x256xbf16>
    tpu.vector_store %arg9[%c0_8, %c256], %20 {strides = array<i32>} : memref<64x1280xbf16, #tpu.memory_space<vmem>>, vector<64x256xbf16>,
    %22 = vector.extract_strided_slice %15 {offsets = [0, 2, 0], sizes = [8, 8, 256], strides = [1, 1, 1]} : vector<8x16x256xbf16> to vector<8x8x256xbf16>
    %23 = vector.shape_cast %22 : vector<8x8x256xbf16> to vector<64x256xbf16>
    %c0_9 = arith.constant 0 : index
    %c512 = arith.constant 512 : index
    %24 = vector.load %arg9[%c0_9, %c512] : memref<64x1280xbf16, #tpu.memory_space<vmem>>, vector<64x256xbf16>
    tpu.vector_store %arg9[%c0_9, %c512], %23 {strides = array<i32>} : memref<64x1280xbf16, #tpu.memory_space<vmem>>, vector<64x256xbf16>,
    %25 = vector.extract_strided_slice %15 {offsets = [0, 3, 0], sizes = [8, 8, 256], strides = [1, 1, 1]} : vector<8x16x256xbf16> to vector<8x8x256xbf16>
    %26 = vector.shape_cast %25 : vector<8x8x256xbf16> to vector<64x256xbf16>
    %c0_10 = arith.constant 0 : index
    %c768 = arith.constant 768 : index
    %27 = vector.load %arg9[%c0_10, %c768] : memref<64x1280xbf16, #tpu.memory_space<vmem>>, vector<64x256xbf16>
    tpu.vector_store %arg9[%c0_10, %c768], %26 {strides = array<i32>} : memref<64x1280xbf16, #tpu.memory_space<vmem>>, vector<64x256xbf16>,
    %28 = vector.extract_strided_slice %15 {offsets = [0, 4, 0], sizes = [8, 8, 256], strides = [1, 1, 1]} : vector<8x16x256xbf16> to vector<8x8x256xbf16>
    %29 = vector.shape_cast %28 : vector<8x8x256xbf16> to vector<64x256xbf16>
    %c0_11 = arith.constant 0 : index
    %c1024 = arith.constant 1024 : index
    %30 = vector.load %arg9[%c0_11, %c1024] : memref<64x1280xbf16, #tpu.memory_space<vmem>>, vector<64x256xbf16>
    tpu.vector_store %arg9[%c0_11, %c1024], %29 {strides = array<i32>} : memref<64x1280xbf16, #tpu.memory_space<vmem>>, vector<64x256xbf16>,
    %c0_12 = arith.constant 0 : index
    %c0_13 = arith.constant 0 : index
    %31 = vector.load %arg9[%c0_12, %c0_13] : memref<64x1280xbf16, #tpu.memory_space<vmem>>, vector<64x1280xbf16>
    %c0_14 = arith.constant 0 : index
    %c0_15 = arith.constant 0 : index
    %32 = vector.load %arg4[%c0_14, %c0_15] : memref<1280x256xbf16, #tpu.memory_space<vmem>>, vector<1280x256xbf16>
    %cst_16 = arith.constant dense<0.000000e+00> : vector<64x256xf32>
    %33 = tpu.matmul %31, %32, %cst_16 {dimension_numbers = #tpu.dot_dimension_numbers<[1], [0], [0], [1], [0, 0, 1, 1], [], []>} : vector<64x1280xbf16>, vector<1280x256xbf16>, vector<64x256xf32> -> vector<64x256xf32>
    %34 = vector.extract_strided_slice %33 {offsets = [0, 0], sizes = [64, 128], strides = [1, 1]} : vector<64x256xf32> to vector<64x128xf32>
    %35 = vector.extract_strided_slice %33 {offsets = [0, 128], sizes = [64, 128], strides = [1, 1]} : vector<64x256xf32> to vector<64x128xf32>
    %36 = arith.maximumf %34, %35 : vector<64x128xf32>
    %c0_17 = arith.constant 0 : index
    %c0_18 = arith.constant 0 : index
    %37 = vector.load %arg5[%c0_17, %c0_18] : memref<1x128xf32, #tpu.memory_space<vmem>>, vector<1x128xf32>
    %38 = vector.broadcast %37 : vector<1x128xf32> to vector<64x128xf32>
    %39 = arith.addf %36, %38 : vector<64x128xf32>
    %cst_19 = arith.constant 0.000000e+00 : f32
    %40 = vector.broadcast %cst_19 : f32 to vector<64x128xf32>
    %41 = arith.maximumf %39, %40 : vector<64x128xf32>
    %42 = vector.shape_cast %41 : vector<64x128xf32> to vector<8x8x128xf32>
    %43 = vector.extract_strided_slice %42 {offsets = [0, 0, 0], sizes = [8, 1, 128], strides = [1, 1, 1]} : vector<8x8x128xf32> to vector<8x1x128xf32>
    %44 = vector.shape_cast %43 : vector<8x1x128xf32> to vector<8x128xf32>
    %45 = vector.extract_strided_slice %42 {offsets = [0, 1, 0], sizes = [8, 1, 128], strides = [1, 1, 1]} : vector<8x8x128xf32> to vector<8x1x128xf32>
    %46 = vector.shape_cast %45 : vector<8x1x128xf32> to vector<8x128xf32>
    %47 = arith.maximumf %44, %46 : vector<8x128xf32>
    %48 = arith.truncf %47 : vector<8x128xf32> to vector<8x128xbf16>
    %c0_20 = arith.constant 0 : index
    %c0_21 = arith.constant 0 : index
    %49 = vector.load %arg10[%c0_20, %c0_21] : memref<8x512xbf16, #tpu.memory_space<vmem>>, vector<8x128xbf16>
    tpu.vector_store %arg10[%c0_20, %c0_21], %48 {strides = array<i32>} : memref<8x512xbf16, #tpu.memory_space<vmem>>, vector<8x128xbf16>,
    %50 = vector.extract_strided_slice %42 {offsets = [0, 2, 0], sizes = [8, 1, 128], strides = [1, 1, 1]} : vector<8x8x128xf32> to vector<8x1x128xf32>
    %51 = vector.shape_cast %50 : vector<8x1x128xf32> to vector<8x128xf32>
    %52 = vector.extract_strided_slice %42 {offsets = [0, 3, 0], sizes = [8, 1, 128], strides = [1, 1, 1]} : vector<8x8x128xf32> to vector<8x1x128xf32>
    %53 = vector.shape_cast %52 : vector<8x1x128xf32> to vector<8x128xf32>
    %54 = arith.maximumf %51, %53 : vector<8x128xf32>
    %55 = arith.truncf %54 : vector<8x128xf32> to vector<8x128xbf16>
    %c0_22 = arith.constant 0 : index
    %c128 = arith.constant 128 : index
    %56 = vector.load %arg10[%c0_22, %c128] : memref<8x512xbf16, #tpu.memory_space<vmem>>, vector<8x128xbf16>
    tpu.vector_store %arg10[%c0_22, %c128], %55 {strides = array<i32>} : memref<8x512xbf16, #tpu.memory_space<vmem>>, vector<8x128xbf16>,
    %57 = vector.extract_strided_slice %42 {offsets = [0, 4, 0], sizes = [8, 1, 128], strides = [1, 1, 1]} : vector<8x8x128xf32> to vector<8x1x128xf32>
    %58 = vector.shape_cast %57 : vector<8x1x128xf32> to vector<8x128xf32>
    %59 = vector.extract_strided_slice %42 {offsets = [0, 5, 0], sizes = [8, 1, 128], strides = [1, 1, 1]} : vector<8x8x128xf32> to vector<8x1x128xf32>
    %60 = vector.shape_cast %59 : vector<8x1x128xf32> to vector<8x128xf32>
    %61 = arith.maximumf %58, %60 : vector<8x128xf32>
    %62 = arith.truncf %61 : vector<8x128xf32> to vector<8x128xbf16>
    %c0_23 = arith.constant 0 : index
    %c256_24 = arith.constant 256 : index
    %63 = vector.load %arg10[%c0_23, %c256_24] : memref<8x512xbf16, #tpu.memory_space<vmem>>, vector<8x128xbf16>
    tpu.vector_store %arg10[%c0_23, %c256_24], %62 {strides = array<i32>} : memref<8x512xbf16, #tpu.memory_space<vmem>>, vector<8x128xbf16>,
    %64 = vector.extract_strided_slice %42 {offsets = [0, 6, 0], sizes = [8, 1, 128], strides = [1, 1, 1]} : vector<8x8x128xf32> to vector<8x1x128xf32>
    %65 = vector.shape_cast %64 : vector<8x1x128xf32> to vector<8x128xf32>
    %66 = vector.extract_strided_slice %42 {offsets = [0, 7, 0], sizes = [8, 1, 128], strides = [1, 1, 1]} : vector<8x8x128xf32> to vector<8x1x128xf32>
    %67 = vector.shape_cast %66 : vector<8x1x128xf32> to vector<8x128xf32>
    %68 = arith.maximumf %65, %67 : vector<8x128xf32>
    %69 = arith.truncf %68 : vector<8x128xf32> to vector<8x128xbf16>
    %c0_25 = arith.constant 0 : index
    %c384 = arith.constant 384 : index
    %70 = vector.load %arg10[%c0_25, %c384] : memref<8x512xbf16, #tpu.memory_space<vmem>>, vector<8x128xbf16>
    tpu.vector_store %arg10[%c0_25, %c384], %69 {strides = array<i32>} : memref<8x512xbf16, #tpu.memory_space<vmem>>, vector<8x128xbf16>,
    %c0_26 = arith.constant 0 : index
    %c0_27 = arith.constant 0 : index
    %71 = vector.load %arg10[%c0_26, %c0_27] : memref<8x512xbf16, #tpu.memory_space<vmem>>, vector<8x512xbf16>
    %c0_28 = arith.constant 0 : index
    %c0_29 = arith.constant 0 : index
    %72 = vector.load %arg6[%c0_28, %c0_29] : memref<512x256xbf16, #tpu.memory_space<vmem>>, vector<512x256xbf16>
    %cst_30 = arith.constant dense<0.000000e+00> : vector<8x256xf32>
    %73 = tpu.matmul %71, %72, %cst_30 {dimension_numbers = #tpu.dot_dimension_numbers<[1], [0], [0], [1], [0, 0, 1, 1], [], []>} : vector<8x512xbf16>, vector<512x256xbf16>, vector<8x256xf32> -> vector<8x256xf32>
    %c0_31 = arith.constant 0 : index
    %c0_32 = arith.constant 0 : index
    %74 = vector.load %arg7[%c0_31, %c0_32] : memref<1x256xf32, #tpu.memory_space<vmem>>, vector<1x256xf32>
    %75 = vector.broadcast %74 : vector<1x256xf32> to vector<8x256xf32>
    %76 = arith.addf %73, %75 : vector<8x256xf32>
    %cst_33 = arith.constant 0.000000e+00 : f32
    %77 = vector.broadcast %cst_33 : f32 to vector<8x256xf32>
    %78 = arith.maximumf %76, %77 : vector<8x256xf32>
    %c0_34 = arith.constant 0 : index
    %c0_35 = arith.constant 0 : index
    %79 = vector.load %arg8[%c0_34, %c0_35] : memref<8x256xf32, #tpu.memory_space<vmem>>, vector<8x256xf32>
    tpu.vector_store %arg8[%c0_34, %c0_35], %78 {strides = array<i32>} : memref<8x256xf32, #tpu.memory_space<vmem>>, vector<8x256xf32>,
    return
  }
  func.func @transform_0(%arg0: i32) -> (i32, i32) {
    %c0_i32 = arith.constant 0 : i32
    %c0_i32_0 = arith.constant 0 : i32
    return %arg0, %c0_i32 : i32, i32
  }
  func.func @transform_1(%arg0: i32) -> (i32, i32) {
    %c0_i32 = arith.constant 0 : i32
    %c0_i32_0 = arith.constant 0 : i32
    %c0_i32_1 = arith.constant 0 : i32
    return %c0_i32, %c0_i32_0 : i32, i32
  }
  func.func @transform_2(%arg0: i32) -> (i32, i32) {
    %c0_i32 = arith.constant 0 : i32
    %c0_i32_0 = arith.constant 0 : i32
    %c0_i32_1 = arith.constant 0 : i32
    return %c0_i32, %c0_i32_0 : i32, i32
  }
  func.func @transform_3(%arg0: i32) -> (i32, i32) {
    %c0_i32 = arith.constant 0 : i32
    %c0_i32_0 = arith.constant 0 : i32
    %c0_i32_1 = arith.constant 0 : i32
    return %c0_i32, %c0_i32_0 : i32, i32
  }
  func.func @transform_4(%arg0: i32) -> (i32, i32) {
    %c0_i32 = arith.constant 0 : i32
    %c0_i32_0 = arith.constant 0 : i32
    %c0_i32_1 = arith.constant 0 : i32
    return %c0_i32, %c0_i32_0 : i32, i32
  }
  func.func @transform_5(%arg0: i32) -> (i32, i32) {
    %c0_i32 = arith.constant 0 : i32
    %c0_i32_0 = arith.constant 0 : i32
    %c0_i32_1 = arith.constant 0 : i32
    return %c0_i32, %c0_i32_0 : i32, i32
  }
  func.func @transform_6(%arg0: i32) -> (i32, i32) {
    %c0_i32 = arith.constant 0 : i32
    %c0_i32_0 = arith.constant 0 : i32
    %c0_i32_1 = arith.constant 0 : i32
    return %c0_i32, %c0_i32_0 : i32, i32
  }
  func.func @transform_7(%arg0: i32) -> (i32, i32) {
    %c0_i32 = arith.constant 0 : i32
    %c0_i32_0 = arith.constant 0 : i32
    return %arg0, %c0_i32 : i32, i32
  }
}

</mosaic_0001>

<llo_original>
// kernel: model_cnn2_forward.1
$region0: #{model_cnn2_forward.1}
  #allocation0 [shape = 'u32[]', space=smem, size = 0x4, offset = 0x4, fixed_abs, tag = 'smem constant byte address 0x4 - core index']
  #allocation1 [shape = 'u32[144,128]{1,0:T(1,128)}', space=vmem, size = 0x12000, scoped, tag = 'internal scratch']
  #allocation2 [shape = 'bf16[64,1280]{1,0:T(16,128)(2,1)}', space=vmem, size = 0x28000, scoped, tag = 'scratch operand']
  #allocation3 [shape = 'bf16[8,512]{1,0:T(8,128)(2,1)}', space=vmem, size = 0x2000, scoped, tag = 'scratch operand']
  %s0 = inlined_call_operand.vmem [shape: bf16[128,168], index: 0, kind: input, shape index: {}]
  %s1 = inlined_call_operand.vmem [shape: bf16[168,1024], index: 1, kind: input, shape index: {}]
  %s2 = inlined_call_operand.vmem [shape: f32[1,256], index: 2, kind: input, shape index: {}]
  %s3 = inlined_call_operand.hbm [shape: bf16[1280,256], index: 3, kind: input, shape index: {}]
  %s4 = inlined_call_operand.vmem [shape: f32[1,128], index: 4, kind: input, shape index: {}]
  %s5 = inlined_call_operand.hbm [shape: bf16[512,256], index: 5, kind: input, shape index: {}]
  %s6 = inlined_call_operand.vmem [shape: f32[1,256], index: 6, kind: input, shape index: {}]
  %s7 = inlined_call_operand.vmem [shape: f32[8,256], index: 7, kind: output, shape index: {}]
  %s8 = sld [smem:[#allocation0]]
  $region46: #{model_cnn2_forward.1} parent=0
    _
  %s10 = ssub.s32 1, %s8
  %s11 = scalar_select 0, %s10, %s8
  $region1: #{model_cnn2_forward.1} parent=0
    #allocation4 [shape = 'u8[655360]{0}', space=vmem, size = 0xa0000, scoped, tag = 'input window, operand 3, single buffered']
    #allocation5 [shape = 's32[1]{0}', space=sflag, size = 0x4, scoped, tag = 'scoped memory for model_cnn2_forward.1']
    #allocation6 [shape = 'u8[262144]{0}', space=vmem, size = 0x40000, scoped, tag = 'input window, operand 5, single buffered']
    #allocation7 [shape = 's32[1]{0}', space=sflag, size = 0x4, scoped, tag = 'scoped memory for model_cnn2_forward.1']
    %12 = vsyncpa [#allocation5], 0
    %13 = vsyncpa [#allocation7], 0
    // Predicated region
    $region2: #{model_cnn2_forward.1} parent=1 // pred_check
      _
    $region3: #{model_cnn2_forward.1} parent=1 // pred_check_branch
      %15 = sbr.rel (0) target = $region5
    $region4: #{model_cnn2_forward.1} parent=1 // pred_region
      _
    $region5: #{model_cnn2_forward.1} parent=1 // pred_fallthru
      _
    // Predicated region
    $region6: #{model_cnn2_forward.1} parent=1 // pred_check
      _
    $region7: #{model_cnn2_forward.1} parent=1 // pred_check_branch
      %17 = sbr.rel (0) target = $region9
    $region8: #{model_cnn2_forward.1} parent=1 // pred_region
      _
    $region9: #{model_cnn2_forward.1} parent=1 // pred_fallthru
      _
    // Predicated region
    $region10: #{model_cnn2_forward.1} parent=1 // pred_check
      _
    $region11: #{model_cnn2_forward.1} parent=1 // pred_check_branch
      %19 = sbr.rel (0) target = $region13
    $region12: #{model_cnn2_forward.1} parent=1 // pred_region
      _
    $region13: #{model_cnn2_forward.1} parent=1 // pred_fallthru
      _
    // Predicated region
    $region14: #{model_cnn2_forward.1} parent=1 // pred_check
      _
    $region15: #{model_cnn2_forward.1} parent=1 // pred_check_branch
      %21 = sbr.rel (0) target = $region17
    $region16: #{model_cnn2_forward.1} parent=1 // pred_region
      %s23 = ssub.s32 20480, 20480
      %24 = vsyncadd [#allocation5], %s23
      %s25 = sshll.u32 [#allocation4], 4
      %s26 = int_to_ptr.vmem [resolvable:$true] %s25
      %31 = dma.hbm_to_vmem [thread:$0]  %s3, 20480, %s26, [#allocation5], 128, 128, 8
    $region17: #{model_cnn2_forward.1} parent=1 // pred_fallthru
      _
    // Predicated region
    $region18: #{model_cnn2_forward.1} parent=1 // pred_check
      _
    $region19: #{model_cnn2_forward.1} parent=1 // pred_check_branch
      %33 = sbr.rel (0) target = $region21
    $region20: #{model_cnn2_forward.1} parent=1 // pred_region
      _
    $region21: #{model_cnn2_forward.1} parent=1 // pred_fallthru
      _
    // Predicated region
    $region22: #{model_cnn2_forward.1} parent=1 // pred_check
      _
    $region23: #{model_cnn2_forward.1} parent=1 // pred_check_branch
      %35 = sbr.rel (0) target = $region25
    $region24: #{model_cnn2_forward.1} parent=1 // pred_region
      %s37 = ssub.s32 8192, 8192
      %38 = vsyncadd [#allocation7], %s37
      %s39 = sshll.u32 [#allocation6], 4
      %s40 = int_to_ptr.vmem [resolvable:$true] %s39
      %45 = dma.hbm_to_vmem [thread:$0]  %s5, 8192, %s40, [#allocation7], 128, 128, 8
    $region25: #{model_cnn2_forward.1} parent=1 // pred_fallthru
      _
    // Predicated region
    $region26: #{model_cnn2_forward.1} parent=1 // pred_check
      _
    $region27: #{model_cnn2_forward.1} parent=1 // pred_check_branch
      %47 = sbr.rel (0) target = $region29
    $region28: #{model_cnn2_forward.1} parent=1 // pred_region
      _
    $region29: #{model_cnn2_forward.1} parent=1 // pred_fallthru
      _
    // Predicated region
    $region30: #{model_cnn2_forward.1} parent=1 // pred_check
      _
    $region31: #{model_cnn2_forward.1} parent=1 // pred_check_branch
      %49 = sbr.rel (0) target = $region33
    $region32: #{model_cnn2_forward.1} parent=1 // pred_region
      %50 = dma.done [#allocation5], 20480
    $region33: #{model_cnn2_forward.1} parent=1 // pred_fallthru
      _
    // Predicated region
    $region34: #{model_cnn2_forward.1} parent=1 // pred_check
      _
    $region35: #{model_cnn2_forward.1} parent=1 // pred_check_branch
      %52 = sbr.rel (0) target = $region37
    $region36: #{model_cnn2_forward.1} parent=1 // pred_region
      %53 = dma.done [#allocation7], 8192
    $region37: #{model_cnn2_forward.1} parent=1 // pred_fallthru
      _
    %v55 = vld [vmem:[%s0] sm:$0xff]
    %v56 = vld [vmem:[%s0 + $0x8] sm:$0xff]
    %v57 = vld [vmem:[%s0 + $0x10] sm:$0xff]
    %v58 = vld [vmem:[%s0 + $0x18] sm:$0xff]
    %v59 = vld [vmem:[%s0 + $0x20] sm:$0xff]
    %v60 = vld [vmem:[%s0 + $0x28] sm:$0xff]
    %v61 = vld [vmem:[%s0 + $0x30] sm:$0xff]
    %v62 = vld [vmem:[%s0 + $0x38] sm:$0xff]
    %v63 = vld [vmem:[%s0 + $0x40] sm:$0xff]
    %v64 = vld [vmem:[%s0 + $0x48] sm:$0xff]
    %v65 = vld [vmem:[%s0 + $0x50] sm:$0xff]
    %v66 = vld [vmem:[%s0 + $0x58] sm:$0xff]
    %v67 = vld [vmem:[%s0 + $0x60] sm:$0xff]
    %v68 = vld [vmem:[%s0 + $0x68] sm:$0xff]
    %v69 = vld [vmem:[%s0 + $0x70] sm:$0xff]
    %v70 = vld [vmem:[%s0 + $0x78] sm:$0xff]
    %v71 = vld [vmem:[%s1] sm:$0xff]
    %v72 = vld [vmem:[%s1 + $0x8] sm:$0xff]
    %v73 = vld [vmem:[%s1 + $0x10] sm:$0xff]
    %v74 = vld [vmem:[%s1 + $0x18] sm:$0xff]
    %v75 = vld [vmem:[%s1 + $0x20] sm:$0xff]
    %v76 = vld [vmem:[%s1 + $0x28] sm:$0xff]
    %v77 = vld [vmem:[%s1 + $0x30] sm:$0xff]
    %v78 = vld [vmem:[%s1 + $0x38] sm:$0xff]
    %v79 = vld [vmem:[%s1 + $0x40] sm:$0xff]
    %v80 = vld [vmem:[%s1 + $0x48] sm:$0xff]
    %v81 = vld [vmem:[%s1 + $0x50] sm:$0xff]
    %v82 = vld [vmem:[%s1 + $0x58] sm:$0xff]
    %v83 = vld [vmem:[%s1 + $0x60] sm:$0xff]
    %v84 = vld [vmem:[%s1 + $0x68] sm:$0xff]
    %v85 = vld [vmem:[%s1 + $0x70] sm:$0xff]
    %v86 = vld [vmem:[%s1 + $0x78] sm:$0xff]
    %v87 = vld [vmem:[%s1 + $0x80] sm:$0xff]
    %v88 = vld [vmem:[%s1 + $0x88] sm:$0xff]
    %v89 = vld [vmem:[%s1 + $0x90] sm:$0xff]
    %v90 = vld [vmem:[%s1 + $0x98] sm:$0xff]
    %v91 = vld [vmem:[%s1 + $0xa0] sm:$0xff]
    %v92 = vld [vmem:[%s1 + $0xa8] sm:$0xff]
    %v93 = vld [vmem:[%s1 + $0xb0] sm:$0xff]
    %v94 = vld [vmem:[%s1 + $0xb8] sm:$0xff]
    %v95 = vld [vmem:[%s1 + $0xc0] sm:$0xff]
    %v96 = vld [vmem:[%s1 + $0xc8] sm:$0xff]
    %v97 = vld [vmem:[%s1 + $0xd0] sm:$0xff]
    %v98 = vld [vmem:[%s1 + $0xd8] sm:$0xff]
    %v99 = vld [vmem:[%s1 + $0xe0] sm:$0xff]
    %v100 = vld [vmem:[%s1 + $0xe8] sm:$0xff]
    %v101 = vld [vmem:[%s1 + $0xf0] sm:$0xff]
    %v102 = vld [vmem:[%s1 + $0xf8] sm:$0xff]
    %v103 = vld [vmem:[%s1 + $0x100] sm:$0xff]
    %v104 = vld [vmem:[%s1 + $0x108] sm:$0xff]
    %v105 = vld [vmem:[%s1 + $0x110] sm:$0xff]
    %v106 = vld [vmem:[%s1 + $0x118] sm:$0xff]
    %v107 = vld [vmem:[%s1 + $0x120] sm:$0xff]
    %v108 = vld [vmem:[%s1 + $0x128] sm:$0xff]
    %v109 = vld [vmem:[%s1 + $0x130] sm:$0xff]
    %v110 = vld [vmem:[%s1 + $0x138] sm:$0xff]
    %v111 = vld [vmem:[%s1 + $0x140] sm:$0xff]
    %v112 = vld [vmem:[%s1 + $0x148] sm:$0xff]
    %v113 = vld [vmem:[%s1 + $0x150] sm:$0xff]
    %v114 = vld [vmem:[%s1 + $0x158] sm:$0xff]
    %v115 = vld [vmem:[%s1 + $0x160] sm:$0xff]
    %v116 = vld [vmem:[%s1 + $0x168] sm:$0xff]
    %v117 = vld [vmem:[%s1 + $0x170] sm:$0xff]
    %v118 = vld [vmem:[%s1 + $0x178] sm:$0xff]
    %v119 = vld [vmem:[%s1 + $0x180] sm:$0xff]
    %v120 = vld [vmem:[%s1 + $0x188] sm:$0xff]
    %v121 = vld [vmem:[%s1 + $0x190] sm:$0xff]
    %v122 = vld [vmem:[%s1 + $0x198] sm:$0xff]
    %v123 = vld [vmem:[%s1 + $0x1a0] sm:$0xff]
    %v124 = vld [vmem:[%s1 + $0x1a8] sm:$0xff]
    %v125 = vld [vmem:[%s1 + $0x1b0] sm:$0xff]
    %v126 = vld [vmem:[%s1 + $0x1b8] sm:$0xff]
    %v127 = vld [vmem:[%s1 + $0x1c0] sm:$0xff]
    %v128 = vld [vmem:[%s1 + $0x1c8] sm:$0xff]
    %v129 = vld [vmem:[%s1 + $0x1d0] sm:$0xff]
    %v130 = vld [vmem:[%s1 + $0x1d8] sm:$0xff]
    %v131 = vld [vmem:[%s1 + $0x1e0] sm:$0xff]
    %v132 = vld [vmem:[%s1 + $0x1e8] sm:$0xff]
    %v133 = vld [vmem:[%s1 + $0x1f0] sm:$0xff]
    %v134 = vld [vmem:[%s1 + $0x1f8] sm:$0xff]
    %v135 = vld [vmem:[%s1 + $0x200] sm:$0xff]
    %v136 = vld [vmem:[%s1 + $0x208] sm:$0xff]
    %v137 = vld [vmem:[%s1 + $0x210] sm:$0xff]
    %v138 = vld [vmem:[%s1 + $0x218] sm:$0xff]
    %v139 = vld [vmem:[%s1 + $0x220] sm:$0xff]
    %v140 = vld [vmem:[%s1 + $0x228] sm:$0xff]
    %v141 = vld [vmem:[%s1 + $0x230] sm:$0xff]
    %v142 = vld [vmem:[%s1 + $0x238] sm:$0xff]
    %v143 = vld [vmem:[%s1 + $0x240] sm:$0xff]
    %v144 = vld [vmem:[%s1 + $0x248] sm:$0xff]
    %v145 = vld [vmem:[%s1 + $0x250] sm:$0xff]
    %v146 = vld [vmem:[%s1 + $0x258] sm:$0xff]
    %v147 = vld [vmem:[%s1 + $0x260] sm:$0xff]
    %v148 = vld [vmem:[%s1 + $0x268] sm:$0xff]
    %v149 = vld [vmem:[%s1 + $0x270] sm:$0xff]
    %v150 = vld [vmem:[%s1 + $0x278] sm:$0xff]
    %v151 = vld [vmem:[%s1 + $0x280] sm:$0xff]
    %v152 = vld [vmem:[%s1 + $0x288] sm:$0xff]
    %v153 = vld [vmem:[%s1 + $0x290] sm:$0xff]
    %v154 = vld [vmem:[%s1 + $0x298] sm:$0xff]
    %v171 = vunpack.c.l.b16 %v55
    %v172 = vunpack.c.h.b16 %v55
    %v173 = vunpack.c.l.b16 %v56
    %v174 = vunpack.c.h.b16 %v56
    %v175 = vunpack.c.l.b16 %v57
    %v176 = vunpack.c.h.b16 %v57
    %v177 = vunpack.c.l.b16 %v58
    %v178 = vunpack.c.h.b16 %v58
    %v179 = vunpack.c.l.b16 %v59
    %v180 = vunpack.c.h.b16 %v59
    %v181 = vunpack.c.l.b16 %v60
    %v182 = vunpack.c.h.b16 %v60
    %v183 = vunpack.c.l.b16 %v61
    %v184 = vunpack.c.h.b16 %v61
    %v185 = vunpack.c.l.b16 %v62
    %v186 = vunpack.c.h.b16 %v62
    %v187 = vunpack.c.l.b16 %v63
    %v188 = vunpack.c.h.b16 %v63
    %v189 = vunpack.c.l.b16 %v64
    %v190 = vunpack.c.h.b16 %v64
    %v191 = vunpack.c.l.b16 %v65
    %v192 = vunpack.c.h.b16 %v65
    %v193 = vunpack.c.l.b16 %v66
    %v194 = vunpack.c.h.b16 %v66
    %v195 = vunpack.c.l.b16 %v67
    %v196 = vunpack.c.h.b16 %v67
    %v197 = vunpack.c.l.b16 %v68
    %v198 = vunpack.c.h.b16 %v68
    %v199 = vunpack.c.l.b16 %v69
    %v200 = vunpack.c.h.b16 %v69
    %v201 = vunpack.c.l.b16 %v70
    %v202 = vunpack.c.h.b16 %v70
    %v203 = vpack.c.b16 %v173, %v171
    %v204 = vpack.c.b16 %v174, %v172
    %v205 = vpack.c.b16 %v177, %v175
    %v206 = vpack.c.b16 %v178, %v176
    %v207 = vpack.c.b16 %v181, %v179
    %v208 = vpack.c.b16 %v182, %v180
    %v209 = vpack.c.b16 %v185, %v183
    %v210 = vpack.c.b16 %v186, %v184
    %v211 = vpack.c.b16 %v189, %v187
    %v212 = vpack.c.b16 %v190, %v188
    %v213 = vpack.c.b16 %v193, %v191
    %v214 = vpack.c.b16 %v194, %v192
    %v215 = vpack.c.b16 %v197, %v195
    %v216 = vpack.c.b16 %v198, %v196
    %v217 = vpack.c.b16 %v201, %v199
    %v218 = vpack.c.b16 %v202, %v200
    %v311 = vunpack.c.l.b16 %v71
    %v312 = vunpack.c.h.b16 %v71
    %v313 = vunpack.c.l.b16 %v72
    %v314 = vunpack.c.h.b16 %v72
    %v315 = vunpack.c.l.b16 %v73
    %v316 = vunpack.c.h.b16 %v73
    %v317 = vunpack.c.l.b16 %v74
    %v318 = vunpack.c.h.b16 %v74
    %v319 = vunpack.c.l.b16 %v75
    %v320 = vunpack.c.h.b16 %v75
    %v321 = vunpack.c.l.b16 %v76
    %v322 = vunpack.c.h.b16 %v76
    %v323 = vunpack.c.l.b16 %v77
    %v324 = vunpack.c.h.b16 %v77
    %v325 = vunpack.c.l.b16 %v78
    %v326 = vunpack.c.h.b16 %v78
    %v327 = vunpack.c.l.b16 %v79
    %v328 = vunpack.c.h.b16 %v79
    %v329 = vunpack.c.l.b16 %v80
    %v330 = vunpack.c.h.b16 %v80
    %v331 = vunpack.c.l.b16 %v81
    %v332 = vunpack.c.h.b16 %v81
    %v333 = vunpack.c.l.b16 %v82
    %v334 = vunpack.c.h.b16 %v82
    %v335 = vunpack.c.l.b16 %v83
    %v336 = vunpack.c.h.b16 %v83
    %v337 = vunpack.c.l.b16 %v84
    %v338 = vunpack.c.h.b16 %v84
    %v339 = vunpack.c.l.b16 %v85
    %v340 = vunpack.c.h.b16 %v85
    %v341 = vunpack.c.l.b16 %v86
    %v342 = vunpack.c.h.b16 %v86
    %v343 = vunpack.c.l.b16 %v87
    %v344 = vunpack.c.h.b16 %v87
    %v345 = vunpack.c.l.b16 %v88
    %v346 = vunpack.c.h.b16 %v88
    %v347 = vunpack.c.l.b16 %v89
    %v348 = vunpack.c.h.b16 %v89
    %v349 = vunpack.c.l.b16 %v90
    %v350 = vunpack.c.h.b16 %v90
    %v351 = vunpack.c.l.b16 %v91
    %v352 = vunpack.c.h.b16 %v91
    %v353 = vunpack.c.l.b16 %v92
    %v354 = vunpack.c.h.b16 %v92
    %v355 = vunpack.c.l.b16 %v93
    %v356 = vunpack.c.h.b16 %v93
    %v357 = vunpack.c.l.b16 %v94
    %v358 = vunpack.c.h.b16 %v94
    %v359 = vunpack.c.l.b16 %v95
    %v360 = vunpack.c.h.b16 %v95
    %v361 = vunpack.c.l.b16 %v96
    %v362 = vunpack.c.h.b16 %v96
    %v363 = vunpack.c.l.b16 %v97
    %v364 = vunpack.c.h.b16 %v97
    %v365 = vunpack.c.l.b16 %v98
    %v366 = vunpack.c.h.b16 %v98
    %v367 = vunpack.c.l.b16 %v99
    %v368 = vunpack.c.h.b16 %v99
    %v369 = vunpack.c.l.b16 %v100
    %v370 = vunpack.c.h.b16 %v100
    %v371 = vunpack.c.l.b16 %v101
    %v372 = vunpack.c.h.b16 %v101
    %v373 = vunpack.c.l.b16 %v102
    %v374 = vunpack.c.h.b16 %v102
    %v375 = vunpack.c.l.b16 %v103
    %v376 = vunpack.c.h.b16 %v103
    %v377 = vunpack.c.l.b16 %v104
    %v378 = vunpack.c.h.b16 %v104
    %v379 = vunpack.c.l.b16 %v105
    %v380 = vunpack.c.h.b16 %v105
    %v381 = vunpack.c.l.b16 %v106
    %v382 = vunpack.c.h.b16 %v106
    %v383 = vunpack.c.l.b16 %v107
    %v384 = vunpack.c.h.b16 %v107
    %v385 = vunpack.c.l.b16 %v108
    %v386 = vunpack.c.h.b16 %v108
    %v387 = vunpack.c.l.b16 %v109
    %v388 = vunpack.c.h.b16 %v109
    %v389 = vunpack.c.l.b16 %v110
    %v390 = vunpack.c.h.b16 %v110
    %v391 = vunpack.c.l.b16 %v111
    %v392 = vunpack.c.h.b16 %v111
    %v393 = vunpack.c.l.b16 %v112
    %v394 = vunpack.c.h.b16 %v112
    %v395 = vunpack.c.l.b16 %v113
    %v396 = vunpack.c.h.b16 %v113
    %v397 = vunpack.c.l.b16 %v114
    %v398 = vunpack.c.h.b16 %v114
    %v399 = vunpack.c.l.b16 %v115
    %v400 = vunpack.c.h.b16 %v115
    %v401 = vunpack.c.l.b16 %v116
    %v402 = vunpack.c.h.b16 %v116
    %v403 = vunpack.c.l.b16 %v117
    %v404 = vunpack.c.h.b16 %v117
    %v405 = vunpack.c.l.b16 %v118
    %v406 = vunpack.c.h.b16 %v118
    %v407 = vunpack.c.l.b16 %v119
    %v408 = vunpack.c.h.b16 %v119
    %v409 = vunpack.c.l.b16 %v120
    %v410 = vunpack.c.h.b16 %v120
    %v411 = vunpack.c.l.b16 %v121
    %v412 = vunpack.c.h.b16 %v121
    %v413 = vunpack.c.l.b16 %v122
    %v414 = vunpack.c.h.b16 %v122
    %v415 = vunpack.c.l.b16 %v123
    %v416 = vunpack.c.h.b16 %v123
    %v417 = vunpack.c.l.b16 %v124
    %v418 = vunpack.c.h.b16 %v124
    %v419 = vunpack.c.l.b16 %v125
    %v420 = vunpack.c.h.b16 %v125
    %v421 = vunpack.c.l.b16 %v126
    %v422 = vunpack.c.h.b16 %v126
    %v423 = vunpack.c.l.b16 %v127
    %v424 = vunpack.c.h.b16 %v127
    %v425 = vunpack.c.l.b16 %v128
    %v426 = vunpack.c.h.b16 %v128
    %v427 = vunpack.c.l.b16 %v129
    %v428 = vunpack.c.h.b16 %v129
    %v429 = vunpack.c.l.b16 %v130
    %v430 = vunpack.c.h.b16 %v130
    %v431 = vunpack.c.l.b16 %v131
    %v432 = vunpack.c.h.b16 %v131
    %v433 = vunpack.c.l.b16 %v132
    %v434 = vunpack.c.h.b16 %v132
    %v435 = vunpack.c.l.b16 %v133
    %v436 = vunpack.c.h.b16 %v133
    %v437 = vunpack.c.l.b16 %v134
    %v438 = vunpack.c.h.b16 %v134
    %v439 = vunpack.c.l.b16 %v135
    %v440 = vunpack.c.h.b16 %v135
    %v441 = vunpack.c.l.b16 %v136
    %v442 = vunpack.c.h.b16 %v136
    %v443 = vunpack.c.l.b16 %v137
    %v444 = vunpack.c.h.b16 %v137
    %v445 = vunpack.c.l.b16 %v138
    %v446 = vunpack.c.h.b16 %v138
    %v447 = vunpack.c.l.b16 %v139
    %v448 = vunpack.c.h.b16 %v139
    %v449 = vunpack.c.l.b16 %v140
    %v450 = vunpack.c.h.b16 %v140
    %v451 = vunpack.c.l.b16 %v141
    %v452 = vunpack.c.h.b16 %v141
    %v453 = vunpack.c.l.b16 %v142
    %v454 = vunpack.c.h.b16 %v142
    %v455 = vunpack.c.l.b16 %v143
    %v456 = vunpack.c.h.b16 %v143
    %v457 = vunpack.c.l.b16 %v144
    %v458 = vunpack.c.h.b16 %v144
    %v459 = vunpack.c.l.b16 %v145
    %v460 = vunpack.c.h.b16 %v145
    %v461 = vunpack.c.l.b16 %v146
    %v462 = vunpack.c.h.b16 %v146
    %v463 = vunpack.c.l.b16 %v147
    %v464 = vunpack.c.h.b16 %v147
    %v465 = vunpack.c.l.b16 %v148
    %v466 = vunpack.c.h.b16 %v148
    %v467 = vunpack.c.l.b16 %v149
    %v468 = vunpack.c.h.b16 %v149
    %v469 = vunpack.c.l.b16 %v150
    %v470 = vunpack.c.h.b16 %v150
    %v471 = vunpack.c.l.b16 %v151
    %v472 = vunpack.c.h.b16 %v151
    %v473 = vunpack.c.l.b16 %v152
    %v474 = vunpack.c.h.b16 %v152
    %v475 = vunpack.c.l.b16 %v153
    %v476 = vunpack.c.h.b16 %v153
    %v477 = vunpack.c.l.b16 %v154
    %v478 = vunpack.c.h.b16 %v154
    %v479 = vpack.c.b16 %v319, %v311
    %v480 = vpack.c.b16 %v320, %v312
    %v481 = vpack.c.b16 %v321, %v313
    %v482 = vpack.c.b16 %v322, %v314
    %v483 = vpack.c.b16 %v323, %v315
    %v484 = vpack.c.b16 %v324, %v316
    %v485 = vpack.c.b16 %v325, %v317
    %v486 = vpack.c.b16 %v326, %v318
    %v487 = vpack.c.b16 %v335, %v327
    %v488 = vpack.c.b16 %v336, %v328
    %v489 = vpack.c.b16 %v337, %v329
    %v490 = vpack.c.b16 %v338, %v330
    %v491 = vpack.c.b16 %v339, %v331
    %v492 = vpack.c.b16 %v340, %v332
    %v493 = vpack.c.b16 %v341, %v333
    %v494 = vpack.c.b16 %v342, %v334
    %v495 = vpack.c.b16 %v351, %v343
    %v496 = vpack.c.b16 %v352, %v344
    %v497 = vpack.c.b16 %v353, %v345
    %v498 = vpack.c.b16 %v354, %v346
    %v499 = vpack.c.b16 %v355, %v347
    %v500 = vpack.c.b16 %v356, %v348
    %v501 = vpack.c.b16 %v357, %v349
    %v502 = vpack.c.b16 %v358, %v350
    %v503 = vpack.c.b16 %v367, %v359
    %v504 = vpack.c.b16 %v368, %v360
    %v505 = vpack.c.b16 %v369, %v361
    %v506 = vpack.c.b16 %v370, %v362
    %v507 = vpack.c.b16 %v371, %v363
    %v508 = vpack.c.b16 %v372, %v364
    %v509 = vpack.c.b16 %v373, %v365
    %v510 = vpack.c.b16 %v374, %v366
    %v511 = vpack.c.b16 %v383, %v375
    %v512 = vpack.c.b16 %v384, %v376
    %v513 = vpack.c.b16 %v385, %v377
    %v514 = vpack.c.b16 %v386, %v378
    %v515 = vpack.c.b16 %v387, %v379
    %v516 = vpack.c.b16 %v388, %v380
    %v517 = vpack.c.b16 %v389, %v381
    %v518 = vpack.c.b16 %v390, %v382
    %v519 = vpack.c.b16 %v399, %v391
    %v520 = vpack.c.b16 %v400, %v392
    %v521 = vpack.c.b16 %v401, %v393
    %v522 = vpack.c.b16 %v402, %v394
    %v523 = vpack.c.b16 %v403, %v395
    %v524 = vpack.c.b16 %v404, %v396
    %v525 = vpack.c.b16 %v405, %v397
    %v526 = vpack.c.b16 %v406, %v398
    %v527 = vpack.c.b16 %v415, %v407
    %v528 = vpack.c.b16 %v416, %v408
    %v529 = vpack.c.b16 %v417, %v409
    %v530 = vpack.c.b16 %v418, %v410
    %v531 = vpack.c.b16 %v419, %v411
    %v532 = vpack.c.b16 %v420, %v412
    %v533 = vpack.c.b16 %v421, %v413
    %v534 = vpack.c.b16 %v422, %v414
    %v535 = vpack.c.b16 %v431, %v423
    %v536 = vpack.c.b16 %v432, %v424
    %v537 = vpack.c.b16 %v433, %v425
    %v538 = vpack.c.b16 %v434, %v426
    %v539 = vpack.c.b16 %v435, %v427
    %v540 = vpack.c.b16 %v436, %v428
    %v541 = vpack.c.b16 %v437, %v429
    %v542 = vpack.c.b16 %v438, %v430
    %v543 = vpack.c.b16 %v447, %v439
    %v544 = vpack.c.b16 %v448, %v440
    %v545 = vpack.c.b16 %v449, %v441
    %v546 = vpack.c.b16 %v450, %v442
    %v547 = vpack.c.b16 %v451, %v443
    %v548 = vpack.c.b16 %v452, %v444
    %v549 = vpack.c.b16 %v453, %v445
    %v550 = vpack.c.b16 %v454, %v446
    %v551 = vpack.c.b16 %v463, %v455
    %v552 = vpack.c.b16 %v464, %v456
    %v553 = vpack.c.b16 %v465, %v457
    %v554 = vpack.c.b16 %v466, %v458
    %v555 = vpack.c.b16 %v467, %v459
    %v556 = vpack.c.b16 %v468, %v460
    %v557 = vpack.c.b16 %v469, %v461
    %v558 = vpack.c.b16 %v470, %v462
    %v559 = vpack.c.b16 %v471, %v471
    %v560 = vpack.c.b16 %v472, %v472
    %v561 = vpack.c.b16 %v473, %v473
    %v562 = vpack.c.b16 %v474, %v474
    %v563 = vpack.c.b16 %v475, %v475
    %v564 = vpack.c.b16 %v476, %v476
    %v565 = vpack.c.b16 %v477, %v477
    %v566 = vpack.c.b16 %v478, %v478
    %vm647 = vcmask 326656
    %v649 = vsel %vm647, %v204, 0
    %v652 = vsel %vm647, %v206, 0
    %v655 = vsel %vm647, %v208, 0
    %v658 = vsel %vm647, %v210, 0
    %v661 = vsel %vm647, %v212, 0
    %v664 = vsel %vm647, %v214, 0
    %v667 = vsel %vm647, %v216, 0
    %v670 = vsel %vm647, %v218, 0
    %vm672 = vcmask 1043456
    %v674 = vsel %vm672, %v559, 0
    %v677 = vsel %vm672, %v560, 0
    %v680 = vsel %vm672, %v561, 0
    %v683 = vsel %vm672, %v562, 0
    %v686 = vsel %vm672, %v563, 0
    %v689 = vsel %vm672, %v564, 0
    %v692 = vsel %vm672, %v565, 0
    %v695 = vsel %vm672, %v566, 0
    %697 = vmatprep.subr.bf16.mxu0 %v480
    %698 = vmatpush1.bf16.msra.mxu0 %v479
    %699 = vmatprep.subr.bf16.mxu0 %v488
    %700 = vmatpush1.bf16.msra.mxu0 %v487
    %701 = vmatprep.subr.bf16.mxu0 %v496
    %702 = vmatpush1.bf16.msra.mxu0 %v495
    %703 = vmatprep.subr.bf16.mxu0 %v504
    %704 = vmatpush1.bf16.msra.mxu0 %v503
    %705 = vmatprep.subr.bf16.mxu0 %v512
    %706 = vmatpush1.bf16.msra.mxu0 %v511
    %707 = vmatprep.subr.bf16.mxu0 %v520
    %708 = vmatpush1.bf16.msra.mxu0 %v519
    %709 = vmatprep.subr.bf16.mxu0 %v528
    %710 = vmatpush1.bf16.msra.mxu0 %v527
    %711 = vmatprep.subr.bf16.mxu0 %v536
    %712 = vmatpush1.bf16.msra.mxu0 %v535
    %713 = vmatprep.subr.bf16.mxu0 %v544
    %714 = vmatpush1.bf16.msra.mxu0 %v543
    %715 = vmatprep.subr.bf16.mxu0 %v552
    %716 = vmatpush1.bf16.msra.mxu0 %v551
    %717 = vmatprep.subr.bf16.mxu0 %v677
    %718 = vmatpush1.bf16.msra.mxu0 %v674
    %719 = vmatprep.subr.bf16.mxu0 0
    %720 = vmatpush1.bf16.msra.mxu0 0
    %721 = vmatprep.subr.bf16.mxu0 0
    %722 = vmatpush1.bf16.msra.mxu0 0
    %723 = vmatprep.subr.bf16.mxu0 0
    %724 = vmatpush1.bf16.msra.mxu0 0
    %725 = vmatprep.subr.bf16.mxu0 0
    %726 = vmatpush1.bf16.msra.mxu0 0
    %727 = vmatprep.subr.bf16.mxu0 0
    %728 = vmatpush1.bf16.msra.mxu0 0
    %729 = vmatprep.mubr.bf16.mxu0 %v649
    %730 = vmatmul.mubr.bf16.gmra.mrb[0].mxu0 %v203
    %v731 = vpop.f32.mrb[0].mxu0
    %v732 = vadd.f32 0.0, %v731
    %v733 = vpop.f32.mrb[0].mxu0
    %v734 = vadd.f32 0.0, %v733
    %v735 = vpop.f32.mrb[0].mxu0
    %v736 = vadd.f32 0.0, %v735
    %v737 = vpop.f32.mrb[0].mxu0
    %v738 = vadd.f32 0.0, %v737
    %739 = vmatprep.mubr.bf16.mxu0 %v652
    %740 = vmatmul.mubr.bf16.gmra.mrb[0].mxu0 %v205
    %v741 = vpop.f32.mrb[0].mxu0
    %v742 = vadd.f32 0.0, %v741
    %v743 = vpop.f32.mrb[0].mxu0
    %v744 = vadd.f32 0.0, %v743
    %v745 = vpop.f32.mrb[0].mxu0
    %v746 = vadd.f32 0.0, %v745
    %v747 = vpop.f32.mrb[0].mxu0
    %v748 = vadd.f32 0.0, %v747
    %749 = vmatprep.mubr.bf16.mxu0 %v655
    %750 = vmatmul.mubr.bf16.gmra.mrb[0].mxu0 %v207
    %v751 = vpop.f32.mrb[0].mxu0
    %v752 = vadd.f32 0.0, %v751
    %v753 = vpop.f32.mrb[0].mxu0
    %v754 = vadd.f32 0.0, %v753
    %v755 = vpop.f32.mrb[0].mxu0
    %v756 = vadd.f32 0.0, %v755
    %v757 = vpop.f32.mrb[0].mxu0
    %v758 = vadd.f32 0.0, %v757
    %759 = vmatprep.mubr.bf16.mxu0 %v658
    %760 = vmatmul.mubr.bf16.gmra.mrb[0].mxu0 %v209
    %v761 = vpop.f32.mrb[0].mxu0
    %v762 = vadd.f32 0.0, %v761
    %v763 = vpop.f32.mrb[0].mxu0
    %v764 = vadd.f32 0.0, %v763
    %v765 = vpop.f32.mrb[0].mxu0
    %v766 = vadd.f32 0.0, %v765
    %v767 = vpop.f32.mrb[0].mxu0
    %v768 = vadd.f32 0.0, %v767
    %769 = vmatprep.mubr.bf16.mxu0 %v661
    %770 = vmatmul.mubr.bf16.gmra.mrb[0].mxu0 %v211
    %v771 = vpop.f32.mrb[0].mxu0
    %v772 = vadd.f32 0.0, %v771
    %v773 = vpop.f32.mrb[0].mxu0
    %v774 = vadd.f32 0.0, %v773
    %v775 = vpop.f32.mrb[0].mxu0
    %v776 = vadd.f32 0.0, %v775
    %v777 = vpop.f32.mrb[0].mxu0
    %v778 = vadd.f32 0.0, %v777
    %779 = vmatprep.mubr.bf16.mxu0 %v664
    %780 = vmatmul.mubr.bf16.gmra.mrb[0].mxu0 %v213
    %v781 = vpop.f32.mrb[0].mxu0
    %v782 = vadd.f32 0.0, %v781
    %v783 = vpop.f32.mrb[0].mxu0
    %v784 = vadd.f32 0.0, %v783
    %v785 = vpop.f32.mrb[0].mxu0
    %v786 = vadd.f32 0.0, %v785
    %v787 = vpop.f32.mrb[0].mxu0
    %v788 = vadd.f32 0.0, %v787
    %789 = vmatprep.mubr.bf16.mxu0 %v667
    %790 = vmatmul.mubr.bf16.gmra.mrb[0].mxu0 %v215
    %v791 = vpop.f32.mrb[0].mxu0
    %v792 = vadd.f32 0.0, %v791
    %v793 = vpop.f32.mrb[0].mxu0
    %v794 = vadd.f32 0.0, %v793
    %v795 = vpop.f32.mrb[0].mxu0
    %v796 = vadd.f32 0.0, %v795
    %v797 = vpop.f32.mrb[0].mxu0
    %v798 = vadd.f32 0.0, %v797
    %799 = vmatprep.mubr.bf16.mxu0 %v670
    %800 = vmatmul.mubr.bf16.gmra.mrb[0].mxu0 %v217
    %v801 = vpop.f32.mrb[0].mxu0
    %v802 = vadd.f32 0.0, %v801
    %v803 = vpop.f32.mrb[0].mxu0
    %v804 = vadd.f32 0.0, %v803
    %v805 = vpop.f32.mrb[0].mxu0
    %v806 = vadd.f32 0.0, %v805
    %v807 = vpop.f32.mrb[0].mxu0
    %v808 = vadd.f32 0.0, %v807
    %809 = vdwg.mxu0
    %810 = vmatprep.subr.bf16.mxu0 %v482
    %811 = vmatpush1.bf16.msra.mxu0 %v481
    %812 = vmatprep.subr.bf16.mxu0 %v490
    %813 = vmatpush1.bf16.msra.mxu0 %v489
    %814 = vmatprep.subr.bf16.mxu0 %v498
    %815 = vmatpush1.bf16.msra.mxu0 %v497
    %816 = vmatprep.subr.bf16.mxu0 %v506
    %817 = vmatpush1.bf16.msra.mxu0 %v505
    %818 = vmatprep.subr.bf16.mxu0 %v514
    %819 = vmatpush1.bf16.msra.mxu0 %v513
    %820 = vmatprep.subr.bf16.mxu0 %v522
    %821 = vmatpush1.bf16.msra.mxu0 %v521
    %822 = vmatprep.subr.bf16.mxu0 %v530
    %823 = vmatpush1.bf16.msra.mxu0 %v529
    %824 = vmatprep.subr.bf16.mxu0 %v538
    %825 = vmatpush1.bf16.msra.mxu0 %v537
    %826 = vmatprep.subr.bf16.mxu0 %v546
    %827 = vmatpush1.bf16.msra.mxu0 %v545
    %828 = vmatprep.subr.bf16.mxu0 %v554
    %829 = vmatpush1.bf16.msra.mxu0 %v553
    %830 = vmatprep.subr.bf16.mxu0 %v683
    %831 = vmatpush1.bf16.msra.mxu0 %v680
    %832 = vmatprep.subr.bf16.mxu0 0
    %833 = vmatpush1.bf16.msra.mxu0 0
    %834 = vmatprep.subr.bf16.mxu0 0
    %835 = vmatpush1.bf16.msra.mxu0 0
    %836 = vmatprep.subr.bf16.mxu0 0
    %837 = vmatpush1.bf16.msra.mxu0 0
    %838 = vmatprep.subr.bf16.mxu0 0
    %839 = vmatpush1.bf16.msra.mxu0 0
    %840 = vmatprep.subr.bf16.mxu0 0
    %841 = vmatpush1.bf16.msra.mxu0 0
    %842 = vmatprep.mubr.bf16.mxu0 %v649
    %843 = vmatmul.mubr.bf16.gmra.mrb[0].mxu0 %v203
    %v844 = vpop.f32.mrb[0].mxu0
    %v845 = vadd.f32 0.0, %v844
    %v846 = vpop.f32.mrb[0].mxu0
    %v847 = vadd.f32 0.0, %v846
    %v848 = vpop.f32.mrb[0].mxu0
    %v849 = vadd.f32 0.0, %v848
    %v850 = vpop.f32.mrb[0].mxu0
    %v851 = vadd.f32 0.0, %v850
    %852 = vmatprep.mubr.bf16.mxu0 %v652
    %853 = vmatmul.mubr.bf16.gmra.mrb[0].mxu0 %v205
    %v854 = vpop.f32.mrb[0].mxu0
    %v855 = vadd.f32 0.0, %v854
    %v856 = vpop.f32.mrb[0].mxu0
    %v857 = vadd.f32 0.0, %v856
    %v858 = vpop.f32.mrb[0].mxu0
    %v859 = vadd.f32 0.0, %v858
    %v860 = vpop.f32.mrb[0].mxu0
    %v861 = vadd.f32 0.0, %v860
    %862 = vmatprep.mubr.bf16.mxu0 %v655
    %863 = vmatmul.mubr.bf16.gmra.mrb[0].mxu0 %v207
    %v864 = vpop.f32.mrb[0].mxu0
    %v865 = vadd.f32 0.0, %v864
    %v866 = vpop.f32.mrb[0].mxu0
    %v867 = vadd.f32 0.0, %v866
    %v868 = vpop.f32.mrb[0].mxu0
    %v869 = vadd.f32 0.0, %v868
    %v870 = vpop.f32.mrb[0].mxu0
    %v871 = vadd.f32 0.0, %v870
    %872 = vmatprep.mubr.bf16.mxu0 %v658
    %873 = vmatmul.mubr.bf16.gmra.mrb[0].mxu0 %v209
    %v874 = vpop.f32.mrb[0].mxu0
    %v875 = vadd.f32 0.0, %v874
    %v876 = vpop.f32.mrb[0].mxu0
    %v877 = vadd.f32 0.0, %v876
    %v878 = vpop.f32.mrb[0].mxu0
    %v879 = vadd.f32 0.0, %v878
    %v880 = vpop.f32.mrb[0].mxu0
    %v881 = vadd.f32 0.0, %v880
    %882 = vmatprep.mubr.bf16.mxu0 %v661
    %883 = vmatmul.mubr.bf16.gmra.mrb[0].mxu0 %v211
    %v884 = vpop.f32.mrb[0].mxu0
    %v885 = vadd.f32 0.0, %v884
    %v886 = vpop.f32.mrb[0].mxu0
    %v887 = vadd.f32 0.0, %v886
    %v888 = vpop.f32.mrb[0].mxu0
    %v889 = vadd.f32 0.0, %v888
    %v890 = vpop.f32.mrb[0].mxu0
    %v891 = vadd.f32 0.0, %v890
    %892 = vmatprep.mubr.bf16.mxu0 %v664
    %893 = vmatmul.mubr.bf16.gmra.mrb[0].mxu0 %v213
    %v894 = vpop.f32.mrb[0].mxu0
    %v895 = vadd.f32 0.0, %v894
    %v896 = vpop.f32.mrb[0].mxu0
    %v897 = vadd.f32 0.0, %v896
    %v898 = vpop.f32.mrb[0].mxu0
    %v899 = vadd.f32 0.0, %v898
    %v900 = vpop.f32.mrb[0].mxu0
    %v901 = vadd.f32 0.0, %v900
    %902 = vmatprep.mubr.bf16.mxu0 %v667
    %903 = vmatmul.mubr.bf16.gmra.mrb[0].mxu0 %v215
    %v904 = vpop.f32.mrb[0].mxu0
    %v905 = vadd.f32 0.0, %v904
    %v906 = vpop.f32.mrb[0].mxu0
    %v907 = vadd.f32 0.0, %v906
    %v908 = vpop.f32.mrb[0].mxu0
    %v909 = vadd.f32 0.0, %v908
    %v910 = vpop.f32.mrb[0].mxu0
    %v911 = vadd.f32 0.0, %v910
    %912 = vmatprep.mubr.bf16.mxu0 %v670
    %913 = vmatmul.mubr.bf16.gmra.mrb[0].mxu0 %v217
    %v914 = vpop.f32.mrb[0].mxu0
    %v915 = vadd.f32 0.0, %v914
    %v916 = vpop.f32.mrb[0].mxu0
    %v917 = vadd.f32 0.0, %v916
    %v918 = vpop.f32.mrb[0].mxu0
    %v919 = vadd.f32 0.0, %v918
    %v920 = vpop.f32.mrb[0].mxu0
    %v921 = vadd.f32 0.0, %v920
    %922 = vdwg.mxu0
    %923 = vmatprep.subr.bf16.mxu0 %v484
    %924 = vmatpush1.bf16.msra.mxu0 %v483
    %925 = vmatprep.subr.bf16.mxu0 %v492
    %926 = vmatpush1.bf16.msra.mxu0 %v491
    %927 = vmatprep.subr.bf16.mxu0 %v500
    %928 = vmatpush1.bf16.msra.mxu0 %v499
    %929 = vmatprep.subr.bf16.mxu0 %v508
    %930 = vmatpush1.bf16.msra.mxu0 %v507
    %931 = vmatprep.subr.bf16.mxu0 %v516
    %932 = vmatpush1.bf16.msra.mxu0 %v515
    %933 = vmatprep.subr.bf16.mxu0 %v524
    %934 = vmatpush1.bf16.msra.mxu0 %v523
    %935 = vmatprep.subr.bf16.mxu0 %v532
    %936 = vmatpush1.bf16.msra.mxu0 %v531
    %937 = vmatprep.subr.bf16.mxu0 %v540
    %938 = vmatpush1.bf16.msra.mxu0 %v539
    %939 = vmatprep.subr.bf16.mxu0 %v548
    %940 = vmatpush1.bf16.msra.mxu0 %v547
    %941 = vmatprep.subr.bf16.mxu0 %v556
    %942 = vmatpush1.bf16.msra.mxu0 %v555
    %943 = vmatprep.subr.bf16.mxu0 %v689
    %944 = vmatpush1.bf16.msra.mxu0 %v686
    %945 = vmatprep.subr.bf16.mxu0 0
    %946 = vmatpush1.bf16.msra.mxu0 0
    %947 = vmatprep.subr.bf16.mxu0 0
    %948 = vmatpush1.bf16.msra.mxu0 0
    %949 = vmatprep.subr.bf16.mxu0 0
    %950 = vmatpush1.bf16.msra.mxu0 0
    %951 = vmatprep.subr.bf16.mxu0 0
    %952 = vmatpush1.bf16.msra.mxu0 0
    %953 = vmatprep.subr.bf16.mxu0 0
    %954 = vmatpush1.bf16.msra.mxu0 0
    %955 = vmatprep.mubr.bf16.mxu0 %v649
    %956 = vmatmul.mubr.bf16.gmra.mrb[0].mxu0 %v203
    %v957 = vpop.f32.mrb[0].mxu0
    %v958 = vadd.f32 0.0, %v957
    %v959 = vpop.f32.mrb[0].mxu0
    %v960 = vadd.f32 0.0, %v959
    %v961 = vpop.f32.mrb[0].mxu0
    %v962 = vadd.f32 0.0, %v961
    %v963 = vpop.f32.mrb[0].mxu0
    %v964 = vadd.f32 0.0, %v963
    %965 = vmatprep.mubr.bf16.mxu0 %v652
    %966 = vmatmul.mubr.bf16.gmra.mrb[0].mxu0 %v205
    %v967 = vpop.f32.mrb[0].mxu0
    %v968 = vadd.f32 0.0, %v967
    %v969 = vpop.f32.mrb[0].mxu0
    %v970 = vadd.f32 0.0, %v969
    %v971 = vpop.f32.mrb[0].mxu0
    %v972 = vadd.f32 0.0, %v971
    %v973 = vpop.f32.mrb[0].mxu0
    %v974 = vadd.f32 0.0, %v973
    %975 = vmatprep.mubr.bf16.mxu0 %v655
    %976 = vmatmul.mubr.bf16.gmra.mrb[0].mxu0 %v207
    %v977 = vpop.f32.mrb[0].mxu0
    %v978 = vadd.f32 0.0, %v977
    %v979 = vpop.f32.mrb[0].mxu0
    %v980 = vadd.f32 0.0, %v979
    %v981 = vpop.f32.mrb[0].mxu0
    %v982 = vadd.f32 0.0, %v981
    %v983 = vpop.f32.mrb[0].mxu0
    %v984 = vadd.f32 0.0, %v983
    %985 = vmatprep.mubr.bf16.mxu0 %v658
    %986 = vmatmul.mubr.bf16.gmra.mrb[0].mxu0 %v209
    %v987 = vpop.f32.mrb[0].mxu0
    %v988 = vadd.f32 0.0, %v987
    %v989 = vpop.f32.mrb[0].mxu0
    %v990 = vadd.f32 0.0, %v989
    %v991 = vpop.f32.mrb[0].mxu0
    %v992 = vadd.f32 0.0, %v991
    %v993 = vpop.f32.mrb[0].mxu0
    %v994 = vadd.f32 0.0, %v993
    %995 = vmatprep.mubr.bf16.mxu0 %v661
    %996 = vmatmul.mubr.bf16.gmra.mrb[0].mxu0 %v211
    %v997 = vpop.f32.mrb[0].mxu0
    %v998 = vadd.f32 0.0, %v997
    %v999 = vpop.f32.mrb[0].mxu0
    %v1000 = vadd.f32 0.0, %v999
    %v1001 = vpop.f32.mrb[0].mxu0
    %v1002 = vadd.f32 0.0, %v1001
    %v1003 = vpop.f32.mrb[0].mxu0
    %v1004 = vadd.f32 0.0, %v1003
    %1005 = vmatprep.mubr.bf16.mxu0 %v664
    %1006 = vmatmul.mubr.bf16.gmra.mrb[0].mxu0 %v213
    %v1007 = vpop.f32.mrb[0].mxu0
    %v1008 = vadd.f32 0.0, %v1007
    %v1009 = vpop.f32.mrb[0].mxu0
    %v1010 = vadd.f32 0.0, %v1009
    %v1011 = vpop.f32.mrb[0].mxu0
    %v1012 = vadd.f32 0.0, %v1011
    %v1013 = vpop.f32.mrb[0].mxu0
    %v1014 = vadd.f32 0.0, %v1013
    %1015 = vmatprep.mubr.bf16.mxu0 %v667
    %1016 = vmatmul.mubr.bf16.gmra.mrb[0].mxu0 %v215
    %v1017 = vpop.f32.mrb[0].mxu0
    %v1018 = vadd.f32 0.0, %v1017
    %v1019 = vpop.f32.mrb[0].mxu0
    %v1020 = vadd.f32 0.0, %v1019
    %v1021 = vpop.f32.mrb[0].mxu0
    %v1022 = vadd.f32 0.0, %v1021
    %v1023 = vpop.f32.mrb[0].mxu0
    %v1024 = vadd.f32 0.0, %v1023
    %1025 = vmatprep.mubr.bf16.mxu0 %v670
    %1026 = vmatmul.mubr.bf16.gmra.mrb[0].mxu0 %v217
    %v1027 = vpop.f32.mrb[0].mxu0
    %v1028 = vadd.f32 0.0, %v1027
    %v1029 = vpop.f32.mrb[0].mxu0
    %v1030 = vadd.f32 0.0, %v1029
    %v1031 = vpop.f32.mrb[0].mxu0
    %v1032 = vadd.f32 0.0, %v1031
    %v1033 = vpop.f32.mrb[0].mxu0
    %v1034 = vadd.f32 0.0, %v1033
    %1035 = vdwg.mxu0
    %1036 = vmatprep.subr.bf16.mxu0 %v486
    %1037 = vmatpush1.bf16.msra.mxu0 %v485
    %1038 = vmatprep.subr.bf16.mxu0 %v494
    %1039 = vmatpush1.bf16.msra.mxu0 %v493
    %1040 = vmatprep.subr.bf16.mxu0 %v502
    %1041 = vmatpush1.bf16.msra.mxu0 %v501
    %1042 = vmatprep.subr.bf16.mxu0 %v510
    %1043 = vmatpush1.bf16.msra.mxu0 %v509
    %1044 = vmatprep.subr.bf16.mxu0 %v518
    %1045 = vmatpush1.bf16.msra.mxu0 %v517
    %1046 = vmatprep.subr.bf16.mxu0 %v526
    %1047 = vmatpush1.bf16.msra.mxu0 %v525
    %1048 = vmatprep.subr.bf16.mxu0 %v534
    %1049 = vmatpush1.bf16.msra.mxu0 %v533
    %1050 = vmatprep.subr.bf16.mxu0 %v542
    %1051 = vmatpush1.bf16.msra.mxu0 %v541
    %1052 = vmatprep.subr.bf16.mxu0 %v550
    %1053 = vmatpush1.bf16.msra.mxu0 %v549
    %1054 = vmatprep.subr.bf16.mxu0 %v558
    %1055 = vmatpush1.bf16.msra.mxu0 %v557
    %1056 = vmatprep.subr.bf16.mxu0 %v695
    %1057 = vmatpush1.bf16.msra.mxu0 %v692
    %1058 = vmatprep.subr.bf16.mxu0 0
    %1059 = vmatpush1.bf16.msra.mxu0 0
    %1060 = vmatprep.subr.bf16.mxu0 0
    %1061 = vmatpush1.bf16.msra.mxu0 0
    %1062 = vmatprep.subr.bf16.mxu0 0
    %1063 = vmatpush1.bf16.msra.mxu0 0
    %1064 = vmatprep.subr.bf16.mxu0 0
    %1065 = vmatpush1.bf16.msra.mxu0 0
    %1066 = vmatprep.subr.bf16.mxu0 0
    %1067 = vmatpush1.bf16.msra.mxu0 0
    %1068 = vmatprep.mubr.bf16.mxu0 %v649
    %1069 = vmatmul.mubr.bf16.gmra.mrb[0].mxu0 %v203
    %v1070 = vpop.f32.mrb[0].mxu0
    %v1071 = vadd.f32 0.0, %v1070
    %v1072 = vpop.f32.mrb[0].mxu0
    %v1073 = vadd.f32 0.0, %v1072
    %v1074 = vpop.f32.mrb[0].mxu0
    %v1075 = vadd.f32 0.0, %v1074
    %v1076 = vpop.f32.mrb[0].mxu0
    %v1077 = vadd.f32 0.0, %v1076
    %1078 = vmatprep.mubr.bf16.mxu0 %v652
    %1079 = vmatmul.mubr.bf16.gmra.mrb[0].mxu0 %v205
    %v1080 = vpop.f32.mrb[0].mxu0
    %v1081 = vadd.f32 0.0, %v1080
    %v1082 = vpop.f32.mrb[0].mxu0
    %v1083 = vadd.f32 0.0, %v1082
    %v1084 = vpop.f32.mrb[0].mxu0
    %v1085 = vadd.f32 0.0, %v1084
    %v1086 = vpop.f32.mrb[0].mxu0
    %v1087 = vadd.f32 0.0, %v1086
    %1088 = vmatprep.mubr.bf16.mxu0 %v655
    %1089 = vmatmul.mubr.bf16.gmra.mrb[0].mxu0 %v207
    %v1090 = vpop.f32.mrb[0].mxu0
    %v1091 = vadd.f32 0.0, %v1090
    %v1092 = vpop.f32.mrb[0].mxu0
    %v1093 = vadd.f32 0.0, %v1092
    %v1094 = vpop.f32.mrb[0].mxu0
    %v1095 = vadd.f32 0.0, %v1094
    %v1096 = vpop.f32.mrb[0].mxu0
    %v1097 = vadd.f32 0.0, %v1096
    %1098 = vmatprep.mubr.bf16.mxu0 %v658
    %1099 = vmatmul.mubr.bf16.gmra.mrb[0].mxu0 %v209
    %v1100 = vpop.f32.mrb[0].mxu0
    %v1101 = vadd.f32 0.0, %v1100
    %v1102 = vpop.f32.mrb[0].mxu0
    %v1103 = vadd.f32 0.0, %v1102
    %v1104 = vpop.f32.mrb[0].mxu0
    %v1105 = vadd.f32 0.0, %v1104
    %v1106 = vpop.f32.mrb[0].mxu0
    %v1107 = vadd.f32 0.0, %v1106
    %1108 = vmatprep.mubr.bf16.mxu0 %v661
    %1109 = vmatmul.mubr.bf16.gmra.mrb[0].mxu0 %v211
    %v1110 = vpop.f32.mrb[0].mxu0
    %v1111 = vadd.f32 0.0, %v1110
    %v1112 = vpop.f32.mrb[0].mxu0
    %v1113 = vadd.f32 0.0, %v1112
    %v1114 = vpop.f32.mrb[0].mxu0
    %v1115 = vadd.f32 0.0, %v1114
    %v1116 = vpop.f32.mrb[0].mxu0
    %v1117 = vadd.f32 0.0, %v1116
    %1118 = vmatprep.mubr.bf16.mxu0 %v664
    %1119 = vmatmul.mubr.bf16.gmra.mrb[0].mxu0 %v213
    %v1120 = vpop.f32.mrb[0].mxu0
    %v1121 = vadd.f32 0.0, %v1120
    %v1122 = vpop.f32.mrb[0].mxu0
    %v1123 = vadd.f32 0.0, %v1122
    %v1124 = vpop.f32.mrb[0].mxu0
    %v1125 = vadd.f32 0.0, %v1124
    %v1126 = vpop.f32.mrb[0].mxu0
    %v1127 = vadd.f32 0.0, %v1126
    %1128 = vmatprep.mubr.bf16.mxu0 %v667
    %1129 = vmatmul.mubr.bf16.gmra.mrb[0].mxu0 %v215
    %v1130 = vpop.f32.mrb[0].mxu0
    %v1131 = vadd.f32 0.0, %v1130
    %v1132 = vpop.f32.mrb[0].mxu0
    %v1133 = vadd.f32 0.0, %v1132
    %v1134 = vpop.f32.mrb[0].mxu0
    %v1135 = vadd.f32 0.0, %v1134
    %v1136 = vpop.f32.mrb[0].mxu0
    %v1137 = vadd.f32 0.0, %v1136
    %1138 = vmatprep.mubr.bf16.mxu0 %v670
    %1139 = vmatmul.mubr.bf16.gmra.mrb[0].mxu0 %v217
    %v1140 = vpop.f32.mrb[0].mxu0
    %v1141 = vadd.f32 0.0, %v1140
    %v1142 = vpop.f32.mrb[0].mxu0
    %v1143 = vadd.f32 0.0, %v1142
    %v1144 = vpop.f32.mrb[0].mxu0
    %v1145 = vadd.f32 0.0, %v1144
    %v1146 = vpop.f32.mrb[0].mxu0
    %v1147 = vadd.f32 0.0, %v1146
    %1148 = vdwg.mxu0
    %v1149 = vmax.f32 %v732, %v958
    %v1150 = vmax.f32 %v734, %v960
    %v1151 = vmax.f32 %v845, %v1071
    %v1152 = vmax.f32 %v847, %v1073
    %v1153 = vmax.f32 %v736, %v962
    %v1154 = vmax.f32 %v738, %v964
    %v1155 = vmax.f32 %v849, %v1075
    %v1156 = vmax.f32 %v851, %v1077
    %v1157 = vmax.f32 %v742, %v968
    %v1158 = vmax.f32 %v744, %v970
    %v1159 = vmax.f32 %v855, %v1081
    %v1160 = vmax.f32 %v857, %v1083
    %v1161 = vmax.f32 %v746, %v972
    %v1162 = vmax.f32 %v748, %v974
    %v1163 = vmax.f32 %v859, %v1085
    %v1164 = vmax.f32 %v861, %v1087
    %v1165 = vmax.f32 %v752, %v978
    %v1166 = vmax.f32 %v754, %v980
    %v1167 = vmax.f32 %v865, %v1091
    %v1168 = vmax.f32 %v867, %v1093
    %v1169 = vmax.f32 %v756, %v982
    %v1170 = vmax.f32 %v758, %v984
    %v1171 = vmax.f32 %v869, %v1095
    %v1172 = vmax.f32 %v871, %v1097
    %v1173 = vmax.f32 %v762, %v988
    %v1174 = vmax.f32 %v764, %v990
    %v1175 = vmax.f32 %v875, %v1101
    %v1176 = vmax.f32 %v877, %v1103
    %v1177 = vmax.f32 %v766, %v992
    %v1178 = vmax.f32 %v768, %v994
    %v1179 = vmax.f32 %v879, %v1105
    %v1180 = vmax.f32 %v881, %v1107
    %v1181 = vmax.f32 %v772, %v998
    %v1182 = vmax.f32 %v774, %v1000
    %v1183 = vmax.f32 %v885, %v1111
    %v1184 = vmax.f32 %v887, %v1113
    %v1185 = vmax.f32 %v776, %v1002
    %v1186 = vmax.f32 %v778, %v1004
    %v1187 = vmax.f32 %v889, %v1115
    %v1188 = vmax.f32 %v891, %v1117
    %v1189 = vmax.f32 %v782, %v1008
    %v1190 = vmax.f32 %v784, %v1010
    %v1191 = vmax.f32 %v895, %v1121
    %v1192 = vmax.f32 %v897, %v1123
    %v1193 = vmax.f32 %v786, %v1012
    %v1194 = vmax.f32 %v788, %v1014
    %v1195 = vmax.f32 %v899, %v1125
    %v1196 = vmax.f32 %v901, %v1127
    %v1197 = vmax.f32 %v792, %v1018
    %v1198 = vmax.f32 %v794, %v1020
    %v1199 = vmax.f32 %v905, %v1131
    %v1200 = vmax.f32 %v907, %v1133
    %v1201 = vmax.f32 %v796, %v1022
    %v1202 = vmax.f32 %v798, %v1024
    %v1203 = vmax.f32 %v909, %v1135
    %v1204 = vmax.f32 %v911, %v1137
    %v1205 = vmax.f32 %v802, %v1028
    %v1206 = vmax.f32 %v804, %v1030
    %v1207 = vmax.f32 %v915, %v1141
    %v1208 = vmax.f32 %v917, %v1143
    %v1209 = vmax.f32 %v806, %v1032
    %v1210 = vmax.f32 %v808, %v1034
    %v1211 = vmax.f32 %v919, %v1145
    %v1212 = vmax.f32 %v921, %v1147
    %v1213 = vmax.f32 %v1149, %v1151
    %v1214 = vmax.f32 %v1150, %v1152
    %v1215 = vmax.f32 %v1153, %v1155
    %v1216 = vmax.f32 %v1154, %v1156
    %v1217 = vmax.f32 %v1157, %v1159
    %v1218 = vmax.f32 %v1158, %v1160
    %v1219 = vmax.f32 %v1161, %v1163
    %v1220 = vmax.f32 %v1162, %v1164
    %v1221 = vmax.f32 %v1165, %v1167
    %v1222 = vmax.f32 %v1166, %v1168
    %v1223 = vmax.f32 %v1169, %v1171
    %v1224 = vmax.f32 %v1170, %v1172
    %v1225 = vmax.f32 %v1173, %v1175
    %v1226 = vmax.f32 %v1174, %v1176
    %v1227 = vmax.f32 %v1177, %v1179
    %v1228 = vmax.f32 %v1178, %v1180
    %v1229 = vmax.f32 %v1181, %v1183
    %v1230 = vmax.f32 %v1182, %v1184
    %v1231 = vmax.f32 %v1185, %v1187
    %v1232 = vmax.f32 %v1186, %v1188
    %v1233 = vmax.f32 %v1189, %v1191
    %v1234 = vmax.f32 %v1190, %v1192
    %v1235 = vmax.f32 %v1193, %v1195
    %v1236 = vmax.f32 %v1194, %v1196
    %v1237 = vmax.f32 %v1197, %v1199
    %v1238 = vmax.f32 %v1198, %v1200
    %v1239 = vmax.f32 %v1201, %v1203
    %v1240 = vmax.f32 %v1202, %v1204
    %v1241 = vmax.f32 %v1205, %v1207
    %v1242 = vmax.f32 %v1206, %v1208
    %v1243 = vmax.f32 %v1209, %v1211
    %v1244 = vmax.f32 %v1210, %v1212
    %v1245 = vld [vmem:[%s2] sm:$0x3]
    %v1247 = vlaneseq
    %v1248 = vshrl.u32 %v1247, 7
    %v1249 = vsub.s32 0, %v1248
    %v1250 = vrot.slane %v1245, %v1249
    %v1251 = vlaneseq
    %v1252 = vshrl.u32 %v1251, 7
    %v1253 = vsub.s32 1, %v1252
    %v1254 = vrot.slane %v1245, %v1253
    %v1257 = vadd.f32 %v1213, %v1250
    %v1258 = vadd.f32 %v1214, %v1254
    %v1259 = vadd.f32 %v1215, %v1250
    %v1260 = vadd.f32 %v1216, %v1254
    %v1261 = vadd.f32 %v1217, %v1250
    %v1262 = vadd.f32 %v1218, %v1254
    %v1263 = vadd.f32 %v1219, %v1250
    %v1264 = vadd.f32 %v1220, %v1254
    %v1265 = vadd.f32 %v1221, %v1250
    %v1266 = vadd.f32 %v1222, %v1254
    %v1267 = vadd.f32 %v1223, %v1250
    %v1268 = vadd.f32 %v1224, %v1254
    %v1269 = vadd.f32 %v1225, %v1250
    %v1270 = vadd.f32 %v1226, %v1254
    %v1271 = vadd.f32 %v1227, %v1250
    %v1272 = vadd.f32 %v1228, %v1254
    %v1273 = vadd.f32 %v1229, %v1250
    %v1274 = vadd.f32 %v1230, %v1254
    %v1275 = vadd.f32 %v1231, %v1250
    %v1276 = vadd.f32 %v1232, %v1254
    %v1277 = vadd.f32 %v1233, %v1250
    %v1278 = vadd.f32 %v1234, %v1254
    %v1279 = vadd.f32 %v1235, %v1250
    %v1280 = vadd.f32 %v1236, %v1254
    %v1281 = vadd.f32 %v1237, %v1250
    %v1282 = vadd.f32 %v1238, %v1254
    %v1283 = vadd.f32 %v1239, %v1250
    %v1284 = vadd.f32 %v1240, %v1254
    %v1285 = vadd.f32 %v1241, %v1250
    %v1286 = vadd.f32 %v1242, %v1254
    %v1287 = vadd.f32 %v1243, %v1250
    %v1288 = vadd.f32 %v1244, %v1254
    %v1289 = vmax.f32 %v1257, 0.0
    %v1290 = vmax.f32 %v1258, 0.0
    %v1291 = vmax.f32 %v1259, 0.0
    %v1292 = vmax.f32 %v1260, 0.0
    %v1293 = vmax.f32 %v1261, 0.0
    %v1294 = vmax.f32 %v1262, 0.0
    %v1295 = vmax.f32 %v1263, 0.0
    %v1296 = vmax.f32 %v1264, 0.0
    %v1297 = vmax.f32 %v1265, 0.0
    %v1298 = vmax.f32 %v1266, 0.0
    %v1299 = vmax.f32 %v1267, 0.0
    %v1300 = vmax.f32 %v1268, 0.0
    %v1301 = vmax.f32 %v1269, 0.0
    %v1302 = vmax.f32 %v1270, 0.0
    %v1303 = vmax.f32 %v1271, 0.0
    %v1304 = vmax.f32 %v1272, 0.0
    %v1305 = vmax.f32 %v1273, 0.0
    %v1306 = vmax.f32 %v1274, 0.0
    %v1307 = vmax.f32 %v1275, 0.0
    %v1308 = vmax.f32 %v1276, 0.0
    %v1309 = vmax.f32 %v1277, 0.0
    %v1310 = vmax.f32 %v1278, 0.0
    %v1311 = vmax.f32 %v1279, 0.0
    %v1312 = vmax.f32 %v1280, 0.0
    %v1313 = vmax.f32 %v1281, 0.0
    %v1314 = vmax.f32 %v1282, 0.0
    %v1315 = vmax.f32 %v1283, 0.0
    %v1316 = vmax.f32 %v1284, 0.0
    %v1317 = vmax.f32 %v1285, 0.0
    %v1318 = vmax.f32 %v1286, 0.0
    %v1319 = vmax.f32 %v1287, 0.0
    %v1320 = vmax.f32 %v1288, 0.0
    %v1321 = vpack.c.bf16 %v1291, %v1289
    %v1322 = vpack.c.bf16 %v1292, %v1290
    %v1323 = vpack.c.bf16 %v1295, %v1293
    %v1324 = vpack.c.bf16 %v1296, %v1294
    %v1325 = vpack.c.bf16 %v1299, %v1297
    %v1326 = vpack.c.bf16 %v1300, %v1298
    %v1327 = vpack.c.bf16 %v1303, %v1301
    %v1328 = vpack.c.bf16 %v1304, %v1302
    %v1329 = vpack.c.bf16 %v1307, %v1305
    %v1330 = vpack.c.bf16 %v1308, %v1306
    %v1331 = vpack.c.bf16 %v1311, %v1309
    %v1332 = vpack.c.bf16 %v1312, %v1310
    %v1333 = vpack.c.bf16 %v1315, %v1313
    %v1334 = vpack.c.bf16 %v1316, %v1314
    %v1335 = vpack.c.bf16 %v1319, %v1317
    %v1336 = vpack.c.bf16 %v1320, %v1318
    %v1353 = vunpack.c.l.b16 %v1321
    %v1354 = vunpack.c.l.b16 %v1322
    %v1355 = vunpack.c.l.b16 %v1323
    %v1356 = vunpack.c.l.b16 %v1324
    %v1357 = vunpack.c.l.b16 %v1325
    %v1358 = vunpack.c.l.b16 %v1326
    %v1359 = vunpack.c.l.b16 %v1327
    %v1360 = vunpack.c.l.b16 %v1328
    %v1361 = vunpack.c.l.b16 %v1329
    %v1362 = vunpack.c.l.b16 %v1330
    %v1363 = vunpack.c.l.b16 %v1331
    %v1364 = vunpack.c.l.b16 %v1332
    %v1365 = vunpack.c.l.b16 %v1333
    %v1366 = vunpack.c.l.b16 %v1334
    %v1367 = vunpack.c.l.b16 %v1335
    %v1368 = vunpack.c.l.b16 %v1336
    %v1369 = vpack.c.b16 %v1355, %v1353
    %v1370 = vpack.c.b16 %v1356, %v1354
    %v1371 = vpack.c.b16 %v1359, %v1357
    %v1372 = vpack.c.b16 %v1360, %v1358
    %v1373 = vpack.c.b16 %v1363, %v1361
    %v1374 = vpack.c.b16 %v1364, %v1362
    %v1375 = vpack.c.b16 %v1367, %v1365
    %v1376 = vpack.c.b16 %v1368, %v1366
    %1385 = vst [vmem:[#allocation2] sm:$0xff] %v1369
    %1386 = vst [vmem:[#allocation2 + $0x8] sm:$0xff] %v1370
    %1387 = vst [vmem:[#allocation2 + $0x50] sm:$0xff] %v1371
    %1388 = vst [vmem:[#allocation2 + $0x58] sm:$0xff] %v1372
    %1389 = vst [vmem:[#allocation2 + $0xa0] sm:$0xff] %v1373
    %1390 = vst [vmem:[#allocation2 + $0xa8] sm:$0xff] %v1374
    %1391 = vst [vmem:[#allocation2 + $0xf0] sm:$0xff] %v1375
    %1392 = vst [vmem:[#allocation2 + $0xf8] sm:$0xff] %v1376
    %v1393 = vunpack.c.h.b16 %v1321
    %v1394 = vunpack.c.h.b16 %v1322
    %v1395 = vunpack.c.h.b16 %v1323
    %v1396 = vunpack.c.h.b16 %v1324
    %v1397 = vunpack.c.h.b16 %v1325
    %v1398 = vunpack.c.h.b16 %v1326
    %v1399 = vunpack.c.h.b16 %v1327
    %v1400 = vunpack.c.h.b16 %v1328
    %v1401 = vunpack.c.h.b16 %v1329
    %v1402 = vunpack.c.h.b16 %v1330
    %v1403 = vunpack.c.h.b16 %v1331
    %v1404 = vunpack.c.h.b16 %v1332
    %v1405 = vunpack.c.h.b16 %v1333
    %v1406 = vunpack.c.h.b16 %v1334
    %v1407 = vunpack.c.h.b16 %v1335
    %v1408 = vunpack.c.h.b16 %v1336
    %v1409 = vpack.c.b16 %v1354, %v1353
    %v1410 = vpack.c.b16 %v1394, %v1393
    %v1411 = vpack.c.b16 %v1356, %v1355
    %v1412 = vpack.c.b16 %v1396, %v1395
    %v1413 = vpack.c.b16 %v1358, %v1357
    %v1414 = vpack.c.b16 %v1398, %v1397
    %v1415 = vpack.c.b16 %v1360, %v1359
    %v1416 = vpack.c.b16 %v1400, %v1399
    %v1417 = vpack.c.b16 %v1362, %v1361
    %v1418 = vpack.c.b16 %v1402, %v1401
    %v1419 = vpack.c.b16 %v1364, %v1363
    %v1420 = vpack.c.b16 %v1404, %v1403
    %v1421 = vpack.c.b16 %v1366, %v1365
    %v1422 = vpack.c.b16 %v1406, %v1405
    %v1423 = vpack.c.b16 %v1368, %v1367
    %v1424 = vpack.c.b16 %v1408, %v1407
    %vm1425 = vsmask.f32 3328
    %vm1426 = vsmask.f32 7440
    %vm1427 = vmor %vm1425, %vm1426
    %v1429 = vshrl.u32 %v1409, 16
    %v1431 = vrot.slane %v1429, 4
    %v1432 = vshll.u32 %v1409, 16
    %v1434 = vrot.slane %v1432, 5
    %v1435 = vor.u32 %v1431, %v1434
    %v1436 = vrot.slane %v1435, 4
    %v1438 = vshll.u32 %v1410, 16
    %v1440 = vrot.slane %v1438, 5
    %v1441 = vsel %vm1427, %v1436, %v1440
    %v1443 = vshrl.u32 %v1411, 16
    %v1445 = vrot.slane %v1443, 4
    %v1446 = vshll.u32 %v1411, 16
    %v1448 = vrot.slane %v1446, 5
    %v1449 = vor.u32 %v1445, %v1448
    %v1450 = vrot.slane %v1449, 4
    %v1452 = vshll.u32 %v1412, 16
    %v1454 = vrot.slane %v1452, 5
    %v1455 = vsel %vm1427, %v1450, %v1454
    %v1457 = vshrl.u32 %v1413, 16
    %v1459 = vrot.slane %v1457, 4
    %v1460 = vshll.u32 %v1413, 16
    %v1462 = vrot.slane %v1460, 5
    %v1463 = vor.u32 %v1459, %v1462
    %v1464 = vrot.slane %v1463, 4
    %v1466 = vshll.u32 %v1414, 16
    %v1468 = vrot.slane %v1466, 5
    %v1469 = vsel %vm1427, %v1464, %v1468
    %v1471 = vshrl.u32 %v1415, 16
    %v1473 = vrot.slane %v1471, 4
    %v1474 = vshll.u32 %v1415, 16
    %v1476 = vrot.slane %v1474, 5
    %v1477 = vor.u32 %v1473, %v1476
    %v1478 = vrot.slane %v1477, 4
    %v1480 = vshll.u32 %v1416, 16
    %v1482 = vrot.slane %v1480, 5
    %v1483 = vsel %vm1427, %v1478, %v1482
    %v1485 = vshrl.u32 %v1417, 16
    %v1487 = vrot.slane %v1485, 4
    %v1488 = vshll.u32 %v1417, 16
    %v1490 = vrot.slane %v1488, 5
    %v1491 = vor.u32 %v1487, %v1490
    %v1492 = vrot.slane %v1491, 4
    %v1494 = vshll.u32 %v1418, 16
    %v1496 = vrot.slane %v1494, 5
    %v1497 = vsel %vm1427, %v1492, %v1496
    %v1499 = vshrl.u32 %v1419, 16
    %v1501 = vrot.slane %v1499, 4
    %v1502 = vshll.u32 %v1419, 16
    %v1504 = vrot.slane %v1502, 5
    %v1505 = vor.u32 %v1501, %v1504
    %v1506 = vrot.slane %v1505, 4
    %v1508 = vshll.u32 %v1420, 16
    %v1510 = vrot.slane %v1508, 5
    %v1511 = vsel %vm1427, %v1506, %v1510
    %v1513 = vshrl.u32 %v1421, 16
    %v1515 = vrot.slane %v1513, 4
    %v1516 = vshll.u32 %v1421, 16
    %v1518 = vrot.slane %v1516, 5
    %v1519 = vor.u32 %v1515, %v1518
    %v1520 = vrot.slane %v1519, 4
    %v1522 = vshll.u32 %v1422, 16
    %v1524 = vrot.slane %v1522, 5
    %v1525 = vsel %vm1427, %v1520, %v1524
    %v1527 = vshrl.u32 %v1423, 16
    %v1529 = vrot.slane %v1527, 4
    %v1530 = vshll.u32 %v1423, 16
    %v1532 = vrot.slane %v1530, 5
    %v1533 = vor.u32 %v1529, %v1532
    %v1534 = vrot.slane %v1533, 4
    %v1536 = vshll.u32 %v1424, 16
    %v1538 = vrot.slane %v1536, 5
    %v1539 = vsel %vm1427, %v1534, %v1538
    %v1540 = vunpack.c.l.b16 %v1441
    %v1541 = vunpack.c.h.b16 %v1441
    %v1542 = vunpack.c.l.b16 %v1455
    %v1543 = vunpack.c.h.b16 %v1455
    %v1544 = vunpack.c.l.b16 %v1469
    %v1545 = vunpack.c.h.b16 %v1469
    %v1546 = vunpack.c.l.b16 %v1483
    %v1547 = vunpack.c.h.b16 %v1483
    %v1548 = vunpack.c.l.b16 %v1497
    %v1549 = vunpack.c.h.b16 %v1497
    %v1550 = vunpack.c.l.b16 %v1511
    %v1551 = vunpack.c.h.b16 %v1511
    %v1552 = vunpack.c.l.b16 %v1525
    %v1553 = vunpack.c.h.b16 %v1525
    %v1554 = vunpack.c.l.b16 %v1539
    %v1555 = vunpack.c.h.b16 %v1539
    %v1556 = vpack.c.b16 %v1542, %v1540
    %v1557 = vpack.c.b16 %v1543, %v1541
    %v1558 = vpack.c.b16 %v1546, %v1544
    %v1559 = vpack.c.b16 %v1547, %v1545
    %v1560 = vpack.c.b16 %v1550, %v1548
    %v1561 = vpack.c.b16 %v1551, %v1549
    %v1562 = vpack.c.b16 %v1554, %v1552
    %v1563 = vpack.c.b16 %v1555, %v1553
    %1572 = vst [vmem:[#allocation2 + $0x10] sm:$0xff] %v1556
    %1573 = vst [vmem:[#allocation2 + $0x18] sm:$0xff] %v1557
    %1574 = vst [vmem:[#allocation2 + $0x60] sm:$0xff] %v1558
    %1575 = vst [vmem:[#allocation2 + $0x68] sm:$0xff] %v1559
    %1576 = vst [vmem:[#allocation2 + $0xb0] sm:$0xff] %v1560
    %1577 = vst [vmem:[#allocation2 + $0xb8] sm:$0xff] %v1561
    %1578 = vst [vmem:[#allocation2 + $0x100] sm:$0xff] %v1562
    %1579 = vst [vmem:[#allocation2 + $0x108] sm:$0xff] %v1563
    %vm1580 = vcmask 1042432
    %vm1581 = vcmask 1046532
    %vm1582 = vmor %vm1580, %vm1581
    %v1583 = vrot.slane %v1409, 5
    %v1584 = vrot.slane %v1583, 4
    %v1585 = vrot.slane %v1410, 5
    %v1586 = vsel %vm1582, %v1584, %v1585
    %v1587 = vrot.slane %v1411, 5
    %v1588 = vrot.slane %v1587, 4
    %v1589 = vrot.slane %v1412, 5
    %v1590 = vsel %vm1582, %v1588, %v1589
    %v1591 = vrot.slane %v1413, 5
    %v1592 = vrot.slane %v1591, 4
    %v1593 = vrot.slane %v1414, 5
    %v1594 = vsel %vm1582, %v1592, %v1593
    %v1595 = vrot.slane %v1415, 5
    %v1596 = vrot.slane %v1595, 4
    %v1597 = vrot.slane %v1416, 5
    %v1598 = vsel %vm1582, %v1596, %v1597
    %v1599 = vrot.slane %v1417, 5
    %v1600 = vrot.slane %v1599, 4
    %v1601 = vrot.slane %v1418, 5
    %v1602 = vsel %vm1582, %v1600, %v1601
    %v1603 = vrot.slane %v1419, 5
    %v1604 = vrot.slane %v1603, 4
    %v1605 = vrot.slane %v1420, 5
    %v1606 = vsel %vm1582, %v1604, %v1605
    %v1607 = vrot.slane %v1421, 5
    %v1608 = vrot.slane %v1607, 4
    %v1609 = vrot.slane %v1422, 5
    %v1610 = vsel %vm1582, %v1608, %v1609
    %v1611 = vrot.slane %v1423, 5
    %v1612 = vrot.slane %v1611, 4
    %v1613 = vrot.slane %v1424, 5
    %v1614 = vsel %vm1582, %v1612, %v1613
    %v1615 = vunpack.c.l.b16 %v1586
    %v1616 = vunpack.c.h.b16 %v1586
    %v1617 = vunpack.c.l.b16 %v1590
    %v1618 = vunpack.c.h.b16 %v1590
    %v1619 = vunpack.c.l.b16 %v1594
    %v1620 = vunpack.c.h.b16 %v1594
    %v1621 = vunpack.c.l.b16 %v1598
    %v1622 = vunpack.c.h.b16 %v1598
    %v1623 = vunpack.c.l.b16 %v1602
    %v1624 = vunpack.c.h.b16 %v1602
    %v1625 = vunpack.c.l.b16 %v1606
    %v1626 = vunpack.c.h.b16 %v1606
    %v1627 = vunpack.c.l.b16 %v1610
    %v1628 = vunpack.c.h.b16 %v1610
    %v1629 = vunpack.c.l.b16 %v1614
    %v1630 = vunpack.c.h.b16 %v1614
    %v1631 = vpack.c.b16 %v1617, %v1615
    %v1632 = vpack.c.b16 %v1618, %v1616
    %v1633 = vpack.c.b16 %v1621, %v1619
    %v1634 = vpack.c.b16 %v1622, %v1620
    %v1635 = vpack.c.b16 %v1625, %v1623
    %v1636 = vpack.c.b16 %v1626, %v1624
    %v1637 = vpack.c.b16 %v1629, %v1627
    %v1638 = vpack.c.b16 %v1630, %v1628
    %1647 = vst [vmem:[#allocation2 + $0x20] sm:$0xff] %v1631
    %1648 = vst [vmem:[#allocation2 + $0x28] sm:$0xff] %v1632
    %1649 = vst [vmem:[#allocation2 + $0x70] sm:$0xff] %v1633
    %1650 = vst [vmem:[#allocation2 + $0x78] sm:$0xff] %v1634
    %1651 = vst [vmem:[#allocation2 + $0xc0] sm:$0xff] %v1635
    %1652 = vst [vmem:[#allocation2 + $0xc8] sm:$0xff] %v1636
    %1653 = vst [vmem:[#allocation2 + $0x110] sm:$0xff] %v1637
    %1654 = vst [vmem:[#allocation2 + $0x118] sm:$0xff] %v1638
    %vm1655 = vsmask.f32 2304
    %vm1656 = vsmask.f32 6416
    %vm1657 = vmor %vm1655, %vm1656
    %v1658 = vrot.slane %v1429, 5
    %v1659 = vrot.slane %v1432, 6
    %v1660 = vor.u32 %v1658, %v1659
    %v1661 = vrot.slane %v1660, 4
    %v1662 = vshrl.u32 %v1410, 16
    %v1664 = vrot.slane %v1662, 5
    %v1665 = vrot.slane %v1438, 6
    %v1666 = vor.u32 %v1664, %v1665
    %v1667 = vsel %vm1657, %v1661, %v1666
    %v1668 = vrot.slane %v1443, 5
    %v1669 = vrot.slane %v1446, 6
    %v1670 = vor.u32 %v1668, %v1669
    %v1671 = vrot.slane %v1670, 4
    %v1672 = vshrl.u32 %v1412, 16
    %v1674 = vrot.slane %v1672, 5
    %v1675 = vrot.slane %v1452, 6
    %v1676 = vor.u32 %v1674, %v1675
    %v1677 = vsel %vm1657, %v1671, %v1676
    %v1678 = vrot.slane %v1457, 5
    %v1679 = vrot.slane %v1460, 6
    %v1680 = vor.u32 %v1678, %v1679
    %v1681 = vrot.slane %v1680, 4
    %v1682 = vshrl.u32 %v1414, 16
    %v1684 = vrot.slane %v1682, 5
    %v1685 = vrot.slane %v1466, 6
    %v1686 = vor.u32 %v1684, %v1685
    %v1687 = vsel %vm1657, %v1681, %v1686
    %v1688 = vrot.slane %v1471, 5
    %v1689 = vrot.slane %v1474, 6
    %v1690 = vor.u32 %v1688, %v1689
    %v1691 = vrot.slane %v1690, 4
    %v1692 = vshrl.u32 %v1416, 16
    %v1694 = vrot.slane %v1692, 5
    %v1695 = vrot.slane %v1480, 6
    %v1696 = vor.u32 %v1694, %v1695
    %v1697 = vsel %vm1657, %v1691, %v1696
    %v1698 = vrot.slane %v1485, 5
    %v1699 = vrot.slane %v1488, 6
    %v1700 = vor.u32 %v1698, %v1699
    %v1701 = vrot.slane %v1700, 4
    %v1702 = vshrl.u32 %v1418, 16
    %v1704 = vrot.slane %v1702, 5
    %v1705 = vrot.slane %v1494, 6
    %v1706 = vor.u32 %v1704, %v1705
    %v1707 = vsel %vm1657, %v1701, %v1706
    %v1708 = vrot.slane %v1499, 5
    %v1709 = vrot.slane %v1502, 6
    %v1710 = vor.u32 %v1708, %v1709
    %v1711 = vrot.slane %v1710, 4
    %v1712 = vshrl.u32 %v1420, 16
    %v1714 = vrot.slane %v1712, 5
    %v1715 = vrot.slane %v1508, 6
    %v1716 = vor.u32 %v1714, %v1715
    %v1717 = vsel %vm1657, %v1711, %v1716
    %v1718 = vrot.slane %v1513, 5
    %v1719 = vrot.slane %v1516, 6
    %v1720 = vor.u32 %v1718, %v1719
    %v1721 = vrot.slane %v1720, 4
    %v1722 = vshrl.u32 %v1422, 16
    %v1724 = vrot.slane %v1722, 5
    %v1725 = vrot.slane %v1522, 6
    %v1726 = vor.u32 %v1724, %v1725
    %v1727 = vsel %vm1657, %v1721, %v1726
    %v1728 = vrot.slane %v1527, 5
    %v1729 = vrot.slane %v1530, 6
    %v1730 = vor.u32 %v1728, %v1729
    %v1731 = vrot.slane %v1730, 4
    %v1732 = vshrl.u32 %v1424, 16
    %v1734 = vrot.slane %v1732, 5
    %v1735 = vrot.slane %v1536, 6
    %v1736 = vor.u32 %v1734, %v1735
    %v1737 = vsel %vm1657, %v1731, %v1736
    %v1738 = vunpack.c.l.b16 %v1667
    %v1739 = vunpack.c.h.b16 %v1667
    %v1740 = vunpack.c.l.b16 %v1677
    %v1741 = vunpack.c.h.b16 %v1677
    %v1742 = vunpack.c.l.b16 %v1687
    %v1743 = vunpack.c.h.b16 %v1687
    %v1744 = vunpack.c.l.b16 %v1697
    %v1745 = vunpack.c.h.b16 %v1697
    %v1746 = vunpack.c.l.b16 %v1707
    %v1747 = vunpack.c.h.b16 %v1707
    %v1748 = vunpack.c.l.b16 %v1717
    %v1749 = vunpack.c.h.b16 %v1717
    %v1750 = vunpack.c.l.b16 %v1727
    %v1751 = vunpack.c.h.b16 %v1727
    %v1752 = vunpack.c.l.b16 %v1737
    %v1753 = vunpack.c.h.b16 %v1737
    %v1754 = vpack.c.b16 %v1740, %v1738
    %v1755 = vpack.c.b16 %v1741, %v1739
    %v1756 = vpack.c.b16 %v1744, %v1742
    %v1757 = vpack.c.b16 %v1745, %v1743
    %v1758 = vpack.c.b16 %v1748, %v1746
    %v1759 = vpack.c.b16 %v1749, %v1747
    %v1760 = vpack.c.b16 %v1752, %v1750
    %v1761 = vpack.c.b16 %v1753, %v1751
    %1770 = vst [vmem:[#allocation2 + $0x30] sm:$0xff] %v1754
    %1771 = vst [vmem:[#allocation2 + $0x38] sm:$0xff] %v1755
    %1772 = vst [vmem:[#allocation2 + $0x80] sm:$0xff] %v1756
    %1773 = vst [vmem:[#allocation2 + $0x88] sm:$0xff] %v1757
    %1774 = vst [vmem:[#allocation2 + $0xd0] sm:$0xff] %v1758
    %1775 = vst [vmem:[#allocation2 + $0xd8] sm:$0xff] %v1759
    %1776 = vst [vmem:[#allocation2 + $0x120] sm:$0xff] %v1760
    %1777 = vst [vmem:[#allocation2 + $0x128] sm:$0xff] %v1761
    %vm1778 = vcmask 1041408
    %vm1779 = vcmask 1045508
    %vm1780 = vmor %vm1778, %vm1779
    %v1781 = vrot.slane %v1409, 6
    %v1782 = vrot.slane %v1781, 4
    %v1783 = vrot.slane %v1410, 6
    %v1784 = vsel %vm1780, %v1782, %v1783
    %v1785 = vrot.slane %v1411, 6
    %v1786 = vrot.slane %v1785, 4
    %v1787 = vrot.slane %v1412, 6
    %v1788 = vsel %vm1780, %v1786, %v1787
    %v1789 = vrot.slane %v1413, 6
    %v1790 = vrot.slane %v1789, 4
    %v1791 = vrot.slane %v1414, 6
    %v1792 = vsel %vm1780, %v1790, %v1791
    %v1793 = vrot.slane %v1415, 6
    %v1794 = vrot.slane %v1793, 4
    %v1795 = vrot.slane %v1416, 6
    %v1796 = vsel %vm1780, %v1794, %v1795
    %v1797 = vrot.slane %v1417, 6
    %v1798 = vrot.slane %v1797, 4
    %v1799 = vrot.slane %v1418, 6
    %v1800 = vsel %vm1780, %v1798, %v1799
    %v1801 = vrot.slane %v1419, 6
    %v1802 = vrot.slane %v1801, 4
    %v1803 = vrot.slane %v1420, 6
    %v1804 = vsel %vm1780, %v1802, %v1803
    %v1805 = vrot.slane %v1421, 6
    %v1806 = vrot.slane %v1805, 4
    %v1807 = vrot.slane %v1422, 6
    %v1808 = vsel %vm1780, %v1806, %v1807
    %v1809 = vrot.slane %v1423, 6
    %v1810 = vrot.slane %v1809, 4
    %v1811 = vrot.slane %v1424, 6
    %v1812 = vsel %vm1780, %v1810, %v1811
    %v1813 = vunpack.c.l.b16 %v1784
    %v1814 = vunpack.c.h.b16 %v1784
    %v1815 = vunpack.c.l.b16 %v1788
    %v1816 = vunpack.c.h.b16 %v1788
    %v1817 = vunpack.c.l.b16 %v1792
    %v1818 = vunpack.c.h.b16 %v1792
    %v1819 = vunpack.c.l.b16 %v1796
    %v1820 = vunpack.c.h.b16 %v1796
    %v1821 = vunpack.c.l.b16 %v1800
    %v1822 = vunpack.c.h.b16 %v1800
    %v1823 = vunpack.c.l.b16 %v1804
    %v1824 = vunpack.c.h.b16 %v1804
    %v1825 = vunpack.c.l.b16 %v1808
    %v1826 = vunpack.c.h.b16 %v1808
    %v1827 = vunpack.c.l.b16 %v1812
    %v1828 = vunpack.c.h.b16 %v1812
    %v1829 = vpack.c.b16 %v1815, %v1813
    %v1830 = vpack.c.b16 %v1816, %v1814
    %v1831 = vpack.c.b16 %v1819, %v1817
    %v1832 = vpack.c.b16 %v1820, %v1818
    %v1833 = vpack.c.b16 %v1823, %v1821
    %v1834 = vpack.c.b16 %v1824, %v1822
    %v1835 = vpack.c.b16 %v1827, %v1825
    %v1836 = vpack.c.b16 %v1828, %v1826
    %1845 = vst [vmem:[#allocation2 + $0x40] sm:$0xff] %v1829
    %1846 = vst [vmem:[#allocation2 + $0x48] sm:$0xff] %v1830
    %1847 = vst [vmem:[#allocation2 + $0x90] sm:$0xff] %v1831
    %1848 = vst [vmem:[#allocation2 + $0x98] sm:$0xff] %v1832
    %1849 = vst [vmem:[#allocation2 + $0xe0] sm:$0xff] %v1833
    %1850 = vst [vmem:[#allocation2 + $0xe8] sm:$0xff] %v1834
    %1851 = vst [vmem:[#allocation2 + $0x130] sm:$0xff] %v1835
    %1852 = vst [vmem:[#allocation2 + $0x138] sm:$0xff] %v1836
    %v1853 = vld [vmem:[#allocation2] sm:$0xff]
    %v1854 = vld [vmem:[#allocation2 + $0x8] sm:$0xff]
    %v1855 = vld [vmem:[#allocation2 + $0x10] sm:$0xff]
    %v1856 = vld [vmem:[#allocation2 + $0x18] sm:$0xff]
    %v1857 = vld [vmem:[#allocation2 + $0x20] sm:$0xff]
    %v1858 = vld [vmem:[#allocation2 + $0x28] sm:$0xff]
    %v1859 = vld [vmem:[#allocation2 + $0x30] sm:$0xff]
    %v1860 = vld [vmem:[#allocation2 + $0x38] sm:$0xff]
    %v1861 = vld [vmem:[#allocation2 + $0x40] sm:$0xff]
    %v1862 = vld [vmem:[#allocation2 + $0x48] sm:$0xff]
    %v1863 = vld [vmem:[#allocation2 + $0x50] sm:$0xff]
    %v1864 = vld [vmem:[#allocation2 + $0x58] sm:$0xff]
    %v1865 = vld [vmem:[#allocation2 + $0x60] sm:$0xff]
    %v1866 = vld [vmem:[#allocation2 + $0x68] sm:$0xff]
    %v1867 = vld [vmem:[#allocation2 + $0x70] sm:$0xff]
    %v1868 = vld [vmem:[#allocation2 + $0x78] sm:$0xff]
    %v1869 = vld [vmem:[#allocation2 + $0x80] sm:$0xff]
    %v1870 = vld [vmem:[#allocation2 + $0x88] sm:$0xff]
    %v1871 = vld [vmem:[#allocation2 + $0x90] sm:$0xff]
    %v1872 = vld [vmem:[#allocation2 + $0x98] sm:$0xff]
    %v1873 = vld [vmem:[#allocation2 + $0xa0] sm:$0xff]
    %v1874 = vld [vmem:[#allocation2 + $0xa8] sm:$0xff]
    %v1875 = vld [vmem:[#allocation2 + $0xb0] sm:$0xff]
    %v1876 = vld [vmem:[#allocation2 + $0xb8] sm:$0xff]
    %v1877 = vld [vmem:[#allocation2 + $0xc0] sm:$0xff]
    %v1878 = vld [vmem:[#allocation2 + $0xc8] sm:$0xff]
    %v1879 = vld [vmem:[#allocation2 + $0xd0] sm:$0xff]
    %v1880 = vld [vmem:[#allocation2 + $0xd8] sm:$0xff]
    %v1881 = vld [vmem:[#allocation2 + $0xe0] sm:$0xff]
    %v1882 = vld [vmem:[#allocation2 + $0xe8] sm:$0xff]
    %v1883 = vld [vmem:[#allocation2 + $0xf0] sm:$0xff]
    %v1884 = vld [vmem:[#allocation2 + $0xf8] sm:$0xff]
    %v1885 = vld [vmem:[#allocation2 + $0x100] sm:$0xff]
    %v1886 = vld [vmem:[#allocation2 + $0x108] sm:$0xff]
    %v1887 = vld [vmem:[#allocation2 + $0x110] sm:$0xff]
    %v1888 = vld [vmem:[#allocation2 + $0x118] sm:$0xff]
    %v1889 = vld [vmem:[#allocation2 + $0x120] sm:$0xff]
    %v1890 = vld [vmem:[#allocation2 + $0x128] sm:$0xff]
    %v1891 = vld [vmem:[#allocation2 + $0x130] sm:$0xff]
    %v1892 = vld [vmem:[#allocation2 + $0x138] sm:$0xff]
    %v1893 = vld [vmem:[#allocation4] sm:$0xff]
    %v1894 = vld [vmem:[#allocation4 + $0x8] sm:$0xff]
    %v1895 = vld [vmem:[#allocation4 + $0x10] sm:$0xff]
    %v1896 = vld [vmem:[#allocation4 + $0x18] sm:$0xff]
    %v1897 = vld [vmem:[#allocation4 + $0x20] sm:$0xff]
    %v1898 = vld [vmem:[#allocation4 + $0x28] sm:$0xff]
    %v1899 = vld [vmem:[#allocation4 + $0x30] sm:$0xff]
    %v1900 = vld [vmem:[#allocation4 + $0x38] sm:$0xff]
    %v1901 = vld [vmem:[#allocation4 + $0x40] sm:$0xff]
    %v1902 = vld [vmem:[#allocation4 + $0x48] sm:$0xff]
    %v1903 = vld [vmem:[#allocation4 + $0x50] sm:$0xff]
    %v1904 = vld [vmem:[#allocation4 + $0x58] sm:$0xff]
    %v1905 = vld [vmem:[#allocation4 + $0x60] sm:$0xff]
    %v1906 = vld [vmem:[#allocation4 + $0x68] sm:$0xff]
    %v1907 = vld [vmem:[#allocation4 + $0x70] sm:$0xff]
    %v1908 = vld [vmem:[#allocation4 + $0x78] sm:$0xff]
    %v1909 = vld [vmem:[#allocation4 + $0x80] sm:$0xff]
    %v1910 = vld [vmem:[#allocation4 + $0x88] sm:$0xff]
    %v1911 = vld [vmem:[#allocation4 + $0x90] sm:$0xff]
    %v1912 = vld [vmem:[#allocation4 + $0x98] sm:$0xff]
    %v1913 = vld [vmem:[#allocation4 + $0xa0] sm:$0xff]
    %v1914 = vld [vmem:[#allocation4 + $0xa8] sm:$0xff]
    %v1915 = vld [vmem:[#allocation4 + $0xb0] sm:$0xff]
    %v1916 = vld [vmem:[#allocation4 + $0xb8] sm:$0xff]
    %v1917 = vld [vmem:[#allocation4 + $0xc0] sm:$0xff]
    %v1918 = vld [vmem:[#allocation4 + $0xc8] sm:$0xff]
    %v1919 = vld [vmem:[#allocation4 + $0xd0] sm:$0xff]
    %v1920 = vld [vmem:[#allocation4 + $0xd8] sm:$0xff]
    %v1921 = vld [vmem:[#allocation4 + $0xe0] sm:$0xff]
    %v1922 = vld [vmem:[#allocation4 + $0xe8] sm:$0xff]
    %v1923 = vld [vmem:[#allocation4 + $0xf0] sm:$0xff]
    %v1924 = vld [vmem:[#allocation4 + $0xf8] sm:$0xff]
    %v1925 = vld [vmem:[#allocation4 + $0x100] sm:$0xff]
    %v1926 = vld [vmem:[#allocation4 + $0x108] sm:$0xff]
    %v1927 = vld [vmem:[#allocation4 + $0x110] sm:$0xff]
    %v1928 = vld [vmem:[#allocation4 + $0x118] sm:$0xff]
    %v1929 = vld [vmem:[#allocation4 + $0x120] sm:$0xff]
    %v1930 = vld [vmem:[#allocation4 + $0x128] sm:$0xff]
    %v1931 = vld [vmem:[#allocation4 + $0x130] sm:$0xff]
    %v1932 = vld [vmem:[#allocation4 + $0x138] sm:$0xff]
    %v1933 = vld [vmem:[#allocation4 + $0x140] sm:$0xff]
    %v1934 = vld [vmem:[#allocation4 + $0x148] sm:$0xff]
    %v1935 = vld [vmem:[#allocation4 + $0x150] sm:$0xff]
    %v1936 = vld [vmem:[#allocation4 + $0x158] sm:$0xff]
    %v1937 = vld [vmem:[#allocation4 + $0x160] sm:$0xff]
    %v1938 = vld [vmem:[#allocation4 + $0x168] sm:$0xff]
    %v1939 = vld [vmem:[#allocation4 + $0x170] sm:$0xff]
    %v1940 = vld [vmem:[#allocation4 + $0x178] sm:$0xff]
    %v1941 = vld [vmem:[#allocation4 + $0x180] sm:$0xff]
    %v1942 = vld [vmem:[#allocation4 + $0x188] sm:$0xff]
    %v1943 = vld [vmem:[#allocation4 + $0x190] sm:$0xff]
    %v1944 = vld [vmem:[#allocation4 + $0x198] sm:$0xff]
    %v1945 = vld [vmem:[#allocation4 + $0x1a0] sm:$0xff]
    %v1946 = vld [vmem:[#allocation4 + $0x1a8] sm:$0xff]
    %v1947 = vld [vmem:[#allocation4 + $0x1b0] sm:$0xff]
    %v1948 = vld [vmem:[#allocation4 + $0x1b8] sm:$0xff]
    %v1949 = vld [vmem:[#allocation4 + $0x1c0] sm:$0xff]
    %v1950 = vld [vmem:[#allocation4 + $0x1c8] sm:$0xff]
    %v1951 = vld [vmem:[#allocation4 + $0x1d0] sm:$0xff]
    %v1952 = vld [vmem:[#allocation4 + $0x1d8] sm:$0xff]
    %v1953 = vld [vmem:[#allocation4 + $0x1e0] sm:$0xff]
    %v1954 = vld [vmem:[#allocation4 + $0x1e8] sm:$0xff]
    %v1955 = vld [vmem:[#allocation4 + $0x1f0] sm:$0xff]
    %v1956 = vld [vmem:[#allocation4 + $0x1f8] sm:$0xff]
    %v1957 = vld [vmem:[#allocation4 + $0x200] sm:$0xff]
    %v1958 = vld [vmem:[#allocation4 + $0x208] sm:$0xff]
    %v1959 = vld [vmem:[#allocation4 + $0x210] sm:$0xff]
    %v1960 = vld [vmem:[#allocation4 + $0x218] sm:$0xff]
    %v1961 = vld [vmem:[#allocation4 + $0x220] sm:$0xff]
    %v1962 = vld [vmem:[#allocation4 + $0x228] sm:$0xff]
    %v1963 = vld [vmem:[#allocation4 + $0x230] sm:$0xff]
    %v1964 = vld [vmem:[#allocation4 + $0x238] sm:$0xff]
    %v1965 = vld [vmem:[#allocation4 + $0x240] sm:$0xff]
    %v1966 = vld [vmem:[#allocation4 + $0x248] sm:$0xff]
    %v1967 = vld [vmem:[#allocation4 + $0x250] sm:$0xff]
    %v1968 = vld [vmem:[#allocation4 + $0x258] sm:$0xff]
    %v1969 = vld [vmem:[#allocation4 + $0x260] sm:$0xff]
    %v1970 = vld [vmem:[#allocation4 + $0x268] sm:$0xff]
    %v1971 = vld [vmem:[#allocation4 + $0x270] sm:$0xff]
    %v1972 = vld [vmem:[#allocation4 + $0x278] sm:$0xff]
    %v1973 = vld [vmem:[#allocation4 + $0x280] sm:$0xff]
    %v1974 = vld [vmem:[#allocation4 + $0x288] sm:$0xff]
    %v1975 = vld [vmem:[#allocation4 + $0x290] sm:$0xff]
    %v1976 = vld [vmem:[#allocation4 + $0x298] sm:$0xff]
    %v1977 = vld [vmem:[#allocation4 + $0x2a0] sm:$0xff]
    %v1978 = vld [vmem:[#allocation4 + $0x2a8] sm:$0xff]
    %v1979 = vld [vmem:[#allocation4 + $0x2b0] sm:$0xff]
    %v1980 = vld [vmem:[#allocation4 + $0x2b8] sm:$0xff]
    %v1981 = vld [vmem:[#allocation4 + $0x2c0] sm:$0xff]
    %v1982 = vld [vmem:[#allocation4 + $0x2c8] sm:$0xff]
    %v1983 = vld [vmem:[#allocation4 + $0x2d0] sm:$0xff]
    %v1984 = vld [vmem:[#allocation4 + $0x2d8] sm:$0xff]
    %v1985 = vld [vmem:[#allocation4 + $0x2e0] sm:$0xff]
    %v1986 = vld [vmem:[#allocation4 + $0x2e8] sm:$0xff]
    %v1987 = vld [vmem:[#allocation4 + $0x2f0] sm:$0xff]
    %v1988 = vld [vmem:[#allocation4 + $0x2f8] sm:$0xff]
    %v1989 = vld [vmem:[#allocation4 + $0x300] sm:$0xff]
    %v1990 = vld [vmem:[#allocation4 + $0x308] sm:$0xff]
    %v1991 = vld [vmem:[#allocation4 + $0x310] sm:$0xff]
    %v1992 = vld [vmem:[#allocation4 + $0x318] sm:$0xff]
    %v1993 = vld [vmem:[#allocation4 + $0x320] sm:$0xff]
    %v1994 = vld [vmem:[#allocation4 + $0x328] sm:$0xff]
    %v1995 = vld [vmem:[#allocation4 + $0x330] sm:$0xff]
    %v1996 = vld [vmem:[#allocation4 + $0x338] sm:$0xff]
    %v1997 = vld [vmem:[#allocation4 + $0x340] sm:$0xff]
    %v1998 = vld [vmem:[#allocation4 + $0x348] sm:$0xff]
    %v1999 = vld [vmem:[#allocation4 + $0x350] sm:$0xff]
    %v2000 = vld [vmem:[#allocation4 + $0x358] sm:$0xff]
    %v2001 = vld [vmem:[#allocation4 + $0x360] sm:$0xff]
    %v2002 = vld [vmem:[#allocation4 + $0x368] sm:$0xff]
    %v2003 = vld [vmem:[#allocation4 + $0x370] sm:$0xff]
    %v2004 = vld [vmem:[#allocation4 + $0x378] sm:$0xff]
    %v2005 = vld [vmem:[#allocation4 + $0x380] sm:$0xff]
    %v2006 = vld [vmem:[#allocation4 + $0x388] sm:$0xff]
    %v2007 = vld [vmem:[#allocation4 + $0x390] sm:$0xff]
    %v2008 = vld [vmem:[#allocation4 + $0x398] sm:$0xff]
    %v2009 = vld [vmem:[#allocation4 + $0x3a0] sm:$0xff]
    %v2010 = vld [vmem:[#allocation4 + $0x3a8] sm:$0xff]
    %v2011 = vld [vmem:[#allocation4 + $0x3b0] sm:$0xff]
    %v2012 = vld [vmem:[#allocation4 + $0x3b8] sm:$0xff]
    %v2013 = vld [vmem:[#allocation4 + $0x3c0] sm:$0xff]
    %v2014 = vld [vmem:[#allocation4 + $0x3c8] sm:$0xff]
    %v2015 = vld [vmem:[#allocation4 + $0x3d0] sm:$0xff]
    %v2016 = vld [vmem:[#allocation4 + $0x3d8] sm:$0xff]
    %v2017 = vld [vmem:[#allocation4 + $0x3e0] sm:$0xff]
    %v2018 = vld [vmem:[#allocation4 + $0x3e8] sm:$0xff]
    %v2019 = vld [vmem:[#allocation4 + $0x3f0] sm:$0xff]
    %v2020 = vld [vmem:[#allocation4 + $0x3f8] sm:$0xff]
    %v2021 = vld [vmem:[#allocation4 + $0x400] sm:$0xff]
    %v2022 = vld [vmem:[#allocation4 + $0x408] sm:$0xff]
    %v2023 = vld [vmem:[#allocation4 + $0x410] sm:$0xff]
    %v2024 = vld [vmem:[#allocation4 + $0x418] sm:$0xff]
    %v2025 = vld [vmem:[#allocation4 + $0x420] sm:$0xff]
    %v2026 = vld [vmem:[#allocation4 + $0x428] sm:$0xff]
    %v2027 = vld [vmem:[#allocation4 + $0x430] sm:$0xff]
    %v2028 = vld [vmem:[#allocation4 + $0x438] sm:$0xff]
    %v2029 = vld [vmem:[#allocation4 + $0x440] sm:$0xff]
    %v2030 = vld [vmem:[#allocation4 + $0x448] sm:$0xff]
    %v2031 = vld [vmem:[#allocation4 + $0x450] sm:$0xff]
    %v2032 = vld [vmem:[#allocation4 + $0x458] sm:$0xff]
    %v2033 = vld [vmem:[#allocation4 + $0x460] sm:$0xff]
    %v2034 = vld [vmem:[#allocation4 + $0x468] sm:$0xff]
    %v2035 = vld [vmem:[#allocation4 + $0x470] sm:$0xff]
    %v2036 = vld [vmem:[#allocation4 + $0x478] sm:$0xff]
    %v2037 = vld [vmem:[#allocation4 + $0x480] sm:$0xff]
    %v2038 = vld [vmem:[#allocation4 + $0x488] sm:$0xff]
    %v2039 = vld [vmem:[#allocation4 + $0x490] sm:$0xff]
    %v2040 = vld [vmem:[#allocation4 + $0x498] sm:$0xff]
    %v2041 = vld [vmem:[#allocation4 + $0x4a0] sm:$0xff]
    %v2042 = vld [vmem:[#allocation4 + $0x4a8] sm:$0xff]
    %v2043 = vld [vmem:[#allocation4 + $0x4b0] sm:$0xff]
    %v2044 = vld [vmem:[#allocation4 + $0x4b8] sm:$0xff]
    %v2045 = vld [vmem:[#allocation4 + $0x4c0] sm:$0xff]
    %v2046 = vld [vmem:[#allocation4 + $0x4c8] sm:$0xff]
    %v2047 = vld [vmem:[#allocation4 + $0x4d0] sm:$0xff]
    %v2048 = vld [vmem:[#allocation4 + $0x4d8] sm:$0xff]
    %v2049 = vld [vmem:[#allocation4 + $0x4e0] sm:$0xff]
    %v2050 = vld [vmem:[#allocation4 + $0x4e8] sm:$0xff]
    %v2051 = vld [vmem:[#allocation4 + $0x4f0] sm:$0xff]
    %v2052 = vld [vmem:[#allocation4 + $0x4f8] sm:$0xff]
    %v2213 = vunpack.c.l.b16 %v1893
    %v2214 = vunpack.c.h.b16 %v1893
    %v2215 = vunpack.c.l.b16 %v1894
    %v2216 = vunpack.c.h.b16 %v1894
    %v2217 = vunpack.c.l.b16 %v1895
    %v2218 = vunpack.c.h.b16 %v1895
    %v2219 = vunpack.c.l.b16 %v1896
    %v2220 = vunpack.c.h.b16 %v1896
    %v2221 = vunpack.c.l.b16 %v1897
    %v2222 = vunpack.c.h.b16 %v1897
    %v2223 = vunpack.c.l.b16 %v1898
    %v2224 = vunpack.c.h.b16 %v1898
    %v2225 = vunpack.c.l.b16 %v1899
    %v2226 = vunpack.c.h.b16 %v1899
    %v2227 = vunpack.c.l.b16 %v1900
    %v2228 = vunpack.c.h.b16 %v1900
    %v2229 = vunpack.c.l.b16 %v1901
    %v2230 = vunpack.c.h.b16 %v1901
    %v2231 = vunpack.c.l.b16 %v1902
    %v2232 = vunpack.c.h.b16 %v1902
    %v2233 = vunpack.c.l.b16 %v1903
    %v2234 = vunpack.c.h.b16 %v1903
    %v2235 = vunpack.c.l.b16 %v1904
    %v2236 = vunpack.c.h.b16 %v1904
    %v2237 = vunpack.c.l.b16 %v1905
    %v2238 = vunpack.c.h.b16 %v1905
    %v2239 = vunpack.c.l.b16 %v1906
    %v2240 = vunpack.c.h.b16 %v1906
    %v2241 = vunpack.c.l.b16 %v1907
    %v2242 = vunpack.c.h.b16 %v1907
    %v2243 = vunpack.c.l.b16 %v1908
    %v2244 = vunpack.c.h.b16 %v1908
    %v2245 = vunpack.c.l.b16 %v1909
    %v2246 = vunpack.c.h.b16 %v1909
    %v2247 = vunpack.c.l.b16 %v1910
    %v2248 = vunpack.c.h.b16 %v1910
    %v2249 = vunpack.c.l.b16 %v1911
    %v2250 = vunpack.c.h.b16 %v1911
    %v2251 = vunpack.c.l.b16 %v1912
    %v2252 = vunpack.c.h.b16 %v1912
    %v2253 = vunpack.c.l.b16 %v1913
    %v2254 = vunpack.c.h.b16 %v1913
    %v2255 = vunpack.c.l.b16 %v1914
    %v2256 = vunpack.c.h.b16 %v1914
    %v2257 = vunpack.c.l.b16 %v1915
    %v2258 = vunpack.c.h.b16 %v1915
    %v2259 = vunpack.c.l.b16 %v1916
    %v2260 = vunpack.c.h.b16 %v1916
    %v2261 = vunpack.c.l.b16 %v1917
    %v2262 = vunpack.c.h.b16 %v1917
    %v2263 = vunpack.c.l.b16 %v1918
    %v2264 = vunpack.c.h.b16 %v1918
    %v2265 = vunpack.c.l.b16 %v1919
    %v2266 = vunpack.c.h.b16 %v1919
    %v2267 = vunpack.c.l.b16 %v1920
    %v2268 = vunpack.c.h.b16 %v1920
    %v2269 = vunpack.c.l.b16 %v1921
    %v2270 = vunpack.c.h.b16 %v1921
    %v2271 = vunpack.c.l.b16 %v1922
    %v2272 = vunpack.c.h.b16 %v1922
    %v2273 = vunpack.c.l.b16 %v1923
    %v2274 = vunpack.c.h.b16 %v1923
    %v2275 = vunpack.c.l.b16 %v1924
    %v2276 = vunpack.c.h.b16 %v1924
    %v2277 = vunpack.c.l.b16 %v1925
    %v2278 = vunpack.c.h.b16 %v1925
    %v2279 = vunpack.c.l.b16 %v1926
    %v2280 = vunpack.c.h.b16 %v1926
    %v2281 = vunpack.c.l.b16 %v1927
    %v2282 = vunpack.c.h.b16 %v1927
    %v2283 = vunpack.c.l.b16 %v1928
    %v2284 = vunpack.c.h.b16 %v1928
    %v2285 = vunpack.c.l.b16 %v1929
    %v2286 = vunpack.c.h.b16 %v1929
    %v2287 = vunpack.c.l.b16 %v1930
    %v2288 = vunpack.c.h.b16 %v1930
    %v2289 = vunpack.c.l.b16 %v1931
    %v2290 = vunpack.c.h.b16 %v1931
    %v2291 = vunpack.c.l.b16 %v1932
    %v2292 = vunpack.c.h.b16 %v1932
    %v2293 = vunpack.c.l.b16 %v1933
    %v2294 = vunpack.c.h.b16 %v1933
    %v2295 = vunpack.c.l.b16 %v1934
    %v2296 = vunpack.c.h.b16 %v1934
    %v2297 = vunpack.c.l.b16 %v1935
    %v2298 = vunpack.c.h.b16 %v1935
    %v2299 = vunpack.c.l.b16 %v1936
    %v2300 = vunpack.c.h.b16 %v1936
    %v2301 = vunpack.c.l.b16 %v1937
    %v2302 = vunpack.c.h.b16 %v1937
    %v2303 = vunpack.c.l.b16 %v1938
    %v2304 = vunpack.c.h.b16 %v1938
    %v2305 = vunpack.c.l.b16 %v1939
    %v2306 = vunpack.c.h.b16 %v1939
    %v2307 = vunpack.c.l.b16 %v1940
    %v2308 = vunpack.c.h.b16 %v1940
    %v2309 = vunpack.c.l.b16 %v1941
    %v2310 = vunpack.c.h.b16 %v1941
    %v2311 = vunpack.c.l.b16 %v1942
    %v2312 = vunpack.c.h.b16 %v1942
    %v2313 = vunpack.c.l.b16 %v1943
    %v2314 = vunpack.c.h.b16 %v1943
    %v2315 = vunpack.c.l.b16 %v1944
    %v2316 = vunpack.c.h.b16 %v1944
    %v2317 = vunpack.c.l.b16 %v1945
    %v2318 = vunpack.c.h.b16 %v1945
    %v2319 = vunpack.c.l.b16 %v1946
    %v2320 = vunpack.c.h.b16 %v1946
    %v2321 = vunpack.c.l.b16 %v1947
    %v2322 = vunpack.c.h.b16 %v1947
    %v2323 = vunpack.c.l.b16 %v1948
    %v2324 = vunpack.c.h.b16 %v1948
    %v2325 = vunpack.c.l.b16 %v1949
    %v2326 = vunpack.c.h.b16 %v1949
    %v2327 = vunpack.c.l.b16 %v1950
    %v2328 = vunpack.c.h.b16 %v1950
    %v2329 = vunpack.c.l.b16 %v1951
    %v2330 = vunpack.c.h.b16 %v1951
    %v2331 = vunpack.c.l.b16 %v1952
    %v2332 = vunpack.c.h.b16 %v1952
    %v2333 = vunpack.c.l.b16 %v1953
    %v2334 = vunpack.c.h.b16 %v1953
    %v2335 = vunpack.c.l.b16 %v1954
    %v2336 = vunpack.c.h.b16 %v1954
    %v2337 = vunpack.c.l.b16 %v1955
    %v2338 = vunpack.c.h.b16 %v1955
    %v2339 = vunpack.c.l.b16 %v1956
    %v2340 = vunpack.c.h.b16 %v1956
    %v2341 = vunpack.c.l.b16 %v1957
    %v2342 = vunpack.c.h.b16 %v1957
    %v2343 = vunpack.c.l.b16 %v1958
    %v2344 = vunpack.c.h.b16 %v1958
    %v2345 = vunpack.c.l.b16 %v1959
    %v2346 = vunpack.c.h.b16 %v1959
    %v2347 = vunpack.c.l.b16 %v1960
    %v2348 = vunpack.c.h.b16 %v1960
    %v2349 = vunpack.c.l.b16 %v1961
    %v2350 = vunpack.c.h.b16 %v1961
    %v2351 = vunpack.c.l.b16 %v1962
    %v2352 = vunpack.c.h.b16 %v1962
    %v2353 = vunpack.c.l.b16 %v1963
    %v2354 = vunpack.c.h.b16 %v1963
    %v2355 = vunpack.c.l.b16 %v1964
    %v2356 = vunpack.c.h.b16 %v1964
    %v2357 = vunpack.c.l.b16 %v1965
    %v2358 = vunpack.c.h.b16 %v1965
    %v2359 = vunpack.c.l.b16 %v1966
    %v2360 = vunpack.c.h.b16 %v1966
    %v2361 = vunpack.c.l.b16 %v1967
    %v2362 = vunpack.c.h.b16 %v1967
    %v2363 = vunpack.c.l.b16 %v1968
    %v2364 = vunpack.c.h.b16 %v1968
    %v2365 = vunpack.c.l.b16 %v1969
    %v2366 = vunpack.c.h.b16 %v1969
    %v2367 = vunpack.c.l.b16 %v1970
    %v2368 = vunpack.c.h.b16 %v1970
    %v2369 = vunpack.c.l.b16 %v1971
    %v2370 = vunpack.c.h.b16 %v1971
    %v2371 = vunpack.c.l.b16 %v1972
    %v2372 = vunpack.c.h.b16 %v1972
    %v2373 = vunpack.c.l.b16 %v1973
    %v2374 = vunpack.c.h.b16 %v1973
    %v2375 = vunpack.c.l.b16 %v1974
    %v2376 = vunpack.c.h.b16 %v1974
    %v2377 = vunpack.c.l.b16 %v1975
    %v2378 = vunpack.c.h.b16 %v1975
    %v2379 = vunpack.c.l.b16 %v1976
    %v2380 = vunpack.c.h.b16 %v1976
    %v2381 = vunpack.c.l.b16 %v1977
    %v2382 = vunpack.c.h.b16 %v1977
    %v2383 = vunpack.c.l.b16 %v1978
    %v2384 = vunpack.c.h.b16 %v1978
    %v2385 = vunpack.c.l.b16 %v1979
    %v2386 = vunpack.c.h.b16 %v1979
    %v2387 = vunpack.c.l.b16 %v1980
    %v2388 = vunpack.c.h.b16 %v1980
    %v2389 = vunpack.c.l.b16 %v1981
    %v2390 = vunpack.c.h.b16 %v1981
    %v2391 = vunpack.c.l.b16 %v1982
    %v2392 = vunpack.c.h.b16 %v1982
    %v2393 = vunpack.c.l.b16 %v1983
    %v2394 = vunpack.c.h.b16 %v1983
    %v2395 = vunpack.c.l.b16 %v1984
    %v2396 = vunpack.c.h.b16 %v1984
    %v2397 = vunpack.c.l.b16 %v1985
    %v2398 = vunpack.c.h.b16 %v1985
    %v2399 = vunpack.c.l.b16 %v1986
    %v2400 = vunpack.c.h.b16 %v1986
    %v2401 = vunpack.c.l.b16 %v1987
    %v2402 = vunpack.c.h.b16 %v1987
    %v2403 = vunpack.c.l.b16 %v1988
    %v2404 = vunpack.c.h.b16 %v1988
    %v2405 = vunpack.c.l.b16 %v1989
    %v2406 = vunpack.c.h.b16 %v1989
    %v2407 = vunpack.c.l.b16 %v1990
    %v2408 = vunpack.c.h.b16 %v1990
    %v2409 = vunpack.c.l.b16 %v1991
    %v2410 = vunpack.c.h.b16 %v1991
    %v2411 = vunpack.c.l.b16 %v1992
    %v2412 = vunpack.c.h.b16 %v1992
    %v2413 = vunpack.c.l.b16 %v1993
    %v2414 = vunpack.c.h.b16 %v1993
    %v2415 = vunpack.c.l.b16 %v1994
    %v2416 = vunpack.c.h.b16 %v1994
    %v2417 = vunpack.c.l.b16 %v1995
    %v2418 = vunpack.c.h.b16 %v1995
    %v2419 = vunpack.c.l.b16 %v1996
    %v2420 = vunpack.c.h.b16 %v1996
    %v2421 = vunpack.c.l.b16 %v1997
    %v2422 = vunpack.c.h.b16 %v1997
    %v2423 = vunpack.c.l.b16 %v1998
    %v2424 = vunpack.c.h.b16 %v1998
    %v2425 = vunpack.c.l.b16 %v1999
    %v2426 = vunpack.c.h.b16 %v1999
    %v2427 = vunpack.c.l.b16 %v2000
    %v2428 = vunpack.c.h.b16 %v2000
    %v2429 = vunpack.c.l.b16 %v2001
    %v2430 = vunpack.c.h.b16 %v2001
    %v2431 = vunpack.c.l.b16 %v2002
    %v2432 = vunpack.c.h.b16 %v2002
    %v2433 = vunpack.c.l.b16 %v2003
    %v2434 = vunpack.c.h.b16 %v2003
    %v2435 = vunpack.c.l.b16 %v2004
    %v2436 = vunpack.c.h.b16 %v2004
    %v2437 = vunpack.c.l.b16 %v2005
    %v2438 = vunpack.c.h.b16 %v2005
    %v2439 = vunpack.c.l.b16 %v2006
    %v2440 = vunpack.c.h.b16 %v2006
    %v2441 = vunpack.c.l.b16 %v2007
    %v2442 = vunpack.c.h.b16 %v2007
    %v2443 = vunpack.c.l.b16 %v2008
    %v2444 = vunpack.c.h.b16 %v2008
    %v2445 = vunpack.c.l.b16 %v2009
    %v2446 = vunpack.c.h.b16 %v2009
    %v2447 = vunpack.c.l.b16 %v2010
    %v2448 = vunpack.c.h.b16 %v2010
    %v2449 = vunpack.c.l.b16 %v2011
    %v2450 = vunpack.c.h.b16 %v2011
    %v2451 = vunpack.c.l.b16 %v2012
    %v2452 = vunpack.c.h.b16 %v2012
    %v2453 = vunpack.c.l.b16 %v2013
    %v2454 = vunpack.c.h.b16 %v2013
    %v2455 = vunpack.c.l.b16 %v2014
    %v2456 = vunpack.c.h.b16 %v2014
    %v2457 = vunpack.c.l.b16 %v2015
    %v2458 = vunpack.c.h.b16 %v2015
    %v2459 = vunpack.c.l.b16 %v2016
    %v2460 = vunpack.c.h.b16 %v2016
    %v2461 = vunpack.c.l.b16 %v2017
    %v2462 = vunpack.c.h.b16 %v2017
    %v2463 = vunpack.c.l.b16 %v2018
    %v2464 = vunpack.c.h.b16 %v2018
    %v2465 = vunpack.c.l.b16 %v2019
    %v2466 = vunpack.c.h.b16 %v2019
    %v2467 = vunpack.c.l.b16 %v2020
    %v2468 = vunpack.c.h.b16 %v2020
    %v2469 = vunpack.c.l.b16 %v2021
    %v2470 = vunpack.c.h.b16 %v2021
    %v2471 = vunpack.c.l.b16 %v2022
    %v2472 = vunpack.c.h.b16 %v2022
    %v2473 = vunpack.c.l.b16 %v2023
    %v2474 = vunpack.c.h.b16 %v2023
    %v2475 = vunpack.c.l.b16 %v2024
    %v2476 = vunpack.c.h.b16 %v2024
    %v2477 = vunpack.c.l.b16 %v2025
    %v2478 = vunpack.c.h.b16 %v2025
    %v2479 = vunpack.c.l.b16 %v2026
    %v2480 = vunpack.c.h.b16 %v2026
    %v2481 = vunpack.c.l.b16 %v2027
    %v2482 = vunpack.c.h.b16 %v2027
    %v2483 = vunpack.c.l.b16 %v2028
    %v2484 = vunpack.c.h.b16 %v2028
    %v2485 = vunpack.c.l.b16 %v2029
    %v2486 = vunpack.c.h.b16 %v2029
    %v2487 = vunpack.c.l.b16 %v2030
    %v2488 = vunpack.c.h.b16 %v2030
    %v2489 = vunpack.c.l.b16 %v2031
    %v2490 = vunpack.c.h.b16 %v2031
    %v2491 = vunpack.c.l.b16 %v2032
    %v2492 = vunpack.c.h.b16 %v2032
    %v2493 = vunpack.c.l.b16 %v2033
    %v2494 = vunpack.c.h.b16 %v2033
    %v2495 = vunpack.c.l.b16 %v2034
    %v2496 = vunpack.c.h.b16 %v2034
    %v2497 = vunpack.c.l.b16 %v2035
    %v2498 = vunpack.c.h.b16 %v2035
    %v2499 = vunpack.c.l.b16 %v2036
    %v2500 = vunpack.c.h.b16 %v2036
    %v2501 = vunpack.c.l.b16 %v2037
    %v2502 = vunpack.c.h.b16 %v2037
    %v2503 = vunpack.c.l.b16 %v2038
    %v2504 = vunpack.c.h.b16 %v2038
    %v2505 = vunpack.c.l.b16 %v2039
    %v2506 = vunpack.c.h.b16 %v2039
    %v2507 = vunpack.c.l.b16 %v2040
    %v2508 = vunpack.c.h.b16 %v2040
    %v2509 = vunpack.c.l.b16 %v2041
    %v2510 = vunpack.c.h.b16 %v2041
    %v2511 = vunpack.c.l.b16 %v2042
    %v2512 = vunpack.c.h.b16 %v2042
    %v2513 = vunpack.c.l.b16 %v2043
    %v2514 = vunpack.c.h.b16 %v2043
    %v2515 = vunpack.c.l.b16 %v2044
    %v2516 = vunpack.c.h.b16 %v2044
    %v2517 = vunpack.c.l.b16 %v2045
    %v2518 = vunpack.c.h.b16 %v2045
    %v2519 = vunpack.c.l.b16 %v2046
    %v2520 = vunpack.c.h.b16 %v2046
    %v2521 = vunpack.c.l.b16 %v2047
    %v2522 = vunpack.c.h.b16 %v2047
    %v2523 = vunpack.c.l.b16 %v2048
    %v2524 = vunpack.c.h.b16 %v2048
    %v2525 = vunpack.c.l.b16 %v2049
    %v2526 = vunpack.c.h.b16 %v2049
    %v2527 = vunpack.c.l.b16 %v2050
    %v2528 = vunpack.c.h.b16 %v2050
    %v2529 = vunpack.c.l.b16 %v2051
    %v2530 = vunpack.c.h.b16 %v2051
    %v2531 = vunpack.c.l.b16 %v2052
    %v2532 = vunpack.c.h.b16 %v2052
    %v2533 = vpack.c.b16 %v2215, %v2213
    %v2534 = vpack.c.b16 %v2216, %v2214
    %v2535 = vpack.c.b16 %v2219, %v2217
    %v2536 = vpack.c.b16 %v2220, %v2218
    %v2537 = vpack.c.b16 %v2223, %v2221
    %v2538 = vpack.c.b16 %v2224, %v2222
    %v2539 = vpack.c.b16 %v2227, %v2225
    %v2540 = vpack.c.b16 %v2228, %v2226
    %v2541 = vpack.c.b16 %v2231, %v2229
    %v2542 = vpack.c.b16 %v2232, %v2230
    %v2543 = vpack.c.b16 %v2235, %v2233
    %v2544 = vpack.c.b16 %v2236, %v2234
    %v2545 = vpack.c.b16 %v2239, %v2237
    %v2546 = vpack.c.b16 %v2240, %v2238
    %v2547 = vpack.c.b16 %v2243, %v2241
    %v2548 = vpack.c.b16 %v2244, %v2242
    %v2549 = vpack.c.b16 %v2247, %v2245
    %v2550 = vpack.c.b16 %v2248, %v2246
    %v2551 = vpack.c.b16 %v2251, %v2249
    %v2552 = vpack.c.b16 %v2252, %v2250
    %v2553 = vpack.c.b16 %v2255, %v2253
    %v2554 = vpack.c.b16 %v2256, %v2254
    %v2555 = vpack.c.b16 %v2259, %v2257
    %v2556 = vpack.c.b16 %v2260, %v2258
    %v2557 = vpack.c.b16 %v2263, %v2261
    %v2558 = vpack.c.b16 %v2264, %v2262
    %v2559 = vpack.c.b16 %v2267, %v2265
    %v2560 = vpack.c.b16 %v2268, %v2266
    %v2561 = vpack.c.b16 %v2271, %v2269
    %v2562 = vpack.c.b16 %v2272, %v2270
    %v2563 = vpack.c.b16 %v2275, %v2273
    %v2564 = vpack.c.b16 %v2276, %v2274
    %v2565 = vpack.c.b16 %v2279, %v2277
    %v2566 = vpack.c.b16 %v2280, %v2278
    %v2567 = vpack.c.b16 %v2283, %v2281
    %v2568 = vpack.c.b16 %v2284, %v2282
    %v2569 = vpack.c.b16 %v2287, %v2285
    %v2570 = vpack.c.b16 %v2288, %v2286
    %v2571 = vpack.c.b16 %v2291, %v2289
    %v2572 = vpack.c.b16 %v2292, %v2290
    %v2573 = vpack.c.b16 %v2295, %v2293
    %v2574 = vpack.c.b16 %v2296, %v2294
    %v2575 = vpack.c.b16 %v2299, %v2297
    %v2576 = vpack.c.b16 %v2300, %v2298
    %v2577 = vpack.c.b16 %v2303, %v2301
    %v2578 = vpack.c.b16 %v2304, %v2302
    %v2579 = vpack.c.b16 %v2307, %v2305
    %v2580 = vpack.c.b16 %v2308, %v2306
    %v2581 = vpack.c.b16 %v2311, %v2309
    %v2582 = vpack.c.b16 %v2312, %v2310
    %v2583 = vpack.c.b16 %v2315, %v2313
    %v2584 = vpack.c.b16 %v2316, %v2314
    %v2585 = vpack.c.b16 %v2319, %v2317
    %v2586 = vpack.c.b16 %v2320, %v2318
    %v2587 = vpack.c.b16 %v2323, %v2321
    %v2588 = vpack.c.b16 %v2324, %v2322
    %v2589 = vpack.c.b16 %v2327, %v2325
    %v2590 = vpack.c.b16 %v2328, %v2326
    %v2591 = vpack.c.b16 %v2331, %v2329
    %v2592 = vpack.c.b16 %v2332, %v2330
    %v2593 = vpack.c.b16 %v2335, %v2333
    %v2594 = vpack.c.b16 %v2336, %v2334
    %v2595 = vpack.c.b16 %v2339, %v2337
    %v2596 = vpack.c.b16 %v2340, %v2338
    %v2597 = vpack.c.b16 %v2343, %v2341
    %v2598 = vpack.c.b16 %v2344, %v2342
    %v2599 = vpack.c.b16 %v2347, %v2345
    %v2600 = vpack.c.b16 %v2348, %v2346
    %v2601 = vpack.c.b16 %v2351, %v2349
    %v2602 = vpack.c.b16 %v2352, %v2350
    %v2603 = vpack.c.b16 %v2355, %v2353
    %v2604 = vpack.c.b16 %v2356, %v2354
    %v2605 = vpack.c.b16 %v2359, %v2357
    %v2606 = vpack.c.b16 %v2360, %v2358
    %v2607 = vpack.c.b16 %v2363, %v2361
    %v2608 = vpack.c.b16 %v2364, %v2362
    %v2609 = vpack.c.b16 %v2367, %v2365
    %v2610 = vpack.c.b16 %v2368, %v2366
    %v2611 = vpack.c.b16 %v2371, %v2369
    %v2612 = vpack.c.b16 %v2372, %v2370
    %v2613 = vpack.c.b16 %v2375, %v2373
    %v2614 = vpack.c.b16 %v2376, %v2374
    %v2615 = vpack.c.b16 %v2379, %v2377
    %v2616 = vpack.c.b16 %v2380, %v2378
    %v2617 = vpack.c.b16 %v2383, %v2381
    %v2618 = vpack.c.b16 %v2384, %v2382
    %v2619 = vpack.c.b16 %v2387, %v2385
    %v2620 = vpack.c.b16 %v2388, %v2386
    %v2621 = vpack.c.b16 %v2391, %v2389
    %v2622 = vpack.c.b16 %v2392, %v2390
    %v2623 = vpack.c.b16 %v2395, %v2393
    %v2624 = vpack.c.b16 %v2396, %v2394
    %v2625 = vpack.c.b16 %v2399, %v2397
    %v2626 = vpack.c.b16 %v2400, %v2398
    %v2627 = vpack.c.b16 %v2403, %v2401
    %v2628 = vpack.c.b16 %v2404, %v2402
    %v2629 = vpack.c.b16 %v2407, %v2405
    %v2630 = vpack.c.b16 %v2408, %v2406
    %v2631 = vpack.c.b16 %v2411, %v2409
    %v2632 = vpack.c.b16 %v2412, %v2410
    %v2633 = vpack.c.b16 %v2415, %v2413
    %v2634 = vpack.c.b16 %v2416, %v2414
    %v2635 = vpack.c.b16 %v2419, %v2417
    %v2636 = vpack.c.b16 %v2420, %v2418
    %v2637 = vpack.c.b16 %v2423, %v2421
    %v2638 = vpack.c.b16 %v2424, %v2422
    %v2639 = vpack.c.b16 %v2427, %v2425
    %v2640 = vpack.c.b16 %v2428, %v2426
    %v2641 = vpack.c.b16 %v2431, %v2429
    %v2642 = vpack.c.b16 %v2432, %v2430
    %v2643 = vpack.c.b16 %v2435, %v2433
    %v2644 = vpack.c.b16 %v2436, %v2434
    %v2645 = vpack.c.b16 %v2439, %v2437
    %v2646 = vpack.c.b16 %v2440, %v2438
    %v2647 = vpack.c.b16 %v2443, %v2441
    %v2648 = vpack.c.b16 %v2444, %v2442
    %v2649 = vpack.c.b16 %v2447, %v2445
    %v2650 = vpack.c.b16 %v2448, %v2446
    %v2651 = vpack.c.b16 %v2451, %v2449
    %v2652 = vpack.c.b16 %v2452, %v2450
    %v2653 = vpack.c.b16 %v2455, %v2453
    %v2654 = vpack.c.b16 %v2456, %v2454
    %v2655 = vpack.c.b16 %v2459, %v2457
    %v2656 = vpack.c.b16 %v2460, %v2458
    %v2657 = vpack.c.b16 %v2463, %v2461
    %v2658 = vpack.c.b16 %v2464, %v2462
    %v2659 = vpack.c.b16 %v2467, %v2465
    %v2660 = vpack.c.b16 %v2468, %v2466
    %v2661 = vpack.c.b16 %v2471, %v2469
    %v2662 = vpack.c.b16 %v2472, %v2470
    %v2663 = vpack.c.b16 %v2475, %v2473
    %v2664 = vpack.c.b16 %v2476, %v2474
    %v2665 = vpack.c.b16 %v2479, %v2477
    %v2666 = vpack.c.b16 %v2480, %v2478
    %v2667 = vpack.c.b16 %v2483, %v2481
    %v2668 = vpack.c.b16 %v2484, %v2482
    %v2669 = vpack.c.b16 %v2487, %v2485
    %v2670 = vpack.c.b16 %v2488, %v2486
    %v2671 = vpack.c.b16 %v2491, %v2489
    %v2672 = vpack.c.b16 %v2492, %v2490
    %v2673 = vpack.c.b16 %v2495, %v2493
    %v2674 = vpack.c.b16 %v2496, %v2494
    %v2675 = vpack.c.b16 %v2499, %v2497
    %v2676 = vpack.c.b16 %v2500, %v2498
    %v2677 = vpack.c.b16 %v2503, %v2501
    %v2678 = vpack.c.b16 %v2504, %v2502
    %v2679 = vpack.c.b16 %v2507, %v2505
    %v2680 = vpack.c.b16 %v2508, %v2506
    %v2681 = vpack.c.b16 %v2511, %v2509
    %v2682 = vpack.c.b16 %v2512, %v2510
    %v2683 = vpack.c.b16 %v2515, %v2513
    %v2684 = vpack.c.b16 %v2516, %v2514
    %v2685 = vpack.c.b16 %v2519, %v2517
    %v2686 = vpack.c.b16 %v2520, %v2518
    %v2687 = vpack.c.b16 %v2523, %v2521
    %v2688 = vpack.c.b16 %v2524, %v2522
    %v2689 = vpack.c.b16 %v2527, %v2525
    %v2690 = vpack.c.b16 %v2528, %v2526
    %v2691 = vpack.c.b16 %v2531, %v2529
    %v2692 = vpack.c.b16 %v2532, %v2530
    %2853 = vmatprep.subr.bf16.mxu0 %v2534
    %2854 = vmatpush1.bf16.msra.mxu0 %v2533
    %2855 = vmatprep.subr.bf16.mxu0 %v2536
    %2856 = vmatpush1.bf16.msra.mxu0 %v2535
    %2857 = vmatprep.subr.bf16.mxu0 %v2538
    %2858 = vmatpush1.bf16.msra.mxu0 %v2537
    %2859 = vmatprep.subr.bf16.mxu0 %v2540
    %2860 = vmatpush1.bf16.msra.mxu0 %v2539
    %2861 = vmatprep.subr.bf16.mxu0 %v2542
    %2862 = vmatpush1.bf16.msra.mxu0 %v2541
    %2863 = vmatprep.subr.bf16.mxu0 %v2544
    %2864 = vmatpush1.bf16.msra.mxu0 %v2543
    %2865 = vmatprep.subr.bf16.mxu0 %v2546
    %2866 = vmatpush1.bf16.msra.mxu0 %v2545
    %2867 = vmatprep.subr.bf16.mxu0 %v2548
    %2868 = vmatpush1.bf16.msra.mxu0 %v2547
    %2869 = vmatprep.subr.bf16.mxu0 %v2550
    %2870 = vmatpush1.bf16.msra.mxu0 %v2549
    %2871 = vmatprep.subr.bf16.mxu0 %v2552
    %2872 = vmatpush1.bf16.msra.mxu0 %v2551
    %2873 = vmatprep.subr.bf16.mxu0 %v2554
    %2874 = vmatpush1.bf16.msra.mxu0 %v2553
    %2875 = vmatprep.subr.bf16.mxu0 %v2556
    %2876 = vmatpush1.bf16.msra.mxu0 %v2555
    %2877 = vmatprep.subr.bf16.mxu0 %v2558
    %2878 = vmatpush1.bf16.msra.mxu0 %v2557
    %2879 = vmatprep.subr.bf16.mxu0 %v2560
    %2880 = vmatpush1.bf16.msra.mxu0 %v2559
    %2881 = vmatprep.subr.bf16.mxu0 %v2562
    %2882 = vmatpush1.bf16.msra.mxu0 %v2561
    %2883 = vmatprep.subr.bf16.mxu0 %v2564
    %2884 = vmatpush1.bf16.msra.mxu0 %v2563
    %2885 = vmatprep.mubr.bf16.mxu0 %v1854
    %2886 = vmatmul.mubr.bf16.gmra.mrb[0].mxu0 %v1853
    %v2887 = vpop.f32.mrb[0].mxu0
    %v2888 = vadd.f32 0.0, %v2887
    %v2889 = vpop.f32.mrb[0].mxu0
    %v2890 = vadd.f32 0.0, %v2889
    %v2891 = vpop.f32.mrb[0].mxu0
    %v2892 = vadd.f32 0.0, %v2891
    %v2893 = vpop.f32.mrb[0].mxu0
    %v2894 = vadd.f32 0.0, %v2893
    %2895 = vmatprep.mubr.bf16.mxu0 %v1864
    %2896 = vmatmul.mubr.bf16.gmra.mrb[0].mxu0 %v1863
    %v2897 = vpop.f32.mrb[0].mxu0
    %v2898 = vadd.f32 0.0, %v2897
    %v2899 = vpop.f32.mrb[0].mxu0
    %v2900 = vadd.f32 0.0, %v2899
    %v2901 = vpop.f32.mrb[0].mxu0
    %v2902 = vadd.f32 0.0, %v2901
    %v2903 = vpop.f32.mrb[0].mxu0
    %v2904 = vadd.f32 0.0, %v2903
    %2905 = vmatprep.mubr.bf16.mxu0 %v1874
    %2906 = vmatmul.mubr.bf16.gmra.mrb[0].mxu0 %v1873
    %v2907 = vpop.f32.mrb[0].mxu0
    %v2908 = vadd.f32 0.0, %v2907
    %v2909 = vpop.f32.mrb[0].mxu0
    %v2910 = vadd.f32 0.0, %v2909
    %v2911 = vpop.f32.mrb[0].mxu0
    %v2912 = vadd.f32 0.0, %v2911
    %v2913 = vpop.f32.mrb[0].mxu0
    %v2914 = vadd.f32 0.0, %v2913
    %2915 = vmatprep.mubr.bf16.mxu0 %v1884
    %2916 = vmatmul.mubr.bf16.gmra.mrb[0].mxu0 %v1883
    %v2917 = vpop.f32.mrb[0].mxu0
    %v2918 = vadd.f32 0.0, %v2917
    %v2919 = vpop.f32.mrb[0].mxu0
    %v2920 = vadd.f32 0.0, %v2919
    %v2921 = vpop.f32.mrb[0].mxu0
    %v2922 = vadd.f32 0.0, %v2921
    %v2923 = vpop.f32.mrb[0].mxu0
    %v2924 = vadd.f32 0.0, %v2923
    %2925 = vdwg.mxu0
    %2926 = vmatprep.subr.bf16.mxu0 %v2566
    %2927 = vmatpush1.bf16.msra.mxu0 %v2565
    %2928 = vmatprep.subr.bf16.mxu0 %v2568
    %2929 = vmatpush1.bf16.msra.mxu0 %v2567
    %2930 = vmatprep.subr.bf16.mxu0 %v2570
    %2931 = vmatpush1.bf16.msra.mxu0 %v2569
    %2932 = vmatprep.subr.bf16.mxu0 %v2572
    %2933 = vmatpush1.bf16.msra.mxu0 %v2571
    %2934 = vmatprep.subr.bf16.mxu0 %v2574
    %2935 = vmatpush1.bf16.msra.mxu0 %v2573
    %2936 = vmatprep.subr.bf16.mxu0 %v2576
    %2937 = vmatpush1.bf16.msra.mxu0 %v2575
    %2938 = vmatprep.subr.bf16.mxu0 %v2578
    %2939 = vmatpush1.bf16.msra.mxu0 %v2577
    %2940 = vmatprep.subr.bf16.mxu0 %v2580
    %2941 = vmatpush1.bf16.msra.mxu0 %v2579
    %2942 = vmatprep.subr.bf16.mxu0 %v2582
    %2943 = vmatpush1.bf16.msra.mxu0 %v2581
    %2944 = vmatprep.subr.bf16.mxu0 %v2584
    %2945 = vmatpush1.bf16.msra.mxu0 %v2583
    %2946 = vmatprep.subr.bf16.mxu0 %v2586
    %2947 = vmatpush1.bf16.msra.mxu0 %v2585
    %2948 = vmatprep.subr.bf16.mxu0 %v2588
    %2949 = vmatpush1.bf16.msra.mxu0 %v2587
    %2950 = vmatprep.subr.bf16.mxu0 %v2590
    %2951 = vmatpush1.bf16.msra.mxu0 %v2589
    %2952 = vmatprep.subr.bf16.mxu0 %v2592
    %2953 = vmatpush1.bf16.msra.mxu0 %v2591
    %2954 = vmatprep.subr.bf16.mxu0 %v2594
    %2955 = vmatpush1.bf16.msra.mxu0 %v2593
    %2956 = vmatprep.subr.bf16.mxu0 %v2596
    %2957 = vmatpush1.bf16.msra.mxu0 %v2595
    %2958 = vmatprep.mubr.bf16.mxu0 %v1856
    %2959 = vmatmul.mubr.bf16.gmra.mrb[0].mxu0 %v1855
    %v2960 = vpop.f32.mrb[0].mxu0
    %v2961 = vadd.f32 %v2888, %v2960
    %v2962 = vpop.f32.mrb[0].mxu0
    %v2963 = vadd.f32 %v2890, %v2962
    %v2964 = vpop.f32.mrb[0].mxu0
    %v2965 = vadd.f32 %v2892, %v2964
    %v2966 = vpop.f32.mrb[0].mxu0
    %v2967 = vadd.f32 %v2894, %v2966
    %2968 = vmatprep.mubr.bf16.mxu0 %v1866
    %2969 = vmatmul.mubr.bf16.gmra.mrb[0].mxu0 %v1865
    %v2970 = vpop.f32.mrb[0].mxu0
    %v2971 = vadd.f32 %v2898, %v2970
    %v2972 = vpop.f32.mrb[0].mxu0
    %v2973 = vadd.f32 %v2900, %v2972
    %v2974 = vpop.f32.mrb[0].mxu0
    %v2975 = vadd.f32 %v2902, %v2974
    %v2976 = vpop.f32.mrb[0].mxu0
    %v2977 = vadd.f32 %v2904, %v2976
    %2978 = vmatprep.mubr.bf16.mxu0 %v1876
    %2979 = vmatmul.mubr.bf16.gmra.mrb[0].mxu0 %v1875
    %v2980 = vpop.f32.mrb[0].mxu0
    %v2981 = vadd.f32 %v2908, %v2980
    %v2982 = vpop.f32.mrb[0].mxu0
    %v2983 = vadd.f32 %v2910, %v2982
    %v2984 = vpop.f32.mrb[0].mxu0
    %v2985 = vadd.f32 %v2912, %v2984
    %v2986 = vpop.f32.mrb[0].mxu0
    %v2987 = vadd.f32 %v2914, %v2986
    %2988 = vmatprep.mubr.bf16.mxu0 %v1886
    %2989 = vmatmul.mubr.bf16.gmra.mrb[0].mxu0 %v1885
    %v2990 = vpop.f32.mrb[0].mxu0
    %v2991 = vadd.f32 %v2918, %v2990
    %v2992 = vpop.f32.mrb[0].mxu0
    %v2993 = vadd.f32 %v2920, %v2992
    %v2994 = vpop.f32.mrb[0].mxu0
    %v2995 = vadd.f32 %v2922, %v2994
    %v2996 = vpop.f32.mrb[0].mxu0
    %v2997 = vadd.f32 %v2924, %v2996
    %2998 = vdwg.mxu0
    %2999 = vmatprep.subr.bf16.mxu0 %v2598
    %3000 = vmatpush1.bf16.msra.mxu0 %v2597
    %3001 = vmatprep.subr.bf16.mxu0 %v2600
    %3002 = vmatpush1.bf16.msra.mxu0 %v2599
    %3003 = vmatprep.subr.bf16.mxu0 %v2602
    %3004 = vmatpush1.bf16.msra.mxu0 %v2601
    %3005 = vmatprep.subr.bf16.mxu0 %v2604
    %3006 = vmatpush1.bf16.msra.mxu0 %v2603
    %3007 = vmatprep.subr.bf16.mxu0 %v2606
    %3008 = vmatpush1.bf16.msra.mxu0 %v2605
    %3009 = vmatprep.subr.bf16.mxu0 %v2608
    %3010 = vmatpush1.bf16.msra.mxu0 %v2607
    %3011 = vmatprep.subr.bf16.mxu0 %v2610
    %3012 = vmatpush1.bf16.msra.mxu0 %v2609
    %3013 = vmatprep.subr.bf16.mxu0 %v2612
    %3014 = vmatpush1.bf16.msra.mxu0 %v2611
    %3015 = vmatprep.subr.bf16.mxu0 %v2614
    %3016 = vmatpush1.bf16.msra.mxu0 %v2613
    %3017 = vmatprep.subr.bf16.mxu0 %v2616
    %3018 = vmatpush1.bf16.msra.mxu0 %v2615
    %3019 = vmatprep.subr.bf16.mxu0 %v2618
    %3020 = vmatpush1.bf16.msra.mxu0 %v2617
    %3021 = vmatprep.subr.bf16.mxu0 %v2620
    %3022 = vmatpush1.bf16.msra.mxu0 %v2619
    %3023 = vmatprep.subr.bf16.mxu0 %v2622
    %3024 = vmatpush1.bf16.msra.mxu0 %v2621
    %3025 = vmatprep.subr.bf16.mxu0 %v2624
    %3026 = vmatpush1.bf16.msra.mxu0 %v2623
    %3027 = vmatprep.subr.bf16.mxu0 %v2626
    %3028 = vmatpush1.bf16.msra.mxu0 %v2625
    %3029 = vmatprep.subr.bf16.mxu0 %v2628
    %3030 = vmatpush1.bf16.msra.mxu0 %v2627
    %3031 = vmatprep.mubr.bf16.mxu0 %v1858
    %3032 = vmatmul.mubr.bf16.gmra.mrb[0].mxu0 %v1857
    %v3033 = vpop.f32.mrb[0].mxu0
    %v3034 = vadd.f32 %v2961, %v3033
    %v3035 = vpop.f32.mrb[0].mxu0
    %v3036 = vadd.f32 %v2963, %v3035
    %v3037 = vpop.f32.mrb[0].mxu0
    %v3038 = vadd.f32 %v2965, %v3037
    %v3039 = vpop.f32.mrb[0].mxu0
    %v3040 = vadd.f32 %v2967, %v3039
    %3041 = vmatprep.mubr.bf16.mxu0 %v1868
    %3042 = vmatmul.mubr.bf16.gmra.mrb[0].mxu0 %v1867
    %v3043 = vpop.f32.mrb[0].mxu0
    %v3044 = vadd.f32 %v2971, %v3043
    %v3045 = vpop.f32.mrb[0].mxu0
    %v3046 = vadd.f32 %v2973, %v3045
    %v3047 = vpop.f32.mrb[0].mxu0
    %v3048 = vadd.f32 %v2975, %v3047
    %v3049 = vpop.f32.mrb[0].mxu0
    %v3050 = vadd.f32 %v2977, %v3049
    %3051 = vmatprep.mubr.bf16.mxu0 %v1878
    %3052 = vmatmul.mubr.bf16.gmra.mrb[0].mxu0 %v1877
    %v3053 = vpop.f32.mrb[0].mxu0
    %v3054 = vadd.f32 %v2981, %v3053
    %v3055 = vpop.f32.mrb[0].mxu0
    %v3056 = vadd.f32 %v2983, %v3055
    %v3057 = vpop.f32.mrb[0].mxu0
    %v3058 = vadd.f32 %v2985, %v3057
    %v3059 = vpop.f32.mrb[0].mxu0
    %v3060 = vadd.f32 %v2987, %v3059
    %3061 = vmatprep.mubr.bf16.mxu0 %v1888
    %3062 = vmatmul.mubr.bf16.gmra.mrb[0].mxu0 %v1887
    %v3063 = vpop.f32.mrb[0].mxu0
    %v3064 = vadd.f32 %v2991, %v3063
    %v3065 = vpop.f32.mrb[0].mxu0
    %v3066 = vadd.f32 %v2993, %v3065
    %v3067 = vpop.f32.mrb[0].mxu0
    %v3068 = vadd.f32 %v2995, %v3067
    %v3069 = vpop.f32.mrb[0].mxu0
    %v3070 = vadd.f32 %v2997, %v3069
    %3071 = vdwg.mxu0
    %3072 = vmatprep.subr.bf16.mxu0 %v2630
    %3073 = vmatpush1.bf16.msra.mxu0 %v2629
    %3074 = vmatprep.subr.bf16.mxu0 %v2632
    %3075 = vmatpush1.bf16.msra.mxu0 %v2631
    %3076 = vmatprep.subr.bf16.mxu0 %v2634
    %3077 = vmatpush1.bf16.msra.mxu0 %v2633
    %3078 = vmatprep.subr.bf16.mxu0 %v2636
    %3079 = vmatpush1.bf16.msra.mxu0 %v2635
    %3080 = vmatprep.subr.bf16.mxu0 %v2638
    %3081 = vmatpush1.bf16.msra.mxu0 %v2637
    %3082 = vmatprep.subr.bf16.mxu0 %v2640
    %3083 = vmatpush1.bf16.msra.mxu0 %v2639
    %3084 = vmatprep.subr.bf16.mxu0 %v2642
    %3085 = vmatpush1.bf16.msra.mxu0 %v2641
    %3086 = vmatprep.subr.bf16.mxu0 %v2644
    %3087 = vmatpush1.bf16.msra.mxu0 %v2643
    %3088 = vmatprep.subr.bf16.mxu0 %v2646
    %3089 = vmatpush1.bf16.msra.mxu0 %v2645
    %3090 = vmatprep.subr.bf16.mxu0 %v2648
    %3091 = vmatpush1.bf16.msra.mxu0 %v2647
    %3092 = vmatprep.subr.bf16.mxu0 %v2650
    %3093 = vmatpush1.bf16.msra.mxu0 %v2649
    %3094 = vmatprep.subr.bf16.mxu0 %v2652
    %3095 = vmatpush1.bf16.msra.mxu0 %v2651
    %3096 = vmatprep.subr.bf16.mxu0 %v2654
    %3097 = vmatpush1.bf16.msra.mxu0 %v2653
    %3098 = vmatprep.subr.bf16.mxu0 %v2656
    %3099 = vmatpush1.bf16.msra.mxu0 %v2655
    %3100 = vmatprep.subr.bf16.mxu0 %v2658
    %3101 = vmatpush1.bf16.msra.mxu0 %v2657
    %3102 = vmatprep.subr.bf16.mxu0 %v2660
    %3103 = vmatpush1.bf16.msra.mxu0 %v2659
    %3104 = vmatprep.mubr.bf16.mxu0 %v1860
    %3105 = vmatmul.mubr.bf16.gmra.mrb[0].mxu0 %v1859
    %v3106 = vpop.f32.mrb[0].mxu0
    %v3107 = vadd.f32 %v3034, %v3106
    %v3108 = vpop.f32.mrb[0].mxu0
    %v3109 = vadd.f32 %v3036, %v3108
    %v3110 = vpop.f32.mrb[0].mxu0
    %v3111 = vadd.f32 %v3038, %v3110
    %v3112 = vpop.f32.mrb[0].mxu0
    %v3113 = vadd.f32 %v3040, %v3112
    %3114 = vmatprep.mubr.bf16.mxu0 %v1870
    %3115 = vmatmul.mubr.bf16.gmra.mrb[0].mxu0 %v1869
    %v3116 = vpop.f32.mrb[0].mxu0
    %v3117 = vadd.f32 %v3044, %v3116
    %v3118 = vpop.f32.mrb[0].mxu0
    %v3119 = vadd.f32 %v3046, %v3118
    %v3120 = vpop.f32.mrb[0].mxu0
    %v3121 = vadd.f32 %v3048, %v3120
    %v3122 = vpop.f32.mrb[0].mxu0
    %v3123 = vadd.f32 %v3050, %v3122
    %3124 = vmatprep.mubr.bf16.mxu0 %v1880
    %3125 = vmatmul.mubr.bf16.gmra.mrb[0].mxu0 %v1879
    %v3126 = vpop.f32.mrb[0].mxu0
    %v3127 = vadd.f32 %v3054, %v3126
    %v3128 = vpop.f32.mrb[0].mxu0
    %v3129 = vadd.f32 %v3056, %v3128
    %v3130 = vpop.f32.mrb[0].mxu0
    %v3131 = vadd.f32 %v3058, %v3130
    %v3132 = vpop.f32.mrb[0].mxu0
    %v3133 = vadd.f32 %v3060, %v3132
    %3134 = vmatprep.mubr.bf16.mxu0 %v1890
    %3135 = vmatmul.mubr.bf16.gmra.mrb[0].mxu0 %v1889
    %v3136 = vpop.f32.mrb[0].mxu0
    %v3137 = vadd.f32 %v3064, %v3136
    %v3138 = vpop.f32.mrb[0].mxu0
    %v3139 = vadd.f32 %v3066, %v3138
    %v3140 = vpop.f32.mrb[0].mxu0
    %v3141 = vadd.f32 %v3068, %v3140
    %v3142 = vpop.f32.mrb[0].mxu0
    %v3143 = vadd.f32 %v3070, %v3142
    %3144 = vdwg.mxu0
    %3145 = vmatprep.subr.bf16.mxu0 %v2662
    %3146 = vmatpush1.bf16.msra.mxu0 %v2661
    %3147 = vmatprep.subr.bf16.mxu0 %v2664
    %3148 = vmatpush1.bf16.msra.mxu0 %v2663
    %3149 = vmatprep.subr.bf16.mxu0 %v2666
    %3150 = vmatpush1.bf16.msra.mxu0 %v2665
    %3151 = vmatprep.subr.bf16.mxu0 %v2668
    %3152 = vmatpush1.bf16.msra.mxu0 %v2667
    %3153 = vmatprep.subr.bf16.mxu0 %v2670
    %3154 = vmatpush1.bf16.msra.mxu0 %v2669
    %3155 = vmatprep.subr.bf16.mxu0 %v2672
    %3156 = vmatpush1.bf16.msra.mxu0 %v2671
    %3157 = vmatprep.subr.bf16.mxu0 %v2674
    %3158 = vmatpush1.bf16.msra.mxu0 %v2673
    %3159 = vmatprep.subr.bf16.mxu0 %v2676
    %3160 = vmatpush1.bf16.msra.mxu0 %v2675
    %3161 = vmatprep.subr.bf16.mxu0 %v2678
    %3162 = vmatpush1.bf16.msra.mxu0 %v2677
    %3163 = vmatprep.subr.bf16.mxu0 %v2680
    %3164 = vmatpush1.bf16.msra.mxu0 %v2679
    %3165 = vmatprep.subr.bf16.mxu0 %v2682
    %3166 = vmatpush1.bf16.msra.mxu0 %v2681
    %3167 = vmatprep.subr.bf16.mxu0 %v2684
    %3168 = vmatpush1.bf16.msra.mxu0 %v2683
    %3169 = vmatprep.subr.bf16.mxu0 %v2686
    %3170 = vmatpush1.bf16.msra.mxu0 %v2685
    %3171 = vmatprep.subr.bf16.mxu0 %v2688
    %3172 = vmatpush1.bf16.msra.mxu0 %v2687
    %3173 = vmatprep.subr.bf16.mxu0 %v2690
    %3174 = vmatpush1.bf16.msra.mxu0 %v2689
    %3175 = vmatprep.subr.bf16.mxu0 %v2692
    %3176 = vmatpush1.bf16.msra.mxu0 %v2691
    %3177 = vmatprep.mubr.bf16.mxu0 %v1862
    %3178 = vmatmul.mubr.bf16.gmra.mrb[0].mxu0 %v1861
    %v3179 = vpop.f32.mrb[0].mxu0
    %v3180 = vadd.f32 %v3107, %v3179
    %v3181 = vpop.f32.mrb[0].mxu0
    %v3182 = vadd.f32 %v3109, %v3181
    %v3183 = vpop.f32.mrb[0].mxu0
    %v3184 = vadd.f32 %v3111, %v3183
    %v3185 = vpop.f32.mrb[0].mxu0
    %v3186 = vadd.f32 %v3113, %v3185
    %3187 = vmatprep.mubr.bf16.mxu0 %v1872
    %3188 = vmatmul.mubr.bf16.gmra.mrb[0].mxu0 %v1871
    %v3189 = vpop.f32.mrb[0].mxu0
    %v3190 = vadd.f32 %v3117, %v3189
    %v3191 = vpop.f32.mrb[0].mxu0
    %v3192 = vadd.f32 %v3119, %v3191
    %v3193 = vpop.f32.mrb[0].mxu0
    %v3194 = vadd.f32 %v3121, %v3193
    %v3195 = vpop.f32.mrb[0].mxu0
    %v3196 = vadd.f32 %v3123, %v3195
    %3197 = vmatprep.mubr.bf16.mxu0 %v1882
    %3198 = vmatmul.mubr.bf16.gmra.mrb[0].mxu0 %v1881
    %v3199 = vpop.f32.mrb[0].mxu0
    %v3200 = vadd.f32 %v3127, %v3199
    %v3201 = vpop.f32.mrb[0].mxu0
    %v3202 = vadd.f32 %v3129, %v3201
    %v3203 = vpop.f32.mrb[0].mxu0
    %v3204 = vadd.f32 %v3131, %v3203
    %v3205 = vpop.f32.mrb[0].mxu0
    %v3206 = vadd.f32 %v3133, %v3205
    %3207 = vmatprep.mubr.bf16.mxu0 %v1892
    %3208 = vmatmul.mubr.bf16.gmra.mrb[0].mxu0 %v1891
    %v3209 = vpop.f32.mrb[0].mxu0
    %v3210 = vadd.f32 %v3137, %v3209
    %v3211 = vpop.f32.mrb[0].mxu0
    %v3212 = vadd.f32 %v3139, %v3211
    %v3213 = vpop.f32.mrb[0].mxu0
    %v3214 = vadd.f32 %v3141, %v3213
    %v3215 = vpop.f32.mrb[0].mxu0
    %v3216 = vadd.f32 %v3143, %v3215
    %3217 = vdwg.mxu0
    %v3218 = vmax.f32 %v3180, %v3182
    %v3219 = vmax.f32 %v3184, %v3186
    %v3220 = vmax.f32 %v3190, %v3192
    %v3221 = vmax.f32 %v3194, %v3196
    %v3222 = vmax.f32 %v3200, %v3202
    %v3223 = vmax.f32 %v3204, %v3206
    %v3224 = vmax.f32 %v3210, %v3212
    %v3225 = vmax.f32 %v3214, %v3216
    %v3226 = vld [vmem:[%s4] sm:$0x1]
    %v3228 = vlaneseq
    %v3229 = vshrl.u32 %v3228, 7
    %v3230 = vsub.s32 0, %v3229
    %v3231 = vrot.slane %v3226, %v3230
    %v3233 = vadd.f32 %v3218, %v3231
    %v3234 = vadd.f32 %v3219, %v3231
    %v3235 = vadd.f32 %v3220, %v3231
    %v3236 = vadd.f32 %v3221, %v3231
    %v3237 = vadd.f32 %v3222, %v3231
    %v3238 = vadd.f32 %v3223, %v3231
    %v3239 = vadd.f32 %v3224, %v3231
    %v3240 = vadd.f32 %v3225, %v3231
    %v3241 = vmax.f32 %v3233, 0.0
    %v3242 = vmax.f32 %v3234, 0.0
    %v3243 = vmax.f32 %v3235, 0.0
    %v3244 = vmax.f32 %v3236, 0.0
    %v3245 = vmax.f32 %v3237, 0.0
    %v3246 = vmax.f32 %v3238, 0.0
    %v3247 = vmax.f32 %v3239, 0.0
    %v3248 = vmax.f32 %v3240, 0.0
    %v3257 = vrot.slane %v3241, 1
    %v3258 = vrot.slane %v3242, 1
    %v3259 = vrot.slane %v3243, 1
    %v3260 = vrot.slane %v3244, 1
    %v3261 = vrot.slane %v3245, 1
    %v3262 = vrot.slane %v3246, 1
    %v3263 = vrot.slane %v3247, 1
    %v3264 = vrot.slane %v3248, 1
    %v3273 = vmax.f32 %v3241, %v3257
    %v3274 = vmax.f32 %v3242, %v3258
    %v3275 = vmax.f32 %v3243, %v3259
    %v3276 = vmax.f32 %v3244, %v3260
    %v3277 = vmax.f32 %v3245, %v3261
    %v3278 = vmax.f32 %v3246, %v3262
    %v3279 = vmax.f32 %v3247, %v3263
    %v3280 = vmax.f32 %v3248, %v3264
    %v3281 = vpack.c.bf16 %v3273, %v3273
    %v3282 = vpack.c.bf16 %v3274, %v3274
    %v3283 = vpack.c.bf16 %v3275, %v3275
    %v3284 = vpack.c.bf16 %v3276, %v3276
    %v3285 = vpack.c.bf16 %v3277, %v3277
    %v3286 = vpack.c.bf16 %v3278, %v3278
    %v3287 = vpack.c.bf16 %v3279, %v3279
    %v3288 = vpack.c.bf16 %v3280, %v3280
    %v3297 = vunpack.c.l.b16 %v3281
    %v3298 = vunpack.c.l.b16 %v3282
    %v3299 = vunpack.c.l.b16 %v3283
    %v3300 = vunpack.c.l.b16 %v3284
    %v3301 = vunpack.c.l.b16 %v3285
    %v3302 = vunpack.c.l.b16 %v3286
    %v3303 = vunpack.c.l.b16 %v3287
    %v3304 = vunpack.c.l.b16 %v3288
    %v3305 = vpack.c.b16 %v3297, %v3297
    %v3306 = vpack.c.b16 %v3298, %v3298
    %v3307 = vpack.c.b16 %v3299, %v3299
    %v3308 = vpack.c.b16 %v3300, %v3300
    %v3309 = vpack.c.b16 %v3301, %v3301
    %v3310 = vpack.c.b16 %v3302, %v3302
    %v3311 = vpack.c.b16 %v3303, %v3303
    %v3312 = vpack.c.b16 %v3304, %v3304
    %v3313 = vunpack.c.l.b16 %v3305
    %v3314 = vunpack.c.l.b16 %v3306
    %v3315 = vunpack.c.l.b16 %v3307
    %v3316 = vunpack.c.l.b16 %v3308
    %v3317 = vunpack.c.l.b16 %v3309
    %v3318 = vunpack.c.l.b16 %v3310
    %v3319 = vunpack.c.l.b16 %v3311
    %v3320 = vunpack.c.l.b16 %v3312
    %v3321 = vrot.slane %v3314, 7
    %vm3322 = vcmask 1041409
    %v3323 = vsel %vm3322, %v3321, %v3313
    %v3324 = vrot.slane %v3315, 6
    %vm3325 = vcmask 1042434
    %v3326 = vsel %vm3325, %v3324, %v3323
    %v3327 = vrot.slane %v3316, 5
    %vm3328 = vcmask 1043459
    %v3329 = vsel %vm3328, %v3327, %v3326
    %v3330 = vrot.slane %v3317, 4
    %vm3331 = vcmask 1044484
    %v3332 = vsel %vm3331, %v3330, %v3329
    %v3333 = vrot.slane %v3318, 3
    %vm3334 = vcmask 1045509
    %v3335 = vsel %vm3334, %v3333, %v3332
    %v3336 = vrot.slane %v3319, 2
    %vm3337 = vcmask 1046534
    %v3338 = vsel %vm3337, %v3336, %v3335
    %v3339 = vrot.slane %v3320, 1
    %vm3340 = vcmask 1047559
    %v3341 = vsel %vm3340, %v3339, %v3338
    %v3342 = vpack.c.b16 %v3341, %v3341
    %3344 = vst [vmem:[#allocation3] sm:$0xf] %v3342
    %v3345 = vrot.slane %v3313, 2
    %v3346 = vrot.slane %v3314, 1
    %v3347 = vsel %vm3322, %v3346, %v3345
    %v3348 = vsel %vm3325, %v3315, %v3347
    %v3349 = vrot.slane %v3316, 7
    %v3350 = vsel %vm3328, %v3349, %v3348
    %v3351 = vrot.slane %v3317, 6
    %v3352 = vsel %vm3331, %v3351, %v3350
    %v3353 = vrot.slane %v3318, 5
    %v3354 = vsel %vm3334, %v3353, %v3352
    %v3355 = vrot.slane %v3319, 4
    %v3356 = vsel %vm3337, %v3355, %v3354
    %v3357 = vrot.slane %v3320, 3
    %v3358 = vsel %vm3340, %v3357, %v3356
    %v3359 = vpack.c.b16 %v3358, %v3358
    %3361 = vst [vmem:[#allocation3 + $0x4] sm:$0xf] %v3359
    %v3362 = vrot.slane %v3313, 4
    %v3363 = vrot.slane %v3314, 3
    %v3364 = vsel %vm3322, %v3363, %v3362
    %v3365 = vrot.slane %v3315, 2
    %v3366 = vsel %vm3325, %v3365, %v3364
    %v3367 = vrot.slane %v3316, 1
    %v3368 = vsel %vm3328, %v3367, %v3366
    %v3369 = vsel %vm3331, %v3317, %v3368
    %v3370 = vrot.slane %v3318, 7
    %v3371 = vsel %vm3334, %v3370, %v3369
    %v3372 = vrot.slane %v3319, 6
    %v3373 = vsel %vm3337, %v3372, %v3371
    %v3374 = vrot.slane %v3320, 5
    %v3375 = vsel %vm3340, %v3374, %v3373
    %v3376 = vpack.c.b16 %v3375, %v3375
    %3378 = vst [vmem:[#allocation3 + $0x8] sm:$0xf] %v3376
    %v3379 = vrot.slane %v3313, 6
    %v3380 = vrot.slane %v3314, 5
    %v3381 = vsel %vm3322, %v3380, %v3379
    %v3382 = vrot.slane %v3315, 4
    %v3383 = vsel %vm3325, %v3382, %v3381
    %v3384 = vrot.slane %v3316, 3
    %v3385 = vsel %vm3328, %v3384, %v3383
    %v3386 = vrot.slane %v3317, 2
    %v3387 = vsel %vm3331, %v3386, %v3385
    %v3388 = vrot.slane %v3318, 1
    %v3389 = vsel %vm3334, %v3388, %v3387
    %v3390 = vsel %vm3337, %v3319, %v3389
    %v3391 = vrot.slane %v3320, 7
    %v3392 = vsel %vm3340, %v3391, %v3390
    %v3393 = vpack.c.b16 %v3392, %v3392
    %3395 = vst [vmem:[#allocation3 + $0xc] sm:$0xf] %v3393
    %v3396 = vld [vmem:[#allocation3] sm:$0xff]
    %v3397 = vld [vmem:[#allocation3 + $0x8] sm:$0xff]
    %v3398 = vld [vmem:[#allocation6] sm:$0xff]
    %v3399 = vld [vmem:[#allocation6 + $0x8] sm:$0xff]
    %v3400 = vld [vmem:[#allocation6 + $0x10] sm:$0xff]
    %v3401 = vld [vmem:[#allocation6 + $0x18] sm:$0xff]
    %v3402 = vld [vmem:[#allocation6 + $0x20] sm:$0xff]
    %v3403 = vld [vmem:[#allocation6 + $0x28] sm:$0xff]
    %v3404 = vld [vmem:[#allocation6 + $0x30] sm:$0xff]
    %v3405 = vld [vmem:[#allocation6 + $0x38] sm:$0xff]
    %v3406 = vld [vmem:[#allocation6 + $0x40] sm:$0xff]
    %v3407 = vld [vmem:[#allocation6 + $0x48] sm:$0xff]
    %v3408 = vld [vmem:[#allocation6 + $0x50] sm:$0xff]
    %v3409 = vld [vmem:[#allocation6 + $0x58] sm:$0xff]
    %v3410 = vld [vmem:[#allocation6 + $0x60] sm:$0xff]
    %v3411 = vld [vmem:[#allocation6 + $0x68] sm:$0xff]
    %v3412 = vld [vmem:[#allocation6 + $0x70] sm:$0xff]
    %v3413 = vld [vmem:[#allocation6 + $0x78] sm:$0xff]
    %v3414 = vld [vmem:[#allocation6 + $0x80] sm:$0xff]
    %v3415 = vld [vmem:[#allocation6 + $0x88] sm:$0xff]
    %v3416 = vld [vmem:[#allocation6 + $0x90] sm:$0xff]
    %v3417 = vld [vmem:[#allocation6 + $0x98] sm:$0xff]
    %v3418 = vld [vmem:[#allocation6 + $0xa0] sm:$0xff]
    %v3419 = vld [vmem:[#allocation6 + $0xa8] sm:$0xff]
    %v3420 = vld [vmem:[#allocation6 + $0xb0] sm:$0xff]
    %v3421 = vld [vmem:[#allocation6 + $0xb8] sm:$0xff]
    %v3422 = vld [vmem:[#allocation6 + $0xc0] sm:$0xff]
    %v3423 = vld [vmem:[#allocation6 + $0xc8] sm:$0xff]
    %v3424 = vld [vmem:[#allocation6 + $0xd0] sm:$0xff]
    %v3425 = vld [vmem:[#allocation6 + $0xd8] sm:$0xff]
    %v3426 = vld [vmem:[#allocation6 + $0xe0] sm:$0xff]
    %v3427 = vld [vmem:[#allocation6 + $0xe8] sm:$0xff]
    %v3428 = vld [vmem:[#allocation6 + $0xf0] sm:$0xff]
    %v3429 = vld [vmem:[#allocation6 + $0xf8] sm:$0xff]
    %v3430 = vld [vmem:[#allocation6 + $0x100] sm:$0xff]
    %v3431 = vld [vmem:[#allocation6 + $0x108] sm:$0xff]
    %v3432 = vld [vmem:[#allocation6 + $0x110] sm:$0xff]
    %v3433 = vld [vmem:[#allocation6 + $0x118] sm:$0xff]
    %v3434 = vld [vmem:[#allocation6 + $0x120] sm:$0xff]
    %v3435 = vld [vmem:[#allocation6 + $0x128] sm:$0xff]
    %v3436 = vld [vmem:[#allocation6 + $0x130] sm:$0xff]
    %v3437 = vld [vmem:[#allocation6 + $0x138] sm:$0xff]
    %v3438 = vld [vmem:[#allocation6 + $0x140] sm:$0xff]
    %v3439 = vld [vmem:[#allocation6 + $0x148] sm:$0xff]
    %v3440 = vld [vmem:[#allocation6 + $0x150] sm:$0xff]
    %v3441 = vld [vmem:[#allocation6 + $0x158] sm:$0xff]
    %v3442 = vld [vmem:[#allocation6 + $0x160] sm:$0xff]
    %v3443 = vld [vmem:[#allocation6 + $0x168] sm:$0xff]
    %v3444 = vld [vmem:[#allocation6 + $0x170] sm:$0xff]
    %v3445 = vld [vmem:[#allocation6 + $0x178] sm:$0xff]
    %v3446 = vld [vmem:[#allocation6 + $0x180] sm:$0xff]
    %v3447 = vld [vmem:[#allocation6 + $0x188] sm:$0xff]
    %v3448 = vld [vmem:[#allocation6 + $0x190] sm:$0xff]
    %v3449 = vld [vmem:[#allocation6 + $0x198] sm:$0xff]
    %v3450 = vld [vmem:[#allocation6 + $0x1a0] sm:$0xff]
    %v3451 = vld [vmem:[#allocation6 + $0x1a8] sm:$0xff]
    %v3452 = vld [vmem:[#allocation6 + $0x1b0] sm:$0xff]
    %v3453 = vld [vmem:[#allocation6 + $0x1b8] sm:$0xff]
    %v3454 = vld [vmem:[#allocation6 + $0x1c0] sm:$0xff]
    %v3455 = vld [vmem:[#allocation6 + $0x1c8] sm:$0xff]
    %v3456 = vld [vmem:[#allocation6 + $0x1d0] sm:$0xff]
    %v3457 = vld [vmem:[#allocation6 + $0x1d8] sm:$0xff]
    %v3458 = vld [vmem:[#allocation6 + $0x1e0] sm:$0xff]
    %v3459 = vld [vmem:[#allocation6 + $0x1e8] sm:$0xff]
    %v3460 = vld [vmem:[#allocation6 + $0x1f0] sm:$0xff]
    %v3461 = vld [vmem:[#allocation6 + $0x1f8] sm:$0xff]
    %v3462 = vld [vmem:[%s6] sm:$0x3]
    %v3464 = vlaneseq
    %v3465 = vshrl.u32 %v3464, 7
    %v3466 = vsub.s32 0, %v3465
    %v3467 = vrot.slane %v3462, %v3466
    %v3468 = vlaneseq
    %v3469 = vshrl.u32 %v3468, 7
    %v3470 = vsub.s32 1, %v3469
    %v3471 = vrot.slane %v3462, %v3470
    %v3476 = vunpack.c.l.b16 %v3396
    %v3477 = vunpack.c.h.b16 %v3396
    %v3478 = vunpack.c.l.b16 %v3397
    %v3479 = vunpack.c.h.b16 %v3397
    %v3480 = vpack.c.b16 %v3476, %v3476
    %v3481 = vpack.c.b16 %v3477, %v3477
    %v3482 = vpack.c.b16 %v3478, %v3478
    %v3483 = vpack.c.b16 %v3479, %v3479
    %v3552 = vunpack.c.l.b16 %v3398
    %v3553 = vunpack.c.h.b16 %v3398
    %v3554 = vunpack.c.l.b16 %v3399
    %v3555 = vunpack.c.h.b16 %v3399
    %v3556 = vunpack.c.l.b16 %v3400
    %v3557 = vunpack.c.h.b16 %v3400
    %v3558 = vunpack.c.l.b16 %v3401
    %v3559 = vunpack.c.h.b16 %v3401
    %v3560 = vunpack.c.l.b16 %v3402
    %v3561 = vunpack.c.h.b16 %v3402
    %v3562 = vunpack.c.l.b16 %v3403
    %v3563 = vunpack.c.h.b16 %v3403
    %v3564 = vunpack.c.l.b16 %v3404
    %v3565 = vunpack.c.h.b16 %v3404
    %v3566 = vunpack.c.l.b16 %v3405
    %v3567 = vunpack.c.h.b16 %v3405
    %v3568 = vunpack.c.l.b16 %v3406
    %v3569 = vunpack.c.h.b16 %v3406
    %v3570 = vunpack.c.l.b16 %v3407
    %v3571 = vunpack.c.h.b16 %v3407
    %v3572 = vunpack.c.l.b16 %v3408
    %v3573 = vunpack.c.h.b16 %v3408
    %v3574 = vunpack.c.l.b16 %v3409
    %v3575 = vunpack.c.h.b16 %v3409
    %v3576 = vunpack.c.l.b16 %v3410
    %v3577 = vunpack.c.h.b16 %v3410
    %v3578 = vunpack.c.l.b16 %v3411
    %v3579 = vunpack.c.h.b16 %v3411
    %v3580 = vunpack.c.l.b16 %v3412
    %v3581 = vunpack.c.h.b16 %v3412
    %v3582 = vunpack.c.l.b16 %v3413
    %v3583 = vunpack.c.h.b16 %v3413
    %v3584 = vunpack.c.l.b16 %v3414
    %v3585 = vunpack.c.h.b16 %v3414
    %v3586 = vunpack.c.l.b16 %v3415
    %v3587 = vunpack.c.h.b16 %v3415
    %v3588 = vunpack.c.l.b16 %v3416
    %v3589 = vunpack.c.h.b16 %v3416
    %v3590 = vunpack.c.l.b16 %v3417
    %v3591 = vunpack.c.h.b16 %v3417
    %v3592 = vunpack.c.l.b16 %v3418
    %v3593 = vunpack.c.h.b16 %v3418
    %v3594 = vunpack.c.l.b16 %v3419
    %v3595 = vunpack.c.h.b16 %v3419
    %v3596 = vunpack.c.l.b16 %v3420
    %v3597 = vunpack.c.h.b16 %v3420
    %v3598 = vunpack.c.l.b16 %v3421
    %v3599 = vunpack.c.h.b16 %v3421
    %v3600 = vunpack.c.l.b16 %v3422
    %v3601 = vunpack.c.h.b16 %v3422
    %v3602 = vunpack.c.l.b16 %v3423
    %v3603 = vunpack.c.h.b16 %v3423
    %v3604 = vunpack.c.l.b16 %v3424
    %v3605 = vunpack.c.h.b16 %v3424
    %v3606 = vunpack.c.l.b16 %v3425
    %v3607 = vunpack.c.h.b16 %v3425
    %v3608 = vunpack.c.l.b16 %v3426
    %v3609 = vunpack.c.h.b16 %v3426
    %v3610 = vunpack.c.l.b16 %v3427
    %v3611 = vunpack.c.h.b16 %v3427
    %v3612 = vunpack.c.l.b16 %v3428
    %v3613 = vunpack.c.h.b16 %v3428
    %v3614 = vunpack.c.l.b16 %v3429
    %v3615 = vunpack.c.h.b16 %v3429
    %v3616 = vunpack.c.l.b16 %v3430
    %v3617 = vunpack.c.h.b16 %v3430
    %v3618 = vunpack.c.l.b16 %v3431
    %v3619 = vunpack.c.h.b16 %v3431
    %v3620 = vunpack.c.l.b16 %v3432
    %v3621 = vunpack.c.h.b16 %v3432
    %v3622 = vunpack.c.l.b16 %v3433
    %v3623 = vunpack.c.h.b16 %v3433
    %v3624 = vunpack.c.l.b16 %v3434
    %v3625 = vunpack.c.h.b16 %v3434
    %v3626 = vunpack.c.l.b16 %v3435
    %v3627 = vunpack.c.h.b16 %v3435
    %v3628 = vunpack.c.l.b16 %v3436
    %v3629 = vunpack.c.h.b16 %v3436
    %v3630 = vunpack.c.l.b16 %v3437
    %v3631 = vunpack.c.h.b16 %v3437
    %v3632 = vunpack.c.l.b16 %v3438
    %v3633 = vunpack.c.h.b16 %v3438
    %v3634 = vunpack.c.l.b16 %v3439
    %v3635 = vunpack.c.h.b16 %v3439
    %v3636 = vunpack.c.l.b16 %v3440
    %v3637 = vunpack.c.h.b16 %v3440
    %v3638 = vunpack.c.l.b16 %v3441
    %v3639 = vunpack.c.h.b16 %v3441
    %v3640 = vunpack.c.l.b16 %v3442
    %v3641 = vunpack.c.h.b16 %v3442
    %v3642 = vunpack.c.l.b16 %v3443
    %v3643 = vunpack.c.h.b16 %v3443
    %v3644 = vunpack.c.l.b16 %v3444
    %v3645 = vunpack.c.h.b16 %v3444
    %v3646 = vunpack.c.l.b16 %v3445
    %v3647 = vunpack.c.h.b16 %v3445
    %v3648 = vunpack.c.l.b16 %v3446
    %v3649 = vunpack.c.h.b16 %v3446
    %v3650 = vunpack.c.l.b16 %v3447
    %v3651 = vunpack.c.h.b16 %v3447
    %v3652 = vunpack.c.l.b16 %v3448
    %v3653 = vunpack.c.h.b16 %v3448
    %v3654 = vunpack.c.l.b16 %v3449
    %v3655 = vunpack.c.h.b16 %v3449
    %v3656 = vunpack.c.l.b16 %v3450
    %v3657 = vunpack.c.h.b16 %v3450
    %v3658 = vunpack.c.l.b16 %v3451
    %v3659 = vunpack.c.h.b16 %v3451
    %v3660 = vunpack.c.l.b16 %v3452
    %v3661 = vunpack.c.h.b16 %v3452
    %v3662 = vunpack.c.l.b16 %v3453
    %v3663 = vunpack.c.h.b16 %v3453
    %v3664 = vunpack.c.l.b16 %v3454
    %v3665 = vunpack.c.h.b16 %v3454
    %v3666 = vunpack.c.l.b16 %v3455
    %v3667 = vunpack.c.h.b16 %v3455
    %v3668 = vunpack.c.l.b16 %v3456
    %v3669 = vunpack.c.h.b16 %v3456
    %v3670 = vunpack.c.l.b16 %v3457
    %v3671 = vunpack.c.h.b16 %v3457
    %v3672 = vunpack.c.l.b16 %v3458
    %v3673 = vunpack.c.h.b16 %v3458
    %v3674 = vunpack.c.l.b16 %v3459
    %v3675 = vunpack.c.h.b16 %v3459
    %v3676 = vunpack.c.l.b16 %v3460
    %v3677 = vunpack.c.h.b16 %v3460
    %v3678 = vunpack.c.l.b16 %v3461
    %v3679 = vunpack.c.h.b16 %v3461
    %v3680 = vpack.c.b16 %v3554, %v3552
    %v3681 = vpack.c.b16 %v3555, %v3553
    %v3682 = vpack.c.b16 %v3558, %v3556
    %v3683 = vpack.c.b16 %v3559, %v3557
    %v3684 = vpack.c.b16 %v3562, %v3560
    %v3685 = vpack.c.b16 %v3563, %v3561
    %v3686 = vpack.c.b16 %v3566, %v3564
    %v3687 = vpack.c.b16 %v3567, %v3565
    %v3688 = vpack.c.b16 %v3570, %v3568
    %v3689 = vpack.c.b16 %v3571, %v3569
    %v3690 = vpack.c.b16 %v3574, %v3572
    %v3691 = vpack.c.b16 %v3575, %v3573
    %v3692 = vpack.c.b16 %v3578, %v3576
    %v3693 = vpack.c.b16 %v3579, %v3577
    %v3694 = vpack.c.b16 %v3582, %v3580
    %v3695 = vpack.c.b16 %v3583, %v3581
    %v3696 = vpack.c.b16 %v3586, %v3584
    %v3697 = vpack.c.b16 %v3587, %v3585
    %v3698 = vpack.c.b16 %v3590, %v3588
    %v3699 = vpack.c.b16 %v3591, %v3589
    %v3700 = vpack.c.b16 %v3594, %v3592
    %v3701 = vpack.c.b16 %v3595, %v3593
    %v3702 = vpack.c.b16 %v3598, %v3596
    %v3703 = vpack.c.b16 %v3599, %v3597
    %v3704 = vpack.c.b16 %v3602, %v3600
    %v3705 = vpack.c.b16 %v3603, %v3601
    %v3706 = vpack.c.b16 %v3606, %v3604
    %v3707 = vpack.c.b16 %v3607, %v3605
    %v3708 = vpack.c.b16 %v3610, %v3608
    %v3709 = vpack.c.b16 %v3611, %v3609
    %v3710 = vpack.c.b16 %v3614, %v3612
    %v3711 = vpack.c.b16 %v3615, %v3613
    %v3712 = vpack.c.b16 %v3618, %v3616
    %v3713 = vpack.c.b16 %v3619, %v3617
    %v3714 = vpack.c.b16 %v3622, %v3620
    %v3715 = vpack.c.b16 %v3623, %v3621
    %v3716 = vpack.c.b16 %v3626, %v3624
    %v3717 = vpack.c.b16 %v3627, %v3625
    %v3718 = vpack.c.b16 %v3630, %v3628
    %v3719 = vpack.c.b16 %v3631, %v3629
    %v3720 = vpack.c.b16 %v3634, %v3632
    %v3721 = vpack.c.b16 %v3635, %v3633
    %v3722 = vpack.c.b16 %v3638, %v3636
    %v3723 = vpack.c.b16 %v3639, %v3637
    %v3724 = vpack.c.b16 %v3642, %v3640
    %v3725 = vpack.c.b16 %v3643, %v3641
    %v3726 = vpack.c.b16 %v3646, %v3644
    %v3727 = vpack.c.b16 %v3647, %v3645
    %v3728 = vpack.c.b16 %v3650, %v3648
    %v3729 = vpack.c.b16 %v3651, %v3649
    %v3730 = vpack.c.b16 %v3654, %v3652
    %v3731 = vpack.c.b16 %v3655, %v3653
    %v3732 = vpack.c.b16 %v3658, %v3656
    %v3733 = vpack.c.b16 %v3659, %v3657
    %v3734 = vpack.c.b16 %v3662, %v3660
    %v3735 = vpack.c.b16 %v3663, %v3661
    %v3736 = vpack.c.b16 %v3666, %v3664
    %v3737 = vpack.c.b16 %v3667, %v3665
    %v3738 = vpack.c.b16 %v3670, %v3668
    %v3739 = vpack.c.b16 %v3671, %v3669
    %v3740 = vpack.c.b16 %v3674, %v3672
    %v3741 = vpack.c.b16 %v3675, %v3673
    %v3742 = vpack.c.b16 %v3678, %v3676
    %v3743 = vpack.c.b16 %v3679, %v3677
    %3808 = vmatprep.subr.bf16.mxu0 %v3681
    %3809 = vmatpush1.bf16.msra.mxu0 %v3680
    %3810 = vmatprep.subr.bf16.mxu0 %v3683
    %3811 = vmatpush1.bf16.msra.mxu0 %v3682
    %3812 = vmatprep.subr.bf16.mxu0 %v3685
    %3813 = vmatpush1.bf16.msra.mxu0 %v3684
    %3814 = vmatprep.subr.bf16.mxu0 %v3687
    %3815 = vmatpush1.bf16.msra.mxu0 %v3686
    %3816 = vmatprep.subr.bf16.mxu0 %v3689
    %3817 = vmatpush1.bf16.msra.mxu0 %v3688
    %3818 = vmatprep.subr.bf16.mxu0 %v3691
    %3819 = vmatpush1.bf16.msra.mxu0 %v3690
    %3820 = vmatprep.subr.bf16.mxu0 %v3693
    %3821 = vmatpush1.bf16.msra.mxu0 %v3692
    %3822 = vmatprep.subr.bf16.mxu0 %v3695
    %3823 = vmatpush1.bf16.msra.mxu0 %v3694
    %3824 = vmatprep.subr.bf16.mxu0 %v3697
    %3825 = vmatpush1.bf16.msra.mxu0 %v3696
    %3826 = vmatprep.subr.bf16.mxu0 %v3699
    %3827 = vmatpush1.bf16.msra.mxu0 %v3698
    %3828 = vmatprep.subr.bf16.mxu0 %v3701
    %3829 = vmatpush1.bf16.msra.mxu0 %v3700
    %3830 = vmatprep.subr.bf16.mxu0 %v3703
    %3831 = vmatpush1.bf16.msra.mxu0 %v3702
    %3832 = vmatprep.subr.bf16.mxu0 %v3705
    %3833 = vmatpush1.bf16.msra.mxu0 %v3704
    %3834 = vmatprep.subr.bf16.mxu0 %v3707
    %3835 = vmatpush1.bf16.msra.mxu0 %v3706
    %3836 = vmatprep.subr.bf16.mxu0 %v3709
    %3837 = vmatpush1.bf16.msra.mxu0 %v3708
    %3838 = vmatprep.subr.bf16.mxu0 %v3711
    %3839 = vmatpush1.bf16.msra.mxu0 %v3710
    %3840 = vmatprep.mubr.bf16.mxu0 %v3481
    %3841 = vmatmul.mubr.bf16.gmra.mrb[0].mxu0 %v3480
    %v3842 = vpop.f32.mrb[0].mxu0
    %v3843 = vadd.f32 %v3467, %v3842
    %v3844 = vpop.f32.mrb[0].mxu0
    %v3845 = vadd.f32 %v3471, %v3844
    %v3846 = vpop.f32.mrb[0].mxu0
    %v3847 = vpop.f32.mrb[0].mxu0
    %3848 = vdwg.mxu0
    %3849 = vmatprep.subr.bf16.mxu0 %v3713
    %3850 = vmatpush1.bf16.msra.mxu0 %v3712
    %3851 = vmatprep.subr.bf16.mxu0 %v3715
    %3852 = vmatpush1.bf16.msra.mxu0 %v3714
    %3853 = vmatprep.subr.bf16.mxu0 %v3717
    %3854 = vmatpush1.bf16.msra.mxu0 %v3716
    %3855 = vmatprep.subr.bf16.mxu0 %v3719
    %3856 = vmatpush1.bf16.msra.mxu0 %v3718
    %3857 = vmatprep.subr.bf16.mxu0 %v3721
    %3858 = vmatpush1.bf16.msra.mxu0 %v3720
    %3859 = vmatprep.subr.bf16.mxu0 %v3723
    %3860 = vmatpush1.bf16.msra.mxu0 %v3722
    %3861 = vmatprep.subr.bf16.mxu0 %v3725
    %3862 = vmatpush1.bf16.msra.mxu0 %v3724
    %3863 = vmatprep.subr.bf16.mxu0 %v3727
    %3864 = vmatpush1.bf16.msra.mxu0 %v3726
    %3865 = vmatprep.subr.bf16.mxu0 %v3729
    %3866 = vmatpush1.bf16.msra.mxu0 %v3728
    %3867 = vmatprep.subr.bf16.mxu0 %v3731
    %3868 = vmatpush1.bf16.msra.mxu0 %v3730
    %3869 = vmatprep.subr.bf16.mxu0 %v3733
    %3870 = vmatpush1.bf16.msra.mxu0 %v3732
    %3871 = vmatprep.subr.bf16.mxu0 %v3735
    %3872 = vmatpush1.bf16.msra.mxu0 %v3734
    %3873 = vmatprep.subr.bf16.mxu0 %v3737
    %3874 = vmatpush1.bf16.msra.mxu0 %v3736
    %3875 = vmatprep.subr.bf16.mxu0 %v3739
    %3876 = vmatpush1.bf16.msra.mxu0 %v3738
    %3877 = vmatprep.subr.bf16.mxu0 %v3741
    %3878 = vmatpush1.bf16.msra.mxu0 %v3740
    %3879 = vmatprep.subr.bf16.mxu0 %v3743
    %3880 = vmatpush1.bf16.msra.mxu0 %v3742
    %3881 = vmatprep.mubr.bf16.mxu0 %v3483
    %3882 = vmatmul.mubr.bf16.gmra.mrb[0].mxu0 %v3482
    %v3883 = vpop.f32.mrb[0].mxu0
    %v3884 = vadd.f32 %v3843, %v3883
    %v3885 = vpop.f32.mrb[0].mxu0
    %v3886 = vadd.f32 %v3845, %v3885
    %v3887 = vpop.f32.mrb[0].mxu0
    %v3888 = vpop.f32.mrb[0].mxu0
    %3889 = vdwg.mxu0
    %v3890 = vmax.f32 %v3884, 0.0
    %v3891 = vmax.f32 %v3886, 0.0
    %3892 = vst [vmem:[%s7] sm:$0xff] %v3890
    %3893 = vst [vmem:[%s7 + $0x8] sm:$0xff] %v3891
    // Predicated region
    $region38: #{model_cnn2_forward.1} parent=1 // pred_check
      _
    $region39: #{model_cnn2_forward.1} parent=1 // pred_check_branch
      %3895 = sbr.rel (0) target = $region41
    $region40: #{model_cnn2_forward.1} parent=1 // pred_region
      _
    $region41: #{model_cnn2_forward.1} parent=1 // pred_fallthru
      _
    // Predicated region
    $region42: #{model_cnn2_forward.1} parent=1 // pred_check
      _
    $region43: #{model_cnn2_forward.1} parent=1 // pred_check_branch
      %3897 = sbr.rel (0) target = $region45
    $region44: #{model_cnn2_forward.1} parent=1 // pred_region
      _
    $region45: #{model_cnn2_forward.1} parent=1 // pred_fallthru
      _
    %3898 = vsyncpa [#allocation5], 1
    %3899 = vsyncpa [#allocation7], 1

</llo_original>
